<compile_context>
chip_gen: v7x
topology: tpu7x:2x2x1
jax: 0.10.0
libtpu: 0.0.40
codegen_flags: <defaults>
</compile_context>

<pallas_src>
import functools

import jax
import jax.numpy as jnp
from jax.experimental import pallas as pl
from jax.experimental.pallas import tpu as pltpu

# ----------------------------- model configuration -----------------------------
BATCH = 2
CHANNELS = 3
IMG = 32
PATCH = 8
NUM_PATCHES = (IMG // PATCH) ** 2          # 16 patches
PATCH_DIM = CHANNELS * PATCH * PATCH       # 192 (feature-last slab width)
HIDDEN = 256                               # lane-dense hidden size
NUM_HEADS = 2
HEAD_DIM = HIDDEN // NUM_HEADS             # 128 -> all head slices are 128-lane aligned
MLP_DIM = 512
NUM_LAYERS = 2
SEQ = NUM_PATCHES + 1                      # cls token + patches
NUM_CLASSES = 128                          # lane-dense classifier output
LN_EPS = 1e-6


# ----------------------------- kernels -----------------------------
def _matmul_bias_kernel(a_ref, w_ref, b_ref, o_ref, acc_ref):
    """Tiled [M,K] x [K,N] + bias, f32 accumulator, K axis last ('arbitrary')."""
    k = pl.program_id(2)

    @pl.when(k == 0)
    def _():
        acc_ref[...] = jnp.zeros_like(acc_ref)

    acc_ref[...] += jnp.dot(a_ref[...], w_ref[...],
                            preferred_element_type=jnp.float32)

    @pl.when(k == pl.num_programs(2) - 1)
    def _():
        o_ref[...] = (acc_ref[...] + b_ref[...]).astype(o_ref.dtype)


def _layernorm_f32(x, g, b):
    """f32 LayerNorm over the last (lane) axis; reduction goes to the XLU slot."""
    mu = jnp.mean(x, axis=-1, keepdims=True)
    xc = x - mu
    var = jnp.mean(xc * xc, axis=-1, keepdims=True)
    xn = xc * jax.lax.rsqrt(var + LN_EPS)
    return xn * g + b


def _attn_block_kernel(x_ref, g_ref, bln_ref, wqkv_ref, bqkv_ref, wo_ref, bo_ref,
                       o_ref, *, num_heads, head_dim):
    """Fused pre-LN + QKV + multi-head attention + out-proj + residual (one batch row)."""
    d = wqkv_ref.shape[0]
    x = x_ref[0].astype(jnp.float32)                               # [S, D] f32
    seq = x.shape[0]

    xn = _layernorm_f32(x, g_ref[...], bln_ref[...])
    xn_bf = xn.astype(jnp.bfloat16)

    # QKV projection: bf16 MXU, f32 accumulation.
    qkv = jnp.dot(xn_bf, wqkv_ref[...], preferred_element_type=jnp.float32)
    qkv = qkv + bqkv_ref[...]                                      # [S, 3D] f32

    scale = 1.0 / (head_dim ** 0.5)
    y = jnp.zeros((seq, d), jnp.float32)

    # Static unroll over heads (trip count 2) -- equivalent to fori_loop(unroll=True);
    # head_dim == 128 keeps every value slice 128-lane aligned (no masked loads).
    for h in range(num_heads):
        lo = h * head_dim
        q = (qkv[:, lo:lo + head_dim] * scale).astype(jnp.bfloat16)
        k = qkv[:, d + lo:d + lo + head_dim].astype(jnp.bfloat16)
        v = qkv[:, 2 * d + lo:2 * d + lo + head_dim].astype(jnp.bfloat16)

        # scores = q @ k^T via NT dot_general (no explicit transpose).
        s = jax.lax.dot_general(q, k, (((1,), (1,)), ((), ())),
                                preferred_element_type=jnp.float32)          # [S, S]
        s = s - jnp.max(s, axis=-1, keepdims=True)                            # f32 max
        p = jnp.exp(s)
        p = p * pl.reciprocal(jnp.sum(p, axis=-1, keepdims=True), approx=True)
        o_h = jnp.dot(p.astype(jnp.bfloat16), v,
                      preferred_element_type=jnp.float32)                     # [S, hd]
        # Fold each head straight through its slice of the output projection:
        # avoids concatenating heads / non-aligned lane writes.
        y = y + jnp.dot(o_h.astype(jnp.bfloat16), wo_ref[lo:lo + head_dim, :],
                        preferred_element_type=jnp.float32)

    y = y + bo_ref[...]
    o_ref[0] = (x + y).astype(o_ref.dtype)


def _mlp_block_kernel(x_ref, g_ref, bln_ref, w1_ref, b1_ref, w2_ref, b2_ref, o_ref):
    """Fused pre-LN + MLP (up-proj, GELU, down-proj) + residual (one batch row)."""
    x = x_ref[0].astype(jnp.float32)                               # [S, D] f32
    xn = _layernorm_f32(x, g_ref[...], bln_ref[...])

    h = jnp.dot(xn.astype(jnp.bfloat16), w1_ref[...],
                preferred_element_type=jnp.float32) + b1_ref[...]
    # TODO(synk): HF DINOv2 uses exact erf-GELU; tanh approximation used (EUP-friendly).
    h = jax.nn.gelu(h, approximate=True)
    y = jnp.dot(h.astype(jnp.bfloat16), w2_ref[...],
                preferred_element_type=jnp.float32) + b2_ref[...]
    o_ref[0] = (x + y).astype(o_ref.dtype)


def _pool_head_kernel(x_ref, g_ref, bln_ref, wh_ref, bh_ref, o_ref):
    """Fused final LN + mean over tokens (dim=1) + classifier head (one batch row)."""
    x = x_ref[0].astype(jnp.float32)                               # [S, D] f32
    xn = _layernorm_f32(x, g_ref[...], bln_ref[...])
    # mean(dim=1): f32 sublane-reduction accumulator, compile-time 1/S constant.
    pooled = jnp.sum(xn, axis=0, keepdims=True) * (1.0 / x.shape[0])   # [1, D]
    logits = jnp.dot(pooled.astype(jnp.bfloat16), wh_ref[...],
                     preferred_element_type=jnp.float32) + bh_ref[...]
    o_ref[0] = logits.astype(o_ref.dtype)


# ----------------------------- pallas_call wrappers -----------------------------
def _resident_spec(shape):
    """Weight / param spec: whole array, constant index map -> stays VMEM-resident."""
    return pl.BlockSpec(shape, lambda b: (0,) * len(shape))


def patch_embed_matmul(a, w, b, *, tm=16):
    m, kdim = a.shape
    _, n = w.shape
    assert m % tm == 0
    grid = (m // tm, 1, 1)   # (rows, N-tiles, K-tiles); K last + "arbitrary"
    return pl.pallas_call(
        _matmul_bias_kernel,
        out_shape=jax.ShapeDtypeStruct((m, n), jnp.bfloat16),
        grid_spec=pltpu.PrefetchScalarGridSpec(
            num_scalar_prefetch=0,
            grid=grid,
            in_specs=[
                pl.BlockSpec((tm, kdim), lambda i, j, k: (i, k)),
                pl.BlockSpec((kdim, n), lambda i, j, k: (k, j)),
                pl.BlockSpec((1, n), lambda i, j, k: (0, j)),
            ],
            out_specs=pl.BlockSpec((tm, n), lambda i, j, k: (i, j)),
            scratch_shapes=[pltpu.VMEM((tm, n), jnp.float32)],
        ),
        compiler_params=pltpu.CompilerParams(
            dimension_semantics=("parallel", "parallel", "arbitrary")),
    )(a, w, b)


def attn_block(x, layer):
    b, s, d = x.shape
    kernel = functools.partial(_attn_block_kernel,
                               num_heads=NUM_HEADS, head_dim=HEAD_DIM)
    weights = (layer["ln1_g"], layer["ln1_b"], layer["wqkv"], layer["bqkv"],
               layer["wo"], layer["bo"])
    return pl.pallas_call(
        kernel,
        out_shape=jax.ShapeDtypeStruct((b, s, d), x.dtype),
        grid_spec=pltpu.PrefetchScalarGridSpec(
            num_scalar_prefetch=0,
            grid=(b,),
            in_specs=[pl.BlockSpec((1, s, d), lambda i: (i, 0, 0))]
                     + [_resident_spec(w.shape) for w in weights],
            out_specs=pl.BlockSpec((1, s, d), lambda i: (i, 0, 0)),
        ),
        compiler_params=pltpu.CompilerParams(dimension_semantics=("parallel",)),
    )(x, *weights)


def mlp_block(x, layer):
    b, s, d = x.shape
    weights = (layer["ln2_g"], layer["ln2_b"], layer["w1"], layer["b1"],
               layer["w2"], layer["b2"])
    return pl.pallas_call(
        _mlp_block_kernel,
        out_shape=jax.ShapeDtypeStruct((b, s, d), x.dtype),
        grid_spec=pltpu.PrefetchScalarGridSpec(
            num_scalar_prefetch=0,
            grid=(b,),
            in_specs=[pl.BlockSpec((1, s, d), lambda i: (i, 0, 0))]
                     + [_resident_spec(w.shape) for w in weights],
            out_specs=pl.BlockSpec((1, s, d), lambda i: (i, 0, 0)),
        ),
        compiler_params=pltpu.CompilerParams(dimension_semantics=("parallel",)),
    )(x, *weights)


def pool_head(x, ln_g, ln_b, head_w, head_b):
    b, s, d = x.shape
    nc = head_w.shape[1]
    weights = (ln_g, ln_b, head_w, head_b)
    out = pl.pallas_call(
        _pool_head_kernel,
        # 3-D output so the last two block dims are (1-full, NC>=128): lane-dense store.
        out_shape=jax.ShapeDtypeStruct((b, 1, nc), jnp.float32),
        grid_spec=pltpu.PrefetchScalarGridSpec(
            num_scalar_prefetch=0,
            grid=(b,),
            in_specs=[pl.BlockSpec((1, s, d), lambda i: (i, 0, 0))]
                     + [_resident_spec(w.shape) for w in weights],
            out_specs=pl.BlockSpec((1, 1, nc), lambda i: (i, 0, 0)),
        ),
        compiler_params=pltpu.CompilerParams(dimension_semantics=("parallel",)),
    )(x, *weights)
    return out.reshape(b, nc)


# ----------------------------- wrapper (layout plumbing only) -----------------------------
def patchify(x, p):
    """NCHW -> [B, num_patches, C*p*p], feature axis last (lane-dense slab)."""
    b, c, h, w = x.shape
    hp, wp = h // p, w // p
    x = x.reshape(b, c, hp, p, wp, p)
    x = x.transpose(0, 2, 4, 1, 3, 5)          # [B, hp, wp, C, p, p]
    return x.reshape(b, hp * wp, c * p * p)


def dino_classifier_forward(params, x):
    b = x.shape[0]
    # Patchify in the wrapper: rectangular, feature-last, bf16.
    patches = patchify(x, PATCH).reshape(b * NUM_PATCHES, PATCH_DIM).astype(jnp.bfloat16)
    emb = patch_embed_matmul(patches, params["patch_w"], params["patch_b"])
    emb = emb.reshape(b, NUM_PATCHES, HIDDEN)

    cls = jnp.broadcast_to(params["cls"], (b, 1, HIDDEN))
    tokens = (jnp.concatenate([cls, emb], axis=1) + params["pos"]).astype(jnp.bfloat16)

    for layer in params["layers"]:
        tokens = attn_block(tokens, layer)
        tokens = mlp_block(tokens, layer)

    # last_hidden_state (final LN) -> mean(dim=1) -> self.head(...)
    return pool_head(tokens, params["ln_f_g"], params["ln_f_b"],
                     params["head_w"], params["head_b"])


# ----------------------------- deterministic synthetic parameters -----------------------------
def init_params(key):
    keys = jax.random.split(key, 4 + 4 * NUM_LAYERS)
    kit = iter(keys)

    def nrm(shape, scale=0.02):
        return jax.random.normal(next(kit), shape, jnp.float32) * scale

    params = {
        "patch_w": nrm((PATCH_DIM, HIDDEN)).astype(jnp.bfloat16),
        "patch_b": jnp.zeros((1, HIDDEN), jnp.float32),
        "cls": nrm((1, 1, HIDDEN)).astype(jnp.bfloat16),
        "pos": nrm((1, SEQ, HIDDEN)).astype(jnp.bfloat16),
        "ln_f_g": jnp.ones((1, HIDDEN), jnp.float32),
        "ln_f_b": jnp.zeros((1, HIDDEN), jnp.float32),
        "head_w": nrm((HIDDEN, NUM_CLASSES)).astype(jnp.bfloat16),
        "head_b": jnp.zeros((1, NUM_CLASSES), jnp.float32),
        "layers": [],
    }
    for _ in range(NUM_LAYERS):
        params["layers"].append({
            "ln1_g": jnp.ones((1, HIDDEN), jnp.float32),
            "ln1_b": jnp.zeros((1, HIDDEN), jnp.float32),
            "wqkv": nrm((HIDDEN, 3 * HIDDEN)).astype(jnp.bfloat16),
            "bqkv": jnp.zeros((1, 3 * HIDDEN), jnp.float32),
            "wo": nrm((HIDDEN, HIDDEN)).astype(jnp.bfloat16),
            "bo": jnp.zeros((1, HIDDEN), jnp.float32),
            "ln2_g": jnp.ones((1, HIDDEN), jnp.float32),
            "ln2_b": jnp.zeros((1, HIDDEN), jnp.float32),
            "w1": nrm((HIDDEN, MLP_DIM)).astype(jnp.bfloat16),
            "b1": jnp.zeros((1, MLP_DIM), jnp.float32),
            "w2": nrm((MLP_DIM, HIDDEN)).astype(jnp.bfloat16),
            "b2": jnp.zeros((1, HIDDEN), jnp.float32),
        })
    return params


if __name__ == "__main__":
    key = jax.random.PRNGKey(0)
    pkey, xkey = jax.random.split(key)
    params = init_params(pkey)
    x = jax.random.normal(xkey, (BATCH, CHANNELS, IMG, IMG), dtype=jnp.float32)

    fwd = jax.jit(dino_classifier_forward)
    logits = jax.block_until_ready(fwd(params, x))

    assert logits.shape == (BATCH, NUM_CLASSES), logits.shape
    assert bool(jnp.all(jnp.isfinite(logits)))
    print("KERNEL_OK")
</pallas_src>

<mosaic_0001>
module attributes {stable_mosaic.version = 11 : i64} {
  func.func @_attn_block_kernel(%arg0: i32, %arg1: memref<1x17x256xbf16, #tpu.memory_space<vmem>>, %arg2: memref<1x256xf32, #tpu.memory_space<vmem>>, %arg3: memref<1x256xf32, #tpu.memory_space<vmem>>, %arg4: memref<256x768xbf16, #tpu.memory_space<vmem>>, %arg5: memref<1x768xf32, #tpu.memory_space<vmem>>, %arg6: memref<256x256xbf16, #tpu.memory_space<vmem>>, %arg7: memref<1x256xf32, #tpu.memory_space<vmem>>, %arg8: memref<1x17x256xbf16, #tpu.memory_space<vmem>>) attributes {dimension_semantics = [#tpu.dimension_semantics<parallel>], iteration_bounds = array<i64: 2>, scalar_prefetch = 0 : i64, scratch_operands = 0 : i64, tpu.core_type = #tpu.core_type<tc>, window_params = [{transform_indices = @transform_0, window_bounds = array<i64: 1, 17, 256>}, {pipeline_mode = #tpu.pipeline_mode<synchronous>, transform_indices = @transform_1, window_bounds = array<i64: 1, 256>}, {pipeline_mode = #tpu.pipeline_mode<synchronous>, transform_indices = @transform_2, window_bounds = array<i64: 1, 256>}, {pipeline_mode = #tpu.pipeline_mode<synchronous>, transform_indices = @transform_3, window_bounds = array<i64: 256, 768>}, {pipeline_mode = #tpu.pipeline_mode<synchronous>, transform_indices = @transform_4, window_bounds = array<i64: 1, 768>}, {pipeline_mode = #tpu.pipeline_mode<synchronous>, transform_indices = @transform_5, window_bounds = array<i64: 256, 256>}, {pipeline_mode = #tpu.pipeline_mode<synchronous>, transform_indices = @transform_6, window_bounds = array<i64: 1, 256>}, {transform_indices = @transform_7, window_bounds = array<i64: 1, 17, 256>}]} {
    %c0 = arith.constant 0 : index
    %c0_0 = arith.constant 0 : index
    %c0_1 = arith.constant 0 : index
    %0 = vector.load %arg1[%c0, %c0_0, %c0_1] : memref<1x17x256xbf16, #tpu.memory_space<vmem>>, vector<1x17x256xbf16>
    %1 = vector.shape_cast %0 : vector<1x17x256xbf16> to vector<17x256xbf16>
    %2 = arith.extf %1 : vector<17x256xbf16> to vector<17x256xf32>
    %c0_2 = arith.constant 0 : index
    %c0_3 = arith.constant 0 : index
    %3 = vector.load %arg2[%c0_2, %c0_3] : memref<1x256xf32, #tpu.memory_space<vmem>>, vector<1x256xf32>
    %c0_4 = arith.constant 0 : index
    %c0_5 = arith.constant 0 : index
    %4 = vector.load %arg3[%c0_4, %c0_5] : memref<1x256xf32, #tpu.memory_space<vmem>>, vector<1x256xf32>
    %cst = arith.constant dense<0.000000e+00> : vector<17xf32>
    %5 = vector.multi_reduction <add>, %2, %cst [1] : vector<17x256xf32> to vector<17xf32>
    %6 = vector.shape_cast %5 : vector<17xf32> to vector<17x1xf32>
    %cst_6 = arith.constant 2.560000e+02 : f32
    %7 = vector.broadcast %cst_6 : f32 to vector<17x1xf32>
    %8 = arith.divf %6, %7 : vector<17x1xf32>
    %9 = vector.broadcast %8 : vector<17x1xf32> to vector<17x256xf32>
    %10 = arith.subf %2, %9 : vector<17x256xf32>
    %11 = arith.mulf %10, %10 : vector<17x256xf32>
    %cst_7 = arith.constant dense<0.000000e+00> : vector<17xf32>
    %12 = vector.multi_reduction <add>, %11, %cst_7 [1] : vector<17x256xf32> to vector<17xf32>
    %13 = vector.shape_cast %12 : vector<17xf32> to vector<17x1xf32>
    %cst_8 = arith.constant 2.560000e+02 : f32
    %14 = vector.broadcast %cst_8 : f32 to vector<17x1xf32>
    %15 = arith.divf %13, %14 : vector<17x1xf32>
    %cst_9 = arith.constant 9.99999997E-7 : f32
    %16 = vector.broadcast %cst_9 : f32 to vector<17x1xf32>
    %17 = arith.addf %15, %16 : vector<17x1xf32>
    %18 = math.rsqrt %17 : vector<17x1xf32>
    %19 = vector.broadcast %18 : vector<17x1xf32> to vector<17x256xf32>
    %20 = arith.mulf %10, %19 : vector<17x256xf32>
    %21 = vector.broadcast %3 : vector<1x256xf32> to vector<17x256xf32>
    %22 = arith.mulf %20, %21 : vector<17x256xf32>
    %23 = vector.broadcast %4 : vector<1x256xf32> to vector<17x256xf32>
    %24 = arith.addf %22, %23 : vector<17x256xf32>
    %25 = arith.truncf %24 : vector<17x256xf32> to vector<17x256xbf16>
    %c0_10 = arith.constant 0 : index
    %c0_11 = arith.constant 0 : index
    %26 = vector.load %arg4[%c0_10, %c0_11] : memref<256x768xbf16, #tpu.memory_space<vmem>>, vector<256x768xbf16>
    %cst_12 = arith.constant dense<0.000000e+00> : vector<17x768xf32>
    %27 = tpu.matmul %25, %26, %cst_12 {dimension_numbers = #tpu.dot_dimension_numbers<[1], [0], [0], [1], [0, 0, 1, 1], [], []>} : vector<17x256xbf16>, vector<256x768xbf16>, vector<17x768xf32> -> vector<17x768xf32>
    %c0_13 = arith.constant 0 : index
    %c0_14 = arith.constant 0 : index
    %28 = vector.load %arg5[%c0_13, %c0_14] : memref<1x768xf32, #tpu.memory_space<vmem>>, vector<1x768xf32>
    %29 = vector.broadcast %28 : vector<1x768xf32> to vector<17x768xf32>
    %30 = arith.addf %27, %29 : vector<17x768xf32>
    %cst_15 = arith.constant 0.000000e+00 : f32
    %31 = vector.broadcast %cst_15 : f32 to vector<17x256xf32>
    %32 = vector.extract_strided_slice %30 {offsets = [0, 0], sizes = [17, 128], strides = [1, 1]} : vector<17x768xf32> to vector<17x128xf32>
    %cst_16 = arith.constant 0.0883883461 : f32
    %33 = vector.broadcast %cst_16 : f32 to vector<17x128xf32>
    %34 = arith.mulf %32, %33 : vector<17x128xf32>
    %35 = arith.truncf %34 : vector<17x128xf32> to vector<17x128xbf16>
    %36 = vector.extract_strided_slice %30 {offsets = [0, 256], sizes = [17, 128], strides = [1, 1]} : vector<17x768xf32> to vector<17x128xf32>
    %37 = arith.truncf %36 : vector<17x128xf32> to vector<17x128xbf16>
    %38 = vector.extract_strided_slice %30 {offsets = [0, 512], sizes = [17, 128], strides = [1, 1]} : vector<17x768xf32> to vector<17x128xf32>
    %39 = arith.truncf %38 : vector<17x128xf32> to vector<17x128xbf16>
    %cst_17 = arith.constant dense<0.000000e+00> : vector<17x17xf32>
    %40 = tpu.matmul %35, %37, %cst_17 {dimension_numbers = #tpu.dot_dimension_numbers<[1], [1], [0], [0], [0, 0, 1, 0], [], []>} : vector<17x128xbf16>, vector<17x128xbf16>, vector<17x17xf32> -> vector<17x17xf32>
    %cst_18 = arith.constant dense<0xFF800000> : vector<17xf32>
    %41 = vector.multi_reduction <maximumf>, %40, %cst_18 [1] : vector<17x17xf32> to vector<17xf32>
    %42 = vector.shape_cast %41 : vector<17xf32> to vector<17x1xf32>
    %43 = vector.broadcast %42 : vector<17x1xf32> to vector<17x17xf32>
    %44 = arith.subf %40, %43 : vector<17x17xf32>
    %45 = math.exp %44 : vector<17x17xf32>
    %cst_19 = arith.constant dense<0.000000e+00> : vector<17xf32>
    %46 = vector.multi_reduction <add>, %45, %cst_19 [1] : vector<17x17xf32> to vector<17xf32>
    %47 = vector.shape_cast %46 : vector<17xf32> to vector<17x1xf32>
    %48 = tpu.reciprocal %47 {approx = true} : vector<17x1xf32> -> vector<17x1xf32>
    %49 = vector.broadcast %48 : vector<17x1xf32> to vector<17x17xf32>
    %50 = arith.mulf %45, %49 : vector<17x17xf32>
    %51 = arith.truncf %50 : vector<17x17xf32> to vector<17x17xbf16>
    %cst_20 = arith.constant dense<0.000000e+00> : vector<17x128xf32>
    %52 = tpu.matmul %51, %39, %cst_20 {dimension_numbers = #tpu.dot_dimension_numbers<[1], [0], [0], [1], [0, 0, 1, 1], [], []>} : vector<17x17xbf16>, vector<17x128xbf16>, vector<17x128xf32> -> vector<17x128xf32>
    %53 = arith.truncf %52 : vector<17x128xf32> to vector<17x128xbf16>
    %c0_21 = arith.constant 0 : index
    %c0_22 = arith.constant 0 : index
    %54 = vector.load %arg6[%c0_21, %c0_22] : memref<256x256xbf16, #tpu.memory_space<vmem>>, vector<128x256xbf16>
    %cst_23 = arith.constant dense<0.000000e+00> : vector<17x256xf32>
    %55 = tpu.matmul %53, %54, %cst_23 {dimension_numbers = #tpu.dot_dimension_numbers<[1], [0], [0], [1], [0, 0, 1, 1], [], []>} : vector<17x128xbf16>, vector<128x256xbf16>, vector<17x256xf32> -> vector<17x256xf32>
    %56 = arith.addf %31, %55 : vector<17x256xf32>
    %57 = vector.extract_strided_slice %30 {offsets = [0, 128], sizes = [17, 128], strides = [1, 1]} : vector<17x768xf32> to vector<17x128xf32>
    %cst_24 = arith.constant 0.0883883461 : f32
    %58 = vector.broadcast %cst_24 : f32 to vector<17x128xf32>
    %59 = arith.mulf %57, %58 : vector<17x128xf32>
    %60 = arith.truncf %59 : vector<17x128xf32> to vector<17x128xbf16>
    %61 = vector.extract_strided_slice %30 {offsets = [0, 384], sizes = [17, 128], strides = [1, 1]} : vector<17x768xf32> to vector<17x128xf32>
    %62 = arith.truncf %61 : vector<17x128xf32> to vector<17x128xbf16>
    %63 = vector.extract_strided_slice %30 {offsets = [0, 640], sizes = [17, 128], strides = [1, 1]} : vector<17x768xf32> to vector<17x128xf32>
    %64 = arith.truncf %63 : vector<17x128xf32> to vector<17x128xbf16>
    %cst_25 = arith.constant dense<0.000000e+00> : vector<17x17xf32>
    %65 = tpu.matmul %60, %62, %cst_25 {dimension_numbers = #tpu.dot_dimension_numbers<[1], [1], [0], [0], [0, 0, 1, 0], [], []>} : vector<17x128xbf16>, vector<17x128xbf16>, vector<17x17xf32> -> vector<17x17xf32>
    %cst_26 = arith.constant dense<0xFF800000> : vector<17xf32>
    %66 = vector.multi_reduction <maximumf>, %65, %cst_26 [1] : vector<17x17xf32> to vector<17xf32>
    %67 = vector.shape_cast %66 : vector<17xf32> to vector<17x1xf32>
    %68 = vector.broadcast %67 : vector<17x1xf32> to vector<17x17xf32>
    %69 = arith.subf %65, %68 : vector<17x17xf32>
    %70 = math.exp %69 : vector<17x17xf32>
    %cst_27 = arith.constant dense<0.000000e+00> : vector<17xf32>
    %71 = vector.multi_reduction <add>, %70, %cst_27 [1] : vector<17x17xf32> to vector<17xf32>
    %72 = vector.shape_cast %71 : vector<17xf32> to vector<17x1xf32>
    %73 = tpu.reciprocal %72 {approx = true} : vector<17x1xf32> -> vector<17x1xf32>
    %74 = vector.broadcast %73 : vector<17x1xf32> to vector<17x17xf32>
    %75 = arith.mulf %70, %74 : vector<17x17xf32>
    %76 = arith.truncf %75 : vector<17x17xf32> to vector<17x17xbf16>
    %cst_28 = arith.constant dense<0.000000e+00> : vector<17x128xf32>
    %77 = tpu.matmul %76, %64, %cst_28 {dimension_numbers = #tpu.dot_dimension_numbers<[1], [0], [0], [1], [0, 0, 1, 1], [], []>} : vector<17x17xbf16>, vector<17x128xbf16>, vector<17x128xf32> -> vector<17x128xf32>
    %78 = arith.truncf %77 : vector<17x128xf32> to vector<17x128xbf16>
    %c128 = arith.constant 128 : index
    %c0_29 = arith.constant 0 : index
    %79 = vector.load %arg6[%c128, %c0_29] : memref<256x256xbf16, #tpu.memory_space<vmem>>, vector<128x256xbf16>
    %cst_30 = arith.constant dense<0.000000e+00> : vector<17x256xf32>
    %80 = tpu.matmul %78, %79, %cst_30 {dimension_numbers = #tpu.dot_dimension_numbers<[1], [0], [0], [1], [0, 0, 1, 1], [], []>} : vector<17x128xbf16>, vector<128x256xbf16>, vector<17x256xf32> -> vector<17x256xf32>
    %81 = arith.addf %56, %80 : vector<17x256xf32>
    %c0_31 = arith.constant 0 : index
    %c0_32 = arith.constant 0 : index
    %82 = vector.load %arg7[%c0_31, %c0_32] : memref<1x256xf32, #tpu.memory_space<vmem>>, vector<1x256xf32>
    %83 = vector.broadcast %82 : vector<1x256xf32> to vector<17x256xf32>
    %84 = arith.addf %81, %83 : vector<17x256xf32>
    %85 = arith.addf %2, %84 : vector<17x256xf32>
    %86 = arith.truncf %85 : vector<17x256xf32> to vector<17x256xbf16>
    %c0_33 = arith.constant 0 : index
    %c0_34 = arith.constant 0 : index
    %c0_35 = arith.constant 0 : index
    %87 = vector.load %arg8[%c0_33, %c0_34, %c0_35] : memref<1x17x256xbf16, #tpu.memory_space<vmem>>, vector<1x17x256xbf16>
    %88 = vector.shape_cast %87 : vector<1x17x256xbf16> to vector<17x256xbf16>
    %89 = vector.shape_cast %86 : vector<17x256xbf16> to vector<1x17x256xbf16>
    tpu.vector_store %arg8[%c0_33, %c0_34, %c0_35], %89 {strides = array<i32>} : memref<1x17x256xbf16, #tpu.memory_space<vmem>>, vector<1x17x256xbf16>,
    return
  }
  func.func @transform_0(%arg0: i32) -> (i32, i32, i32) {
    %c0_i32 = arith.constant 0 : i32
    %c0_i32_0 = arith.constant 0 : i32
    %c0_i32_1 = arith.constant 0 : i32
    return %arg0, %c0_i32, %c0_i32_0 : i32, i32, i32
  }
  func.func @transform_1(%arg0: i32) -> (i32, i32) {
    %c0_i32 = arith.constant 0 : i32
    %c0_i32_0 = arith.constant 0 : i32
    %c0_i32_1 = arith.constant 0 : i32
    return %c0_i32, %c0_i32_0 : i32, i32
  }
  func.func @transform_2(%arg0: i32) -> (i32, i32) {
    %c0_i32 = arith.constant 0 : i32
    %c0_i32_0 = arith.constant 0 : i32
    %c0_i32_1 = arith.constant 0 : i32
    return %c0_i32, %c0_i32_0 : i32, i32
  }
  func.func @transform_3(%arg0: i32) -> (i32, i32) {
    %c0_i32 = arith.constant 0 : i32
    %c0_i32_0 = arith.constant 0 : i32
    %c0_i32_1 = arith.constant 0 : i32
    return %c0_i32, %c0_i32_0 : i32, i32
  }
  func.func @transform_4(%arg0: i32) -> (i32, i32) {
    %c0_i32 = arith.constant 0 : i32
    %c0_i32_0 = arith.constant 0 : i32
    %c0_i32_1 = arith.constant 0 : i32
    return %c0_i32, %c0_i32_0 : i32, i32
  }
  func.func @transform_5(%arg0: i32) -> (i32, i32) {
    %c0_i32 = arith.constant 0 : i32
    %c0_i32_0 = arith.constant 0 : i32
    %c0_i32_1 = arith.constant 0 : i32
    return %c0_i32, %c0_i32_0 : i32, i32
  }
  func.func @transform_6(%arg0: i32) -> (i32, i32) {
    %c0_i32 = arith.constant 0 : i32
    %c0_i32_0 = arith.constant 0 : i32
    %c0_i32_1 = arith.constant 0 : i32
    return %c0_i32, %c0_i32_0 : i32, i32
  }
  func.func @transform_7(%arg0: i32) -> (i32, i32, i32) {
    %c0_i32 = arith.constant 0 : i32
    %c0_i32_0 = arith.constant 0 : i32
    %c0_i32_1 = arith.constant 0 : i32
    return %arg0, %c0_i32, %c0_i32_0 : i32, i32, i32
  }
}

module attributes {stable_mosaic.version = 11 : i64} {
  func.func @_mlp_block_kernel(%arg0: i32, %arg1: memref<1x17x256xbf16, #tpu.memory_space<vmem>>, %arg2: memref<1x256xf32, #tpu.memory_space<vmem>>, %arg3: memref<1x256xf32, #tpu.memory_space<vmem>>, %arg4: memref<256x512xbf16, #tpu.memory_space<vmem>>, %arg5: memref<1x512xf32, #tpu.memory_space<vmem>>, %arg6: memref<512x256xbf16, #tpu.memory_space<vmem>>, %arg7: memref<1x256xf32, #tpu.memory_space<vmem>>, %arg8: memref<1x17x256xbf16, #tpu.memory_space<vmem>>) attributes {dimension_semantics = [#tpu.dimension_semantics<parallel>], iteration_bounds = array<i64: 2>, scalar_prefetch = 0 : i64, scratch_operands = 0 : i64, tpu.core_type = #tpu.core_type<tc>, window_params = [{transform_indices = @transform_0, window_bounds = array<i64: 1, 17, 256>}, {pipeline_mode = #tpu.pipeline_mode<synchronous>, transform_indices = @transform_1, window_bounds = array<i64: 1, 256>}, {pipeline_mode = #tpu.pipeline_mode<synchronous>, transform_indices = @transform_2, window_bounds = array<i64: 1, 256>}, {pipeline_mode = #tpu.pipeline_mode<synchronous>, transform_indices = @transform_3, window_bounds = array<i64: 256, 512>}, {pipeline_mode = #tpu.pipeline_mode<synchronous>, transform_indices = @transform_4, window_bounds = array<i64: 1, 512>}, {pipeline_mode = #tpu.pipeline_mode<synchronous>, transform_indices = @transform_5, window_bounds = array<i64: 512, 256>}, {pipeline_mode = #tpu.pipeline_mode<synchronous>, transform_indices = @transform_6, window_bounds = array<i64: 1, 256>}, {transform_indices = @transform_7, window_bounds = array<i64: 1, 17, 256>}]} {
    %c0 = arith.constant 0 : index
    %c0_0 = arith.constant 0 : index
    %c0_1 = arith.constant 0 : index
    %0 = vector.load %arg1[%c0, %c0_0, %c0_1] : memref<1x17x256xbf16, #tpu.memory_space<vmem>>, vector<1x17x256xbf16>
    %1 = vector.shape_cast %0 : vector<1x17x256xbf16> to vector<17x256xbf16>
    %2 = arith.extf %1 : vector<17x256xbf16> to vector<17x256xf32>
    %c0_2 = arith.constant 0 : index
    %c0_3 = arith.constant 0 : index
    %3 = vector.load %arg2[%c0_2, %c0_3] : memref<1x256xf32, #tpu.memory_space<vmem>>, vector<1x256xf32>
    %c0_4 = arith.constant 0 : index
    %c0_5 = arith.constant 0 : index
    %4 = vector.load %arg3[%c0_4, %c0_5] : memref<1x256xf32, #tpu.memory_space<vmem>>, vector<1x256xf32>
    %cst = arith.constant dense<0.000000e+00> : vector<17xf32>
    %5 = vector.multi_reduction <add>, %2, %cst [1] : vector<17x256xf32> to vector<17xf32>
    %6 = vector.shape_cast %5 : vector<17xf32> to vector<17x1xf32>
    %cst_6 = arith.constant 2.560000e+02 : f32
    %7 = vector.broadcast %cst_6 : f32 to vector<17x1xf32>
    %8 = arith.divf %6, %7 : vector<17x1xf32>
    %9 = vector.broadcast %8 : vector<17x1xf32> to vector<17x256xf32>
    %10 = arith.subf %2, %9 : vector<17x256xf32>
    %11 = arith.mulf %10, %10 : vector<17x256xf32>
    %cst_7 = arith.constant dense<0.000000e+00> : vector<17xf32>
    %12 = vector.multi_reduction <add>, %11, %cst_7 [1] : vector<17x256xf32> to vector<17xf32>
    %13 = vector.shape_cast %12 : vector<17xf32> to vector<17x1xf32>
    %cst_8 = arith.constant 2.560000e+02 : f32
    %14 = vector.broadcast %cst_8 : f32 to vector<17x1xf32>
    %15 = arith.divf %13, %14 : vector<17x1xf32>
    %cst_9 = arith.constant 9.99999997E-7 : f32
    %16 = vector.broadcast %cst_9 : f32 to vector<17x1xf32>
    %17 = arith.addf %15, %16 : vector<17x1xf32>
    %18 = math.rsqrt %17 : vector<17x1xf32>
    %19 = vector.broadcast %18 : vector<17x1xf32> to vector<17x256xf32>
    %20 = arith.mulf %10, %19 : vector<17x256xf32>
    %21 = vector.broadcast %3 : vector<1x256xf32> to vector<17x256xf32>
    %22 = arith.mulf %20, %21 : vector<17x256xf32>
    %23 = vector.broadcast %4 : vector<1x256xf32> to vector<17x256xf32>
    %24 = arith.addf %22, %23 : vector<17x256xf32>
    %25 = arith.truncf %24 : vector<17x256xf32> to vector<17x256xbf16>
    %c0_10 = arith.constant 0 : index
    %c0_11 = arith.constant 0 : index
    %26 = vector.load %arg4[%c0_10, %c0_11] : memref<256x512xbf16, #tpu.memory_space<vmem>>, vector<256x512xbf16>
    %cst_12 = arith.constant dense<0.000000e+00> : vector<17x512xf32>
    %27 = tpu.matmul %25, %26, %cst_12 {dimension_numbers = #tpu.dot_dimension_numbers<[1], [0], [0], [1], [0, 0, 1, 1], [], []>} : vector<17x256xbf16>, vector<256x512xbf16>, vector<17x512xf32> -> vector<17x512xf32>
    %c0_13 = arith.constant 0 : index
    %c0_14 = arith.constant 0 : index
    %28 = vector.load %arg5[%c0_13, %c0_14] : memref<1x512xf32, #tpu.memory_space<vmem>>, vector<1x512xf32>
    %29 = vector.broadcast %28 : vector<1x512xf32> to vector<17x512xf32>
    %30 = arith.addf %27, %29 : vector<17x512xf32>
    %31 = arith.mulf %30, %30 : vector<17x512xf32>
    %32 = arith.mulf %30, %31 : vector<17x512xf32>
    %cst_15 = arith.constant 4.471500e-02 : f32
    %33 = vector.broadcast %cst_15 : f32 to vector<17x512xf32>
    %34 = arith.mulf %33, %32 : vector<17x512xf32>
    %35 = arith.addf %30, %34 : vector<17x512xf32>
    %cst_16 = arith.constant 0.797884583 : f32
    %36 = vector.broadcast %cst_16 : f32 to vector<17x512xf32>
    %37 = arith.mulf %36, %35 : vector<17x512xf32>
    %38 = math.tanh %37 : vector<17x512xf32>
    %cst_17 = arith.constant 1.000000e+00 : f32
    %39 = vector.broadcast %cst_17 : f32 to vector<17x512xf32>
    %40 = arith.addf %39, %38 : vector<17x512xf32>
    %cst_18 = arith.constant 5.000000e-01 : f32
    %41 = vector.broadcast %cst_18 : f32 to vector<17x512xf32>
    %42 = arith.mulf %41, %40 : vector<17x512xf32>
    %43 = arith.mulf %30, %42 : vector<17x512xf32>
    %44 = arith.truncf %43 : vector<17x512xf32> to vector<17x512xbf16>
    %c0_19 = arith.constant 0 : index
    %c0_20 = arith.constant 0 : index
    %45 = vector.load %arg6[%c0_19, %c0_20] : memref<512x256xbf16, #tpu.memory_space<vmem>>, vector<512x256xbf16>
    %cst_21 = arith.constant dense<0.000000e+00> : vector<17x256xf32>
    %46 = tpu.matmul %44, %45, %cst_21 {dimension_numbers = #tpu.dot_dimension_numbers<[1], [0], [0], [1], [0, 0, 1, 1], [], []>} : vector<17x512xbf16>, vector<512x256xbf16>, vector<17x256xf32> -> vector<17x256xf32>
    %c0_22 = arith.constant 0 : index
    %c0_23 = arith.constant 0 : index
    %47 = vector.load %arg7[%c0_22, %c0_23] : memref<1x256xf32, #tpu.memory_space<vmem>>, vector<1x256xf32>
    %48 = vector.broadcast %47 : vector<1x256xf32> to vector<17x256xf32>
    %49 = arith.addf %46, %48 : vector<17x256xf32>
    %50 = arith.addf %2, %49 : vector<17x256xf32>
    %51 = arith.truncf %50 : vector<17x256xf32> to vector<17x256xbf16>
    %c0_24 = arith.constant 0 : index
    %c0_25 = arith.constant 0 : index
    %c0_26 = arith.constant 0 : index
    %52 = vector.load %arg8[%c0_24, %c0_25, %c0_26] : memref<1x17x256xbf16, #tpu.memory_space<vmem>>, vector<1x17x256xbf16>
    %53 = vector.shape_cast %52 : vector<1x17x256xbf16> to vector<17x256xbf16>
    %54 = vector.shape_cast %51 : vector<17x256xbf16> to vector<1x17x256xbf16>
    tpu.vector_store %arg8[%c0_24, %c0_25, %c0_26], %54 {strides = array<i32>} : memref<1x17x256xbf16, #tpu.memory_space<vmem>>, vector<1x17x256xbf16>,
    return
  }
  func.func @transform_0(%arg0: i32) -> (i32, i32, i32) {
    %c0_i32 = arith.constant 0 : i32
    %c0_i32_0 = arith.constant 0 : i32
    %c0_i32_1 = arith.constant 0 : i32
    return %arg0, %c0_i32, %c0_i32_0 : i32, i32, i32
  }
  func.func @transform_1(%arg0: i32) -> (i32, i32) {
    %c0_i32 = arith.constant 0 : i32
    %c0_i32_0 = arith.constant 0 : i32
    %c0_i32_1 = arith.constant 0 : i32
    return %c0_i32, %c0_i32_0 : i32, i32
  }
  func.func @transform_2(%arg0: i32) -> (i32, i32) {
    %c0_i32 = arith.constant 0 : i32
    %c0_i32_0 = arith.constant 0 : i32
    %c0_i32_1 = arith.constant 0 : i32
    return %c0_i32, %c0_i32_0 : i32, i32
  }
  func.func @transform_3(%arg0: i32) -> (i32, i32) {
    %c0_i32 = arith.constant 0 : i32
    %c0_i32_0 = arith.constant 0 : i32
    %c0_i32_1 = arith.constant 0 : i32
    return %c0_i32, %c0_i32_0 : i32, i32
  }
  func.func @transform_4(%arg0: i32) -> (i32, i32) {
    %c0_i32 = arith.constant 0 : i32
    %c0_i32_0 = arith.constant 0 : i32
    %c0_i32_1 = arith.constant 0 : i32
    return %c0_i32, %c0_i32_0 : i32, i32
  }
  func.func @transform_5(%arg0: i32) -> (i32, i32) {
    %c0_i32 = arith.constant 0 : i32
    %c0_i32_0 = arith.constant 0 : i32
    %c0_i32_1 = arith.constant 0 : i32
    return %c0_i32, %c0_i32_0 : i32, i32
  }
  func.func @transform_6(%arg0: i32) -> (i32, i32) {
    %c0_i32 = arith.constant 0 : i32
    %c0_i32_0 = arith.constant 0 : i32
    %c0_i32_1 = arith.constant 0 : i32
    return %c0_i32, %c0_i32_0 : i32, i32
  }
  func.func @transform_7(%arg0: i32) -> (i32, i32, i32) {
    %c0_i32 = arith.constant 0 : i32
    %c0_i32_0 = arith.constant 0 : i32
    %c0_i32_1 = arith.constant 0 : i32
    return %arg0, %c0_i32, %c0_i32_0 : i32, i32, i32
  }
}

module attributes {stable_mosaic.version = 11 : i64} {
  func.func @_matmul_bias_kernel(%arg0: i32, %arg1: i32, %arg2: i32, %arg3: memref<16x192xbf16, #tpu.memory_space<vmem>>, %arg4: memref<192x256xbf16, #tpu.memory_space<vmem>>, %arg5: memref<1x256xf32, #tpu.memory_space<vmem>>, %arg6: memref<16x256xbf16, #tpu.memory_space<vmem>>, %arg7: memref<16x256xf32, #tpu.memory_space<vmem>>) attributes {dimension_semantics = [#tpu.dimension_semantics<parallel>, #tpu.dimension_semantics<parallel>, #tpu.dimension_semantics<arbitrary>], iteration_bounds = array<i64: 2, 1, 1>, scalar_prefetch = 0 : i64, scratch_operands = 1 : i64, tpu.core_type = #tpu.core_type<tc>, window_params = [{transform_indices = @transform_0, window_bounds = array<i64: 16, 192>}, {transform_indices = @transform_1, window_bounds = array<i64: 192, 256>}, {transform_indices = @transform_2, window_bounds = array<i64: 1, 256>}, {transform_indices = @transform_3, window_bounds = array<i64: 16, 256>}]} {
    %c0_i32 = arith.constant 0 : i32
    %0 = arith.cmpi eq, %arg2, %c0_i32 : i32
    %1 = arith.extui %0 : i1 to i32
    %c0_i32_0 = arith.constant 0 : i32
    %2 = arith.cmpi ne, %1, %c0_i32_0 : i32
    scf.if %2 {
      %cst_10 = arith.constant 0.000000e+00 : f32
      %12 = vector.broadcast %cst_10 : f32 to vector<16x256xf32>
      %c0_11 = arith.constant 0 : index
      %c0_12 = arith.constant 0 : index
      %13 = vector.load %arg7[%c0_11, %c0_12] : memref<16x256xf32, #tpu.memory_space<vmem>>, vector<16x256xf32>
      tpu.vector_store %arg7[%c0_11, %c0_12], %12 {strides = array<i32>} : memref<16x256xf32, #tpu.memory_space<vmem>>, vector<16x256xf32>,
    } else {
    }
    %c0 = arith.constant 0 : index
    %c0_1 = arith.constant 0 : index
    %3 = vector.load %arg7[%c0, %c0_1] : memref<16x256xf32, #tpu.memory_space<vmem>>, vector<16x256xf32>
    %c0_2 = arith.constant 0 : index
    %c0_3 = arith.constant 0 : index
    %4 = vector.load %arg3[%c0_2, %c0_3] : memref<16x192xbf16, #tpu.memory_space<vmem>>, vector<16x192xbf16>
    %c0_4 = arith.constant 0 : index
    %c0_5 = arith.constant 0 : index
    %5 = vector.load %arg4[%c0_4, %c0_5] : memref<192x256xbf16, #tpu.memory_space<vmem>>, vector<192x256xbf16>
    %cst = arith.constant dense<0.000000e+00> : vector<16x256xf32>
    %6 = tpu.matmul %4, %5, %cst {dimension_numbers = #tpu.dot_dimension_numbers<[1], [0], [0], [1], [0, 0, 1, 1], [], []>} : vector<16x192xbf16>, vector<192x256xbf16>, vector<16x256xf32> -> vector<16x256xf32>
    %7 = arith.addf %3, %6 : vector<16x256xf32>
    %c0_6 = arith.constant 0 : index
    %c0_7 = arith.constant 0 : index
    %8 = vector.load %arg7[%c0_6, %c0_7] : memref<16x256xf32, #tpu.memory_space<vmem>>, vector<16x256xf32>
    tpu.vector_store %arg7[%c0_6, %c0_7], %7 {strides = array<i32>} : memref<16x256xf32, #tpu.memory_space<vmem>>, vector<16x256xf32>,
    %c0_i32_8 = arith.constant 0 : i32
    %9 = arith.cmpi eq, %arg2, %c0_i32_8 : i32
    %10 = arith.extui %9 : i1 to i32
    %c0_i32_9 = arith.constant 0 : i32
    %11 = arith.cmpi ne, %10, %c0_i32_9 : i32
    scf.if %11 {
      %c0_10 = arith.constant 0 : index
      %c0_11 = arith.constant 0 : index
      %12 = vector.load %arg7[%c0_10, %c0_11] : memref<16x256xf32, #tpu.memory_space<vmem>>, vector<16x256xf32>
      %c0_12 = arith.constant 0 : index
      %c0_13 = arith.constant 0 : index
      %13 = vector.load %arg5[%c0_12, %c0_13] : memref<1x256xf32, #tpu.memory_space<vmem>>, vector<1x256xf32>
      %14 = vector.broadcast %13 : vector<1x256xf32> to vector<16x256xf32>
      %15 = arith.addf %12, %14 : vector<16x256xf32>
      %16 = arith.truncf %15 : vector<16x256xf32> to vector<16x256xbf16>
      %c0_14 = arith.constant 0 : index
      %c0_15 = arith.constant 0 : index
      %17 = vector.load %arg6[%c0_14, %c0_15] : memref<16x256xbf16, #tpu.memory_space<vmem>>, vector<16x256xbf16>
      tpu.vector_store %arg6[%c0_14, %c0_15], %16 {strides = array<i32>} : memref<16x256xbf16, #tpu.memory_space<vmem>>, vector<16x256xbf16>,
    } else {
    }
    return
  }
  func.func @transform_0(%arg0: i32, %arg1: i32, %arg2: i32) -> (i32, i32) {
    %c0_i32 = arith.constant 0 : i32
    return %arg0, %arg2 : i32, i32
  }
  func.func @transform_1(%arg0: i32, %arg1: i32, %arg2: i32) -> (i32, i32) {
    %c0_i32 = arith.constant 0 : i32
    return %arg2, %arg1 : i32, i32
  }
  func.func @transform_2(%arg0: i32, %arg1: i32, %arg2: i32) -> (i32, i32) {
    %c0_i32 = arith.constant 0 : i32
    %c0_i32_0 = arith.constant 0 : i32
    return %c0_i32, %arg1 : i32, i32
  }
  func.func @transform_3(%arg0: i32, %arg1: i32, %arg2: i32) -> (i32, i32) {
    %c0_i32 = arith.constant 0 : i32
    return %arg0, %arg1 : i32, i32
  }
}

module attributes {stable_mosaic.version = 11 : i64} {
  func.func @_pool_head_kernel(%arg0: i32, %arg1: memref<1x17x256xbf16, #tpu.memory_space<vmem>>, %arg2: memref<1x256xf32, #tpu.memory_space<vmem>>, %arg3: memref<1x256xf32, #tpu.memory_space<vmem>>, %arg4: memref<256x128xbf16, #tpu.memory_space<vmem>>, %arg5: memref<1x128xf32, #tpu.memory_space<vmem>>, %arg6: memref<1x1x128xf32, #tpu.memory_space<vmem>>) attributes {dimension_semantics = [#tpu.dimension_semantics<parallel>], iteration_bounds = array<i64: 2>, scalar_prefetch = 0 : i64, scratch_operands = 0 : i64, tpu.core_type = #tpu.core_type<tc>, window_params = [{transform_indices = @transform_0, window_bounds = array<i64: 1, 17, 256>}, {pipeline_mode = #tpu.pipeline_mode<synchronous>, transform_indices = @transform_1, window_bounds = array<i64: 1, 256>}, {pipeline_mode = #tpu.pipeline_mode<synchronous>, transform_indices = @transform_2, window_bounds = array<i64: 1, 256>}, {pipeline_mode = #tpu.pipeline_mode<synchronous>, transform_indices = @transform_3, window_bounds = array<i64: 256, 128>}, {pipeline_mode = #tpu.pipeline_mode<synchronous>, transform_indices = @transform_4, window_bounds = array<i64: 1, 128>}, {transform_indices = @transform_5, window_bounds = array<i64: 1, 1, 128>}]} {
    %c0 = arith.constant 0 : index
    %c0_0 = arith.constant 0 : index
    %c0_1 = arith.constant 0 : index
    %0 = vector.load %arg1[%c0, %c0_0, %c0_1] : memref<1x17x256xbf16, #tpu.memory_space<vmem>>, vector<1x17x256xbf16>
    %1 = vector.shape_cast %0 : vector<1x17x256xbf16> to vector<17x256xbf16>
    %2 = arith.extf %1 : vector<17x256xbf16> to vector<17x256xf32>
    %c0_2 = arith.constant 0 : index
    %c0_3 = arith.constant 0 : index
    %3 = vector.load %arg2[%c0_2, %c0_3] : memref<1x256xf32, #tpu.memory_space<vmem>>, vector<1x256xf32>
    %c0_4 = arith.constant 0 : index
    %c0_5 = arith.constant 0 : index
    %4 = vector.load %arg3[%c0_4, %c0_5] : memref<1x256xf32, #tpu.memory_space<vmem>>, vector<1x256xf32>
    %cst = arith.constant dense<0.000000e+00> : vector<17xf32>
    %5 = vector.multi_reduction <add>, %2, %cst [1] : vector<17x256xf32> to vector<17xf32>
    %6 = vector.shape_cast %5 : vector<17xf32> to vector<17x1xf32>
    %cst_6 = arith.constant 2.560000e+02 : f32
    %7 = vector.broadcast %cst_6 : f32 to vector<17x1xf32>
    %8 = arith.divf %6, %7 : vector<17x1xf32>
    %9 = vector.broadcast %8 : vector<17x1xf32> to vector<17x256xf32>
    %10 = arith.subf %2, %9 : vector<17x256xf32>
    %11 = arith.mulf %10, %10 : vector<17x256xf32>
    %cst_7 = arith.constant dense<0.000000e+00> : vector<17xf32>
    %12 = vector.multi_reduction <add>, %11, %cst_7 [1] : vector<17x256xf32> to vector<17xf32>
    %13 = vector.shape_cast %12 : vector<17xf32> to vector<17x1xf32>
    %cst_8 = arith.constant 2.560000e+02 : f32
    %14 = vector.broadcast %cst_8 : f32 to vector<17x1xf32>
    %15 = arith.divf %13, %14 : vector<17x1xf32>
    %cst_9 = arith.constant 9.99999997E-7 : f32
    %16 = vector.broadcast %cst_9 : f32 to vector<17x1xf32>
    %17 = arith.addf %15, %16 : vector<17x1xf32>
    %18 = math.rsqrt %17 : vector<17x1xf32>
    %19 = vector.broadcast %18 : vector<17x1xf32> to vector<17x256xf32>
    %20 = arith.mulf %10, %19 : vector<17x256xf32>
    %21 = vector.broadcast %3 : vector<1x256xf32> to vector<17x256xf32>
    %22 = arith.mulf %20, %21 : vector<17x256xf32>
    %23 = vector.broadcast %4 : vector<1x256xf32> to vector<17x256xf32>
    %24 = arith.addf %22, %23 : vector<17x256xf32>
    %cst_10 = arith.constant dense<0.000000e+00> : vector<256xf32>
    %25 = vector.multi_reduction <add>, %24, %cst_10 [0] : vector<17x256xf32> to vector<256xf32>
    %26 = vector.shape_cast %25 : vector<256xf32> to vector<1x256xf32>
    %cst_11 = arith.constant 0.0588235296 : f32
    %27 = vector.broadcast %cst_11 : f32 to vector<1x256xf32>
    %28 = arith.mulf %26, %27 : vector<1x256xf32>
    %29 = arith.truncf %28 : vector<1x256xf32> to vector<1x256xbf16>
    %c0_12 = arith.constant 0 : index
    %c0_13 = arith.constant 0 : index
    %30 = vector.load %arg4[%c0_12, %c0_13] : memref<256x128xbf16, #tpu.memory_space<vmem>>, vector<256x128xbf16>
    %cst_14 = arith.constant dense<0.000000e+00> : vector<1x128xf32>
    %31 = tpu.matmul %29, %30, %cst_14 {dimension_numbers = #tpu.dot_dimension_numbers<[1], [0], [0], [1], [0, 0, 1, 1], [], []>} : vector<1x256xbf16>, vector<256x128xbf16>, vector<1x128xf32> -> vector<1x128xf32>
    %c0_15 = arith.constant 0 : index
    %c0_16 = arith.constant 0 : index
    %32 = vector.load %arg5[%c0_15, %c0_16] : memref<1x128xf32, #tpu.memory_space<vmem>>, vector<1x128xf32>
    %33 = arith.addf %31, %32 : vector<1x128xf32>
    %c0_17 = arith.constant 0 : index
    %c0_18 = arith.constant 0 : index
    %c0_19 = arith.constant 0 : index
    %34 = vector.load %arg6[%c0_17, %c0_18, %c0_19] : memref<1x1x128xf32, #tpu.memory_space<vmem>>, vector<1x1x128xf32>
    %35 = vector.shape_cast %34 : vector<1x1x128xf32> to vector<1x128xf32>
    %36 = vector.shape_cast %33 : vector<1x128xf32> to vector<1x1x128xf32>
    tpu.vector_store %arg6[%c0_17, %c0_18, %c0_19], %36 {strides = array<i32>} : memref<1x1x128xf32, #tpu.memory_space<vmem>>, vector<1x1x128xf32>,
    return
  }
  func.func @transform_0(%arg0: i32) -> (i32, i32, i32) {
    %c0_i32 = arith.constant 0 : i32
    %c0_i32_0 = arith.constant 0 : i32
    %c0_i32_1 = arith.constant 0 : i32
    return %arg0, %c0_i32, %c0_i32_0 : i32, i32, i32
  }
  func.func @transform_1(%arg0: i32) -> (i32, i32) {
    %c0_i32 = arith.constant 0 : i32
    %c0_i32_0 = arith.constant 0 : i32
    %c0_i32_1 = arith.constant 0 : i32
    return %c0_i32, %c0_i32_0 : i32, i32
  }
  func.func @transform_2(%arg0: i32) -> (i32, i32) {
    %c0_i32 = arith.constant 0 : i32
    %c0_i32_0 = arith.constant 0 : i32
    %c0_i32_1 = arith.constant 0 : i32
    return %c0_i32, %c0_i32_0 : i32, i32
  }
  func.func @transform_3(%arg0: i32) -> (i32, i32) {
    %c0_i32 = arith.constant 0 : i32
    %c0_i32_0 = arith.constant 0 : i32
    %c0_i32_1 = arith.constant 0 : i32
    return %c0_i32, %c0_i32_0 : i32, i32
  }
  func.func @transform_4(%arg0: i32) -> (i32, i32) {
    %c0_i32 = arith.constant 0 : i32
    %c0_i32_0 = arith.constant 0 : i32
    %c0_i32_1 = arith.constant 0 : i32
    return %c0_i32, %c0_i32_0 : i32, i32
  }
  func.func @transform_5(%arg0: i32) -> (i32, i32, i32) {
    %c0_i32 = arith.constant 0 : i32
    %c0_i32_0 = arith.constant 0 : i32
    %c0_i32_1 = arith.constant 0 : i32
    return %arg0, %c0_i32, %c0_i32_0 : i32, i32, i32
  }
}

</mosaic_0001>

<llo_original>
// kernel: dino_classifier_forward.6
$region0: #{dino_classifier_forward.6}
  #allocation0 [shape = 'u32[]', space=smem, size = 0x4, offset = 0x4, fixed_abs, tag = 'smem constant byte address 0x4 - core index']
  #allocation1 [shape = 'u32[144,128]{1,0:T(1,128)}', space=vmem, size = 0x12000, scoped, tag = 'internal scratch']
  #allocation2 [shape = 'f32[16,256]{1,0:T(8,128)}', space=vmem, size = 0x4000, scoped, tag = 'scratch operand']
  %s0 = inlined_call_operand.vmem [shape: bf16[32,192], index: 0, kind: input, shape index: {}]
  %s1 = inlined_call_operand.vmem [shape: bf16[192,256], index: 1, kind: input, shape index: {}]
  %s2 = inlined_call_operand.vmem [shape: f32[1,256], index: 2, kind: input, shape index: {}]
  %s3 = inlined_call_operand.vmem [shape: bf16[32,256], index: 3, kind: output, shape index: {}]
  %s4 = sld [smem:[#allocation0]]
  $region53: #{dino_classifier_forward.6} parent=0
    _
  %s6 = ssub.s32 1, %s4
  %s7 = scalar_select 0, %s6, %s4
  loop: start=0, step=1, limit=4
  $region2: #{dino_classifier_forward.6} parent=0 // loop_pre_header
    _
  $region3: #{dino_classifier_forward.6} parent=0 // loop_header
    %s9 = sphi 0, %s13
    %p10 = scmp.ge.s32.totalorder %s9, 4
    %s16 = sphi 0, %s35
    %s17 = sphi 0, %s31
    %s18 = sphi 0, %s27
    %s19 = sphi 0, %s16
    %s20 = sphi 0, %s17
    %s21 = sphi 0, %s18
    %s22 = sphi 0, %s19
    %s23 = sphi 0, %s20
    %s24 = sphi 0, %s21
    %s40 = sphi 0, %s42
    %s43 = sphi 0, %s40
    %s44 = sphi 0, %s43
    %s60 = sphi 0, %s44
    %s68 = sphi 0, %s70
    %s71 = sphi 0, %s68
    %s72 = sphi 0, %s71
    %s88 = sphi 0, %s72
    %s94 = sphi 0, %s96
    %s97 = sphi 0, %s94
    %s98 = sphi 0, %s97
    %s114 = sphi 0, %s98
    %s122 = sphi 0, %s124
    %s125 = sphi 0, %s122
    %s126 = sphi 0, %s125
    %s142 = sphi 0, %s126
  $region4: #{dino_classifier_forward.6} parent=0 // loop_header_branch
    %12 = sbr.rel (%p10) target = $region8
  $region5: #{dino_classifier_forward.6} parent=0 // loop_body
    %s14 = ssub.s32 %s9, 1
    %s15 = ssub.s32 %s9, 2
    %s25 = sadd.s32 1, %s18
    %p26 = scmp.ge.s32.totalorder %s25, 1
    %s27 = scalar_select %p26, 0, %s25
    %s28 = sadd.s32 1, %s17
    %s29 = scalar_select %p26, %s28, %s17
    %p30 = scmp.ge.s32.totalorder %s29, 1
    %s31 = scalar_select %p30, 0, %s29
    %s32 = sadd.s32 1, %s16
    %s33 = scalar_select %p30, %s32, %s16
    %p34 = scmp.ge.s32.totalorder %s33, 2
    %s35 = scalar_select %p34, 0, %s33
    %s36 = ssub.s32 %s16, %s35
    %s37 = ssub.s32 %s18, %s27
    %s38 = sor.u32 %s36, %s37
    %p39 = scmp.eq.s32.totalorder %s38, 0
    %s41 = sadd.s32 %s40, 1
    %s42 = scalar_select %p39, %s40, %s41
    %p45 = pneg %p39
    %p46 = scmp.eq.s32.totalorder %s9, 1
    %p47 = por %p45, %p46
    %p48 = scmp.ne.s32.totalorder %s40, %s43
    %p49 = scmp.eq.s32.totalorder %s9, 0
    %p50 = por %p48, %p49
    %p51 = scmp.ne.s32.totalorder %s40, %s43
    %p52 = scmp.eq.s32.totalorder %s14, 1
    %p53 = por %p51, %p52
    %p54 = scmp.ne.s32.totalorder %s43, %s44
    %p55 = scmp.eq.s32.totalorder %s14, 0
    %p56 = por %p54, %p55
    %p57 = scmp.ne.s32.totalorder %s43, %s44
    %p58 = scmp.eq.s32.totalorder %s15, 1
    %p59 = por %p57, %p58
    %p61 = scmp.ne.s32.totalorder %s44, %s60
    %p62 = scmp.eq.s32.totalorder %s15, 0
    %p63 = por %p61, %p62
    %s64 = ssub.s32 %s18, %s27
    %s65 = ssub.s32 %s17, %s31
    %s66 = sor.u32 %s64, %s65
    %p67 = scmp.eq.s32.totalorder %s66, 0
    %s69 = sadd.s32 %s68, 1
    %s70 = scalar_select %p67, %s68, %s69
    %p73 = pneg %p67
    %p74 = scmp.eq.s32.totalorder %s9, 1
    %p75 = por %p73, %p74
    %p76 = scmp.ne.s32.totalorder %s68, %s71
    %p77 = scmp.eq.s32.totalorder %s9, 0
    %p78 = por %p76, %p77
    %p79 = scmp.ne.s32.totalorder %s68, %s71
    %p80 = scmp.eq.s32.totalorder %s14, 1
    %p81 = por %p79, %p80
    %p82 = scmp.ne.s32.totalorder %s71, %s72
    %p83 = scmp.eq.s32.totalorder %s14, 0
    %p84 = por %p82, %p83
    %p85 = scmp.ne.s32.totalorder %s71, %s72
    %p86 = scmp.eq.s32.totalorder %s15, 1
    %p87 = por %p85, %p86
    %p89 = scmp.ne.s32.totalorder %s72, %s88
    %p90 = scmp.eq.s32.totalorder %s15, 0
    %p91 = por %p89, %p90
    %s92 = ssub.s32 %s17, %s31
    %p93 = scmp.eq.s32.totalorder %s92, 0
    %s95 = sadd.s32 %s94, 1
    %s96 = scalar_select %p93, %s94, %s95
    %p99 = pneg %p93
    %p100 = scmp.eq.s32.totalorder %s9, 1
    %p101 = por %p99, %p100
    %p102 = scmp.ne.s32.totalorder %s94, %s97
    %p103 = scmp.eq.s32.totalorder %s9, 0
    %p104 = por %p102, %p103
    %p105 = scmp.ne.s32.totalorder %s94, %s97
    %p106 = scmp.eq.s32.totalorder %s14, 1
    %p107 = por %p105, %p106
    %p108 = scmp.ne.s32.totalorder %s97, %s98
    %p109 = scmp.eq.s32.totalorder %s14, 0
    %p110 = por %p108, %p109
    %p111 = scmp.ne.s32.totalorder %s97, %s98
    %p112 = scmp.eq.s32.totalorder %s15, 1
    %p113 = por %p111, %p112
    %p115 = scmp.ne.s32.totalorder %s98, %s114
    %p116 = scmp.eq.s32.totalorder %s15, 0
    %p117 = por %p115, %p116
    %s118 = ssub.s32 %s16, %s35
    %s119 = ssub.s32 %s17, %s31
    %s120 = sor.u32 %s118, %s119
    %p121 = scmp.eq.s32.totalorder %s120, 0
    %s123 = sadd.s32 %s122, 1
    %s124 = scalar_select %p121, %s122, %s123
    %p127 = pneg %p121
    %p128 = scmp.eq.s32.totalorder %s9, 1
    %p129 = por %p127, %p128
    %p130 = scmp.ne.s32.totalorder %s122, %s125
    %p131 = scmp.eq.s32.totalorder %s9, 0
    %p132 = por %p130, %p131
    %p133 = scmp.ne.s32.totalorder %s122, %s125
    %p134 = scmp.eq.s32.totalorder %s14, 1
    %p135 = por %p133, %p134
    %p136 = scmp.ne.s32.totalorder %s125, %s126
    %p137 = scmp.eq.s32.totalorder %s14, 0
    %p138 = por %p136, %p137
    %p139 = scmp.ne.s32.totalorder %s125, %s126
    %p140 = scmp.eq.s32.totalorder %s15, 1
    %p141 = por %p139, %p140
    %p143 = scmp.ne.s32.totalorder %s126, %s142
    %p144 = scmp.eq.s32.totalorder %s15, 0
    %p145 = por %p143, %p144
    %p146 = scmp.le.s32.totalorder 1, %s9
    %p147 = scmp.lt.s32.totalorder %s9, 3
    %p148 = pnand %p146, %p147
    %p149 = pneg %p148
    // Predicated region
    $region9: #{dino_classifier_forward.6} parent=5 // pred_check
      _
    $region10: #{dino_classifier_forward.6} parent=5 // pred_check_branch
      %151 = sbr.rel (%p148) target = $region12
    $region11: #{dino_classifier_forward.6} parent=5 // pred_region
      %s152 = ssub.s32 %s9, 1
      // Predicated region
      $region13: #{dino_classifier_forward.6} parent=11 // pred_check
        %p153 = pneg %p84
      $region14: #{dino_classifier_forward.6} parent=11 // pred_check_branch
        %155 = sbr.rel (%p153) target = $region16
      $region15: #{dino_classifier_forward.6} parent=11 // pred_region
        %s156 = smul.u32 24, %s21
        %s157 = smul.u32 2, %s20
        %p158 = scmp.lt.s32.totalorder %s156, 23
        %s159 = scalar_select %p158, %s156, 23
        %p160 = scmp.lt.s32.totalorder %s157, 1
        %s161 = scalar_select %p160, %s157, 1
        %s162 = smul.addr %s159, 2
        %s163 = sadd.s32 %s161, %s162
        %s164 = smul.addr %s163, 4
        %s165 = scalar_lea.vmem %s1, %s164
        %s166 = smul.u32 24, %s21
        %s167 = smul.u32 2, %s20
      $region16: #{dino_classifier_forward.6} parent=11 // pred_fallthru
        _
      // Predicated region
      $region17: #{dino_classifier_forward.6} parent=11 // pred_check
        %p168 = pneg %p110
      $region18: #{dino_classifier_forward.6} parent=11 // pred_check_branch
        %170 = sbr.rel (%p168) target = $region20
      $region19: #{dino_classifier_forward.6} parent=11 // pred_region
        %s171 = smul.u32 2, %s20
        %p172 = scmp.lt.s32.totalorder %s171, 1
        %s173 = scalar_select %p172, %s171, 1
        %s174 = scalar_lea.vmem %s2, %s173
        %s175 = smul.u32 2, %s20
      $region20: #{dino_classifier_forward.6} parent=11 // pred_fallthru
        _
    $region12: #{dino_classifier_forward.6} parent=5 // pred_fallthru
      _
    %p176 = scmp.lt.s32.totalorder %s9, 2
    // Predicated region
    $region21: #{dino_classifier_forward.6} parent=5 // pred_check
      %p177 = pneg %p176
    $region22: #{dino_classifier_forward.6} parent=5 // pred_check_branch
      %179 = sbr.rel (%p177) target = $region24
    $region23: #{dino_classifier_forward.6} parent=5 // pred_region
      // Predicated region
      $region25: #{dino_classifier_forward.6} parent=23 // pred_check
        %p180 = pneg %p50
      $region26: #{dino_classifier_forward.6} parent=23 // pred_check_branch
        %182 = sbr.rel (%p180) target = $region28
      $region27: #{dino_classifier_forward.6} parent=23 // pred_region
        %s183 = smul.u32 2, %s16
        %s184 = smul.u32 2, %s18
        %p185 = scmp.lt.s32.totalorder %s183, 3
        %s186 = scalar_select %p185, %s183, 3
        %p187 = scmp.lt.s32.totalorder %s184, 1
        %s188 = scalar_select %p187, %s184, 1
        %s189 = smul.addr %s186, 2
        %s190 = sadd.s32 %s188, %s189
        %s191 = smul.addr %s190, 4
        %s192 = scalar_lea.vmem %s0, %s191
        %s193 = smul.u32 2, %s16
        %s194 = smul.u32 2, %s18
      $region28: #{dino_classifier_forward.6} parent=23 // pred_fallthru
        _
    $region24: #{dino_classifier_forward.6} parent=5 // pred_fallthru
      _
    %p195 = scmp.le.s32.totalorder 1, %s9
    %p196 = scmp.lt.s32.totalorder %s9, 3
    %p197 = pnand %p195, %p196
    %p198 = pneg %p197
    // Predicated region
    $region29: #{dino_classifier_forward.6} parent=5 // pred_check
      _
    $region30: #{dino_classifier_forward.6} parent=5 // pred_check_branch
      %200 = sbr.rel (%p197) target = $region32
    $region31: #{dino_classifier_forward.6} parent=5 // pred_region
      %s201 = ssub.s32 %s9, 1
      %s202 = smul.u32 2, %s19
      %s203 = smul.u32 2, %s21
      %p204 = scmp.lt.s32.totalorder %s202, 3
      %s205 = scalar_select %p204, %s202, 3
      %p206 = scmp.lt.s32.totalorder %s203, 1
      %s207 = scalar_select %p206, %s203, 1
      %s208 = smul.addr %s205, 2
      %s209 = sadd.s32 %s207, %s208
      %s210 = smul.addr %s209, 4
      %s211 = scalar_lea.vmem %s0, %s210
      %p212 = pneg %p56
      %p213 = pneg %p53
      %s214 = smul.u32 24, %s21
      %s215 = smul.u32 2, %s20
      %p216 = scmp.lt.s32.totalorder %s214, 23
      %s217 = scalar_select %p216, %s214, 23
      %p218 = scmp.lt.s32.totalorder %s215, 1
      %s219 = scalar_select %p218, %s215, 1
      %s220 = smul.addr %s217, 2
      %s221 = sadd.s32 %s219, %s220
      %s222 = smul.addr %s221, 4
      %s223 = scalar_lea.vmem %s1, %s222
      %p224 = pneg %p84
      %p225 = pneg %p81
      %s226 = smul.u32 2, %s20
      %p227 = scmp.lt.s32.totalorder %s226, 1
      %s228 = scalar_select %p227, %s226, 1
      %s229 = scalar_lea.vmem %s2, %s228
      %p230 = pneg %p110
      %p231 = pneg %p107
      %p232 = pneg %p138
      %p233 = pneg %p135
      %s234 = smul.u32 2, %s19
      %s235 = smul.u32 2, %s20
      %p236 = scmp.lt.s32.totalorder %s234, 3
      %s237 = scalar_select %p236, %s234, 3
      %p238 = scmp.lt.s32.totalorder %s235, 1
      %s239 = scalar_select %p238, %s235, 1
      %s240 = smul.addr %s237, 2
      %s241 = sadd.s32 %s239, %s240
      %s242 = smul.addr %s241, 4
      %s243 = scalar_lea.vmem %s3, %s242
      %s244 = smul.u32 2, %s19
      %s245 = smul.u32 2, %s21
      %p246 = scmp.lt.s32.totalorder %s244, 3
      %s247 = scalar_select %p246, %s244, 3
      %p248 = scmp.lt.s32.totalorder %s245, 1
      %s249 = scalar_select %p248, %s245, 1
      %s250 = smul.addr %s247, 2
      %s251 = sadd.s32 %s249, %s250
      %s252 = smul.addr %s251, 4
      %s253 = scalar_lea.vmem %s0, %s252
      %s254 = smul.u32 2, %s19
      %s255 = smul.u32 2, %s21
      %s256 = smul.u32 24, %s21
      %s257 = smul.u32 2, %s20
      %p258 = scmp.lt.s32.totalorder %s256, 23
      %s259 = scalar_select %p258, %s256, 23
      %p260 = scmp.lt.s32.totalorder %s257, 1
      %s261 = scalar_select %p260, %s257, 1
      %s262 = smul.addr %s259, 2
      %s263 = sadd.s32 %s261, %s262
      %s264 = smul.addr %s263, 4
      %s265 = scalar_lea.vmem %s1, %s264
      %s266 = smul.u32 24, %s21
      %s267 = smul.u32 2, %s20
      %s268 = smul.u32 2, %s20
      %p269 = scmp.lt.s32.totalorder %s268, 1
      %s270 = scalar_select %p269, %s268, 1
      %s271 = scalar_lea.vmem %s2, %s270
      %s272 = smul.u32 2, %s20
      %s273 = smul.u32 2, %s19
      %s274 = smul.u32 2, %s20
      %p275 = scmp.lt.s32.totalorder %s273, 3
      %s276 = scalar_select %p275, %s273, 3
      %p277 = scmp.lt.s32.totalorder %s274, 1
      %s278 = scalar_select %p277, %s274, 1
      %s279 = smul.addr %s276, 2
      %s280 = sadd.s32 %s278, %s279
      %s281 = smul.addr %s280, 4
      %s282 = scalar_lea.vmem %s3, %s281
      %s283 = smul.u32 2, %s19
      %s284 = smul.u32 2, %s20
      %p286 = scmp.eq.s32.totalorder %s21, 0
      // Predicated region
      $region33: #{dino_classifier_forward.6} parent=31 // pred_check
        %p287 = pneg %p286
      $region34: #{dino_classifier_forward.6} parent=31 // pred_check_branch
        %289 = sbr.rel (%p287) target = $region36
      $region35: #{dino_classifier_forward.6} parent=31 // pred_region
        %290 = vst [vmem:[#allocation2] sm:$0xff] 0.0
        %291 = vst [vmem:[#allocation2 + $0x8] sm:$0xff] 0.0
        %292 = vst [vmem:[#allocation2 + $0x10] sm:$0xff] 0.0
        %293 = vst [vmem:[#allocation2 + $0x18] sm:$0xff] 0.0
      $region36: #{dino_classifier_forward.6} parent=31 // pred_fallthru
        _
      %v294 = vld [vmem:[#allocation2] sm:$0xff]
      %v295 = vld [vmem:[#allocation2 + $0x8] sm:$0xff]
      %v296 = vld [vmem:[#allocation2 + $0x10] sm:$0xff]
      %v297 = vld [vmem:[#allocation2 + $0x18] sm:$0xff]
      %v298 = vld [vmem:[%s253] sm:$0xff]
      %v299 = vld [vmem:[%s253 + $0x8] sm:$0xff]
      %v300 = vld [vmem:[%s265] sm:$0xff]
      %v301 = vld [vmem:[%s265 + $0x8] sm:$0xff]
      %v302 = vld [vmem:[%s265 + $0x10] sm:$0xff]
      %v303 = vld [vmem:[%s265 + $0x18] sm:$0xff]
      %v304 = vld [vmem:[%s265 + $0x20] sm:$0xff]
      %v305 = vld [vmem:[%s265 + $0x28] sm:$0xff]
      %v306 = vld [vmem:[%s265 + $0x30] sm:$0xff]
      %v307 = vld [vmem:[%s265 + $0x38] sm:$0xff]
      %v308 = vld [vmem:[%s265 + $0x40] sm:$0xff]
      %v309 = vld [vmem:[%s265 + $0x48] sm:$0xff]
      %v310 = vld [vmem:[%s265 + $0x50] sm:$0xff]
      %v311 = vld [vmem:[%s265 + $0x58] sm:$0xff]
      %v312 = vld [vmem:[%s265 + $0x60] sm:$0xff]
      %v313 = vld [vmem:[%s265 + $0x68] sm:$0xff]
      %v314 = vld [vmem:[%s265 + $0x70] sm:$0xff]
      %v315 = vld [vmem:[%s265 + $0x78] sm:$0xff]
      %v316 = vld [vmem:[%s265 + $0x80] sm:$0xff]
      %v317 = vld [vmem:[%s265 + $0x88] sm:$0xff]
      %v318 = vld [vmem:[%s265 + $0x90] sm:$0xff]
      %v319 = vld [vmem:[%s265 + $0x98] sm:$0xff]
      %v320 = vld [vmem:[%s265 + $0xa0] sm:$0xff]
      %v321 = vld [vmem:[%s265 + $0xa8] sm:$0xff]
      %v322 = vld [vmem:[%s265 + $0xb0] sm:$0xff]
      %v323 = vld [vmem:[%s265 + $0xb8] sm:$0xff]
      %v326 = vunpack.c.l.b16 %v298
      %v327 = vunpack.c.h.b16 %v298
      %v328 = vunpack.c.l.b16 %v299
      %v329 = vunpack.c.h.b16 %v299
      %v330 = vpack.c.b16 %v328, %v326
      %v331 = vpack.c.b16 %v329, %v327
      %v357 = vunpack.c.l.b16 %v300
      %v358 = vunpack.c.h.b16 %v300
      %v359 = vunpack.c.l.b16 %v301
      %v360 = vunpack.c.h.b16 %v301
      %v361 = vunpack.c.l.b16 %v302
      %v362 = vunpack.c.h.b16 %v302
      %v363 = vunpack.c.l.b16 %v303
      %v364 = vunpack.c.h.b16 %v303
      %v365 = vunpack.c.l.b16 %v304
      %v366 = vunpack.c.h.b16 %v304
      %v367 = vunpack.c.l.b16 %v305
      %v368 = vunpack.c.h.b16 %v305
      %v369 = vunpack.c.l.b16 %v306
      %v370 = vunpack.c.h.b16 %v306
      %v371 = vunpack.c.l.b16 %v307
      %v372 = vunpack.c.h.b16 %v307
      %v373 = vunpack.c.l.b16 %v308
      %v374 = vunpack.c.h.b16 %v308
      %v375 = vunpack.c.l.b16 %v309
      %v376 = vunpack.c.h.b16 %v309
      %v377 = vunpack.c.l.b16 %v310
      %v378 = vunpack.c.h.b16 %v310
      %v379 = vunpack.c.l.b16 %v311
      %v380 = vunpack.c.h.b16 %v311
      %v381 = vunpack.c.l.b16 %v312
      %v382 = vunpack.c.h.b16 %v312
      %v383 = vunpack.c.l.b16 %v313
      %v384 = vunpack.c.h.b16 %v313
      %v385 = vunpack.c.l.b16 %v314
      %v386 = vunpack.c.h.b16 %v314
      %v387 = vunpack.c.l.b16 %v315
      %v388 = vunpack.c.h.b16 %v315
      %v389 = vunpack.c.l.b16 %v316
      %v390 = vunpack.c.h.b16 %v316
      %v391 = vunpack.c.l.b16 %v317
      %v392 = vunpack.c.h.b16 %v317
      %v393 = vunpack.c.l.b16 %v318
      %v394 = vunpack.c.h.b16 %v318
      %v395 = vunpack.c.l.b16 %v319
      %v396 = vunpack.c.h.b16 %v319
      %v397 = vunpack.c.l.b16 %v320
      %v398 = vunpack.c.h.b16 %v320
      %v399 = vunpack.c.l.b16 %v321
      %v400 = vunpack.c.h.b16 %v321
      %v401 = vunpack.c.l.b16 %v322
      %v402 = vunpack.c.h.b16 %v322
      %v403 = vunpack.c.l.b16 %v323
      %v404 = vunpack.c.h.b16 %v323
      %v405 = vpack.c.b16 %v359, %v357
      %v406 = vpack.c.b16 %v360, %v358
      %v407 = vpack.c.b16 %v363, %v361
      %v408 = vpack.c.b16 %v364, %v362
      %v409 = vpack.c.b16 %v367, %v365
      %v410 = vpack.c.b16 %v368, %v366
      %v411 = vpack.c.b16 %v371, %v369
      %v412 = vpack.c.b16 %v372, %v370
      %v413 = vpack.c.b16 %v375, %v373
      %v414 = vpack.c.b16 %v376, %v374
      %v415 = vpack.c.b16 %v379, %v377
      %v416 = vpack.c.b16 %v380, %v378
      %v417 = vpack.c.b16 %v383, %v381
      %v418 = vpack.c.b16 %v384, %v382
      %v419 = vpack.c.b16 %v387, %v385
      %v420 = vpack.c.b16 %v388, %v386
      %v421 = vpack.c.b16 %v391, %v389
      %v422 = vpack.c.b16 %v392, %v390
      %v423 = vpack.c.b16 %v395, %v393
      %v424 = vpack.c.b16 %v396, %v394
      %v425 = vpack.c.b16 %v399, %v397
      %v426 = vpack.c.b16 %v400, %v398
      %v427 = vpack.c.b16 %v403, %v401
      %v428 = vpack.c.b16 %v404, %v402
      %vm453 = vcmask 523264
      %v455 = vsel %vm453, %v331, 0
      %457 = vmatprep.subr.bf16.mxu0 %v406
      %458 = vmatpush1.bf16.msra.mxu0 %v405
      %459 = vmatprep.subr.bf16.mxu0 %v408
      %460 = vmatpush1.bf16.msra.mxu0 %v407
      %461 = vmatprep.subr.bf16.mxu0 %v410
      %462 = vmatpush1.bf16.msra.mxu0 %v409
      %463 = vmatprep.subr.bf16.mxu0 %v412
      %464 = vmatpush1.bf16.msra.mxu0 %v411
      %465 = vmatprep.subr.bf16.mxu0 %v414
      %466 = vmatpush1.bf16.msra.mxu0 %v413
      %467 = vmatprep.subr.bf16.mxu0 %v416
      %468 = vmatpush1.bf16.msra.mxu0 %v415
      %469 = vmatprep.subr.bf16.mxu0 %v418
      %470 = vmatpush1.bf16.msra.mxu0 %v417
      %471 = vmatprep.subr.bf16.mxu0 %v420
      %472 = vmatpush1.bf16.msra.mxu0 %v419
      %473 = vmatprep.subr.bf16.mxu0 %v422
      %474 = vmatpush1.bf16.msra.mxu0 %v421
      %475 = vmatprep.subr.bf16.mxu0 %v424
      %476 = vmatpush1.bf16.msra.mxu0 %v423
      %477 = vmatprep.subr.bf16.mxu0 %v426
      %478 = vmatpush1.bf16.msra.mxu0 %v425
      %479 = vmatprep.subr.bf16.mxu0 %v428
      %480 = vmatpush1.bf16.msra.mxu0 %v427
      %481 = vmatprep.subr.bf16.mxu0 0
      %482 = vmatpush1.bf16.msra.mxu0 0
      %483 = vmatprep.subr.bf16.mxu0 0
      %484 = vmatpush1.bf16.msra.mxu0 0
      %485 = vmatprep.subr.bf16.mxu0 0
      %486 = vmatpush1.bf16.msra.mxu0 0
      %487 = vmatprep.subr.bf16.mxu0 0
      %488 = vmatpush1.bf16.msra.mxu0 0
      %489 = vmatprep.mubr.bf16.mxu0 %v455
      %490 = vmatmul.mubr.bf16.gmra.mrb[0].mxu0 %v330
      %v491 = vpop.f32.mrb[0].mxu0
      %v492 = vadd.f32 0.0, %v491
      %v493 = vpop.f32.mrb[0].mxu0
      %v494 = vadd.f32 0.0, %v493
      %v495 = vpop.f32.mrb[0].mxu0
      %v496 = vadd.f32 0.0, %v495
      %v497 = vpop.f32.mrb[0].mxu0
      %v498 = vadd.f32 0.0, %v497
      %499 = vdwg.mxu0
      %v500 = vadd.f32 %v294, %v492
      %v501 = vadd.f32 %v295, %v494
      %v502 = vadd.f32 %v296, %v496
      %v503 = vadd.f32 %v297, %v498
      %504 = vst [vmem:[#allocation2] sm:$0xff] %v500
      %505 = vst [vmem:[#allocation2 + $0x8] sm:$0xff] %v501
      %506 = vst [vmem:[#allocation2 + $0x10] sm:$0xff] %v502
      %507 = vst [vmem:[#allocation2 + $0x18] sm:$0xff] %v503
      // Predicated region
      $region37: #{dino_classifier_forward.6} parent=31 // pred_check
        %p508 = pneg %p286
      $region38: #{dino_classifier_forward.6} parent=31 // pred_check_branch
        %510 = sbr.rel (%p508) target = $region40
      $region39: #{dino_classifier_forward.6} parent=31 // pred_region
        %v511 = vld [vmem:[#allocation2] sm:$0xff]
        %v512 = vld [vmem:[#allocation2 + $0x8] sm:$0xff]
        %v513 = vld [vmem:[#allocation2 + $0x10] sm:$0xff]
        %v514 = vld [vmem:[#allocation2 + $0x18] sm:$0xff]
        %v515 = vld [vmem:[%s271] sm:$0x3]
        %v517 = vlaneseq
        %v518 = vshrl.u32 %v517, 7
        %v519 = vsub.s32 0, %v518
        %v520 = vrot.slane %v515, %v519
        %v521 = vlaneseq
        %v522 = vshrl.u32 %v521, 7
        %v523 = vsub.s32 1, %v522
        %v524 = vrot.slane %v515, %v523
        %v527 = vadd.f32 %v511, %v520
        %v528 = vadd.f32 %v512, %v524
        %v529 = vadd.f32 %v513, %v520
        %v530 = vadd.f32 %v514, %v524
        %v531 = vpack.c.bf16 %v529, %v527
        %v532 = vpack.c.bf16 %v530, %v528
        %v535 = vunpack.c.l.b16 %v531
        %v536 = vunpack.c.l.b16 %v532
        %v537 = vunpack.c.h.b16 %v531
        %v538 = vunpack.c.h.b16 %v532
        %v539 = vpack.c.b16 %v536, %v535
        %v540 = vpack.c.b16 %v538, %v537
        %543 = vst [vmem:[%s282] sm:$0xff] %v539
        %544 = vst [vmem:[%s282 + $0x8] sm:$0xff] %v540
      $region40: #{dino_classifier_forward.6} parent=31 // pred_fallthru
        _
      %s545 = smul.u32 2, %s19
      %s546 = smul.u32 2, %s20
      %p547 = scmp.lt.s32.totalorder %s545, 3
      %s548 = scalar_select %p547, %s545, 3
      %p549 = scmp.lt.s32.totalorder %s546, 1
      %s550 = scalar_select %p549, %s546, 1
      %s551 = smul.addr %s548, 2
      %s552 = sadd.s32 %s550, %s551
      %s553 = smul.addr %s552, 4
      %s554 = scalar_lea.vmem %s3, %s553
      // Predicated region
      $region41: #{dino_classifier_forward.6} parent=31 // pred_check
        %p555 = pneg %p135
      $region42: #{dino_classifier_forward.6} parent=31 // pred_check_branch
        %557 = sbr.rel (%p555) target = $region44
      $region43: #{dino_classifier_forward.6} parent=31 // pred_region
        %s558 = smul.u32 2, %s19
        %s559 = smul.u32 2, %s20
      $region44: #{dino_classifier_forward.6} parent=31 // pred_fallthru
        _
    $region32: #{dino_classifier_forward.6} parent=5 // pred_fallthru
      _
    %p560 = scmp.le.s32.totalorder 2, %s9
    // Predicated region
    $region45: #{dino_classifier_forward.6} parent=5 // pred_check
      %p561 = pneg %p560
    $region46: #{dino_classifier_forward.6} parent=5 // pred_check_branch
      %563 = sbr.rel (%p561) target = $region48
    $region47: #{dino_classifier_forward.6} parent=5 // pred_region
      %s564 = ssub.s32 %s9, 2
      // Predicated region
      $region49: #{dino_classifier_forward.6} parent=47 // pred_check
        %p565 = pneg %p141
      $region50: #{dino_classifier_forward.6} parent=47 // pred_check_branch
        %567 = sbr.rel (%p565) target = $region52
      $region51: #{dino_classifier_forward.6} parent=47 // pred_region
        %s568 = smul.u32 2, %s22
        %s569 = smul.u32 2, %s23
        %p570 = scmp.lt.s32.totalorder %s568, 3
        %s571 = scalar_select %p570, %s568, 3
        %p572 = scmp.lt.s32.totalorder %s569, 1
        %s573 = scalar_select %p572, %s569, 1
        %s574 = smul.addr %s571, 2
        %s575 = sadd.s32 %s573, %s574
        %s576 = smul.addr %s575, 4
        %s577 = scalar_lea.vmem %s3, %s576
      $region52: #{dino_classifier_forward.6} parent=47 // pred_fallthru
        _
    $region48: #{dino_classifier_forward.6} parent=5 // pred_fallthru
      _
  $region6: #{dino_classifier_forward.6} parent=0 // loop_footer
    %s13 = sadd.s32 1, %s9
  $region7: #{dino_classifier_forward.6} parent=0 // loop_footer_branch
    %8 = sbr.rel target = $region3
  $region8: #{dino_classifier_forward.6} parent=0 // loop_exit
    _

// kernel: dino_classifier_forward.11
$region0: #{dino_classifier_forward.11}
  #allocation0 [shape = 'u32[]', space=smem, size = 0x4, offset = 0x4, fixed_abs, tag = 'smem constant byte address 0x4 - core index']
  #allocation1 [shape = 'u32[144,128]{1,0:T(1,128)}', space=vmem, size = 0x12000, scoped, tag = 'internal scratch']
  %s0 = inlined_call_operand.vmem [shape: bf16[2,17,256], index: 0, kind: input, shape index: {}]
  %s1 = inlined_call_operand.vmem [shape: f32[1,256], index: 1, kind: input, shape index: {}]
  %s2 = inlined_call_operand.vmem [shape: f32[1,256], index: 2, kind: input, shape index: {}]
  %s3 = inlined_call_operand.vmem [shape: bf16[256,128], index: 3, kind: input, shape index: {}]
  %s4 = inlined_call_operand.vmem [shape: f32[1,128], index: 4, kind: input, shape index: {}]
  %s5 = inlined_call_operand.hbm [shape: f32[2,1,128], index: 5, kind: output, shape index: {}]
  %s6 = sld [smem:[#allocation0]]
  $region53: #{dino_classifier_forward.11} parent=0
    _
  %s8 = ssub.s32 1, %s6
  %s9 = scalar_select 0, %s8, %s6
  $region1: #{dino_classifier_forward.11} parent=0
    #allocation2 [shape = 'u8[1024]{0}', space=vmem, size = 0x400, scoped, tag = 'output window, operand 0']
    #allocation3 [shape = 's32[2]{0}', space=sflag, size = 0x8, scoped, tag = 'scoped memory for dino_classifier_forward.11']
    %10 = vsyncpa [#allocation3], 0
    %s11 = scalar_lea.sflag [#allocation3], 1
    %12 = vsyncpa %s11, 0
    loop: start=0, step=1, limit=4
    $region2: #{dino_classifier_forward.11} parent=1 // loop_pre_header
      _
    $region3: #{dino_classifier_forward.11} parent=1 // loop_header
      %s14 = sphi 0, %s18
      %p15 = scmp.ge.s32.totalorder %s14, 4
      %s24 = sphi 0, %s26
      %s27 = sphi 0, %s24
      %s28 = sphi 0, %s27
      %s44 = sphi 0, %s28
      %s48 = sphi 0, %s48
      %s50 = sphi 0, %s48
      %s51 = sphi 0, %s50
      %s65 = sphi 0, %s51
      %s69 = sphi 0, %s69
      %s71 = sphi 0, %s69
      %s72 = sphi 0, %s71
      %s86 = sphi 0, %s72
      %s90 = sphi 0, %s90
      %s92 = sphi 0, %s90
      %s93 = sphi 0, %s92
      %s107 = sphi 0, %s93
      %s111 = sphi 0, %s111
      %s113 = sphi 0, %s111
      %s114 = sphi 0, %s113
      %s128 = sphi 0, %s114
      %s134 = sphi 0, %s136
      %s137 = sphi 0, %s134
      %s138 = sphi 0, %s137
      %s154 = sphi 0, %s138
    $region4: #{dino_classifier_forward.11} parent=1 // loop_header_branch
      %17 = sbr.rel (%p15) target = $region8
    $region5: #{dino_classifier_forward.11} parent=1 // loop_body
      %s19 = ssub.s32 %s14, 1
      %s20 = ssub.s32 %s14, 2
      %s21 = sadd.s32 %s14, 1
      %s22 = ssub.s32 %s14, %s21
      %p23 = scmp.eq.s32.totalorder %s22, 0
      %s25 = sadd.s32 %s24, 1
      %s26 = scalar_select %p23, %s24, %s25
      %p29 = pneg %p23
      %p30 = scmp.eq.s32.totalorder %s14, 1
      %p31 = por %p29, %p30
      %p32 = scmp.ne.s32.totalorder %s24, %s27
      %p33 = scmp.eq.s32.totalorder %s14, 0
      %p34 = por %p32, %p33
      %p35 = scmp.ne.s32.totalorder %s24, %s27
      %p36 = scmp.eq.s32.totalorder %s19, 1
      %p37 = por %p35, %p36
      %p38 = scmp.ne.s32.totalorder %s27, %s28
      %p39 = scmp.eq.s32.totalorder %s19, 0
      %p40 = por %p38, %p39
      %p41 = scmp.ne.s32.totalorder %s27, %s28
      %p42 = scmp.eq.s32.totalorder %s20, 1
      %p43 = por %p41, %p42
      %p45 = scmp.ne.s32.totalorder %s28, %s44
      %p46 = scmp.eq.s32.totalorder %s20, 0
      %p47 = por %p45, %p46
      %s49 = sadd.s32 %s48, 1
      %p52 = scmp.eq.s32.totalorder %s14, 1
      %p53 = scmp.ne.s32.totalorder %s48, %s50
      %p54 = scmp.eq.s32.totalorder %s14, 0
      %p55 = por %p53, %p54
      %p56 = scmp.ne.s32.totalorder %s48, %s50
      %p57 = scmp.eq.s32.totalorder %s19, 1
      %p58 = por %p56, %p57
      %p59 = scmp.ne.s32.totalorder %s50, %s51
      %p60 = scmp.eq.s32.totalorder %s19, 0
      %p61 = por %p59, %p60
      %p62 = scmp.ne.s32.totalorder %s50, %s51
      %p63 = scmp.eq.s32.totalorder %s20, 1
      %p64 = por %p62, %p63
      %p66 = scmp.ne.s32.totalorder %s51, %s65
      %p67 = scmp.eq.s32.totalorder %s20, 0
      %p68 = por %p66, %p67
      %s70 = sadd.s32 %s69, 1
      %p73 = scmp.eq.s32.totalorder %s14, 1
      %p74 = scmp.ne.s32.totalorder %s69, %s71
      %p75 = scmp.eq.s32.totalorder %s14, 0
      %p76 = por %p74, %p75
      %p77 = scmp.ne.s32.totalorder %s69, %s71
      %p78 = scmp.eq.s32.totalorder %s19, 1
      %p79 = por %p77, %p78
      %p80 = scmp.ne.s32.totalorder %s71, %s72
      %p81 = scmp.eq.s32.totalorder %s19, 0
      %p82 = por %p80, %p81
      %p83 = scmp.ne.s32.totalorder %s71, %s72
      %p84 = scmp.eq.s32.totalorder %s20, 1
      %p85 = por %p83, %p84
      %p87 = scmp.ne.s32.totalorder %s72, %s86
      %p88 = scmp.eq.s32.totalorder %s20, 0
      %p89 = por %p87, %p88
      %s91 = sadd.s32 %s90, 1
      %p94 = scmp.eq.s32.totalorder %s14, 1
      %p95 = scmp.ne.s32.totalorder %s90, %s92
      %p96 = scmp.eq.s32.totalorder %s14, 0
      %p97 = por %p95, %p96
      %p98 = scmp.ne.s32.totalorder %s90, %s92
      %p99 = scmp.eq.s32.totalorder %s19, 1
      %p100 = por %p98, %p99
      %p101 = scmp.ne.s32.totalorder %s92, %s93
      %p102 = scmp.eq.s32.totalorder %s19, 0
      %p103 = por %p101, %p102
      %p104 = scmp.ne.s32.totalorder %s92, %s93
      %p105 = scmp.eq.s32.totalorder %s20, 1
      %p106 = por %p104, %p105
      %p108 = scmp.ne.s32.totalorder %s93, %s107
      %p109 = scmp.eq.s32.totalorder %s20, 0
      %p110 = por %p108, %p109
      %s112 = sadd.s32 %s111, 1
      %p115 = scmp.eq.s32.totalorder %s14, 1
      %p116 = scmp.ne.s32.totalorder %s111, %s113
      %p117 = scmp.eq.s32.totalorder %s14, 0
      %p118 = por %p116, %p117
      %p119 = scmp.ne.s32.totalorder %s111, %s113
      %p120 = scmp.eq.s32.totalorder %s19, 1
      %p121 = por %p119, %p120
      %p122 = scmp.ne.s32.totalorder %s113, %s114
      %p123 = scmp.eq.s32.totalorder %s19, 0
      %p124 = por %p122, %p123
      %p125 = scmp.ne.s32.totalorder %s113, %s114
      %p126 = scmp.eq.s32.totalorder %s20, 1
      %p127 = por %p125, %p126
      %p129 = scmp.ne.s32.totalorder %s114, %s128
      %p130 = scmp.eq.s32.totalorder %s20, 0
      %p131 = por %p129, %p130
      %s132 = ssub.s32 %s14, %s21
      %p133 = scmp.eq.s32.totalorder %s132, 0
      %s135 = sadd.s32 %s134, 1
      %s136 = scalar_select %p133, %s134, %s135
      %p139 = pneg %p133
      %p140 = scmp.eq.s32.totalorder %s14, 1
      %p141 = por %p139, %p140
      %p142 = scmp.ne.s32.totalorder %s134, %s137
      %p143 = scmp.eq.s32.totalorder %s14, 0
      %p144 = por %p142, %p143
      %p145 = scmp.ne.s32.totalorder %s134, %s137
      %p146 = scmp.eq.s32.totalorder %s19, 1
      %p147 = por %p145, %p146
      %p148 = scmp.ne.s32.totalorder %s137, %s138
      %p149 = scmp.eq.s32.totalorder %s19, 0
      %p150 = por %p148, %p149
      %p151 = scmp.ne.s32.totalorder %s137, %s138
      %p152 = scmp.eq.s32.totalorder %s20, 1
      %p153 = por %p151, %p152
      %p155 = scmp.ne.s32.totalorder %s138, %s154
      %p156 = scmp.eq.s32.totalorder %s20, 0
      %p157 = por %p155, %p156
      %p158 = scmp.le.s32.totalorder 1, %s14
      %p159 = scmp.lt.s32.totalorder %s14, 3
      %p160 = pnand %p158, %p159
      %p161 = pneg %p160
      // Predicated region
      $region9: #{dino_classifier_forward.11} parent=5 // pred_check
        _
      $region10: #{dino_classifier_forward.11} parent=5 // pred_check_branch
        %163 = sbr.rel (%p160) target = $region12
      $region11: #{dino_classifier_forward.11} parent=5 // pred_region
        %s164 = ssub.s32 %s14, 1
        // Predicated region
        $region13: #{dino_classifier_forward.11} parent=11 // pred_check
          %p165 = pneg %p61
        $region14: #{dino_classifier_forward.11} parent=11 // pred_check_branch
          %167 = sbr.rel (%p165) target = $region16
        $region15: #{dino_classifier_forward.11} parent=11 // pred_region
          _
        $region16: #{dino_classifier_forward.11} parent=11 // pred_fallthru
          _
        // Predicated region
        $region17: #{dino_classifier_forward.11} parent=11 // pred_check
          %p168 = pneg %p82
        $region18: #{dino_classifier_forward.11} parent=11 // pred_check_branch
          %170 = sbr.rel (%p168) target = $region20
        $region19: #{dino_classifier_forward.11} parent=11 // pred_region
          _
        $region20: #{dino_classifier_forward.11} parent=11 // pred_fallthru
          _
        // Predicated region
        $region21: #{dino_classifier_forward.11} parent=11 // pred_check
          %p171 = pneg %p103
        $region22: #{dino_classifier_forward.11} parent=11 // pred_check_branch
          %173 = sbr.rel (%p171) target = $region24
        $region23: #{dino_classifier_forward.11} parent=11 // pred_region
          _
        $region24: #{dino_classifier_forward.11} parent=11 // pred_fallthru
          _
        // Predicated region
        $region25: #{dino_classifier_forward.11} parent=11 // pred_check
          %p174 = pneg %p124
        $region26: #{dino_classifier_forward.11} parent=11 // pred_check_branch
          %176 = sbr.rel (%p174) target = $region28
        $region27: #{dino_classifier_forward.11} parent=11 // pred_region
          _
        $region28: #{dino_classifier_forward.11} parent=11 // pred_fallthru
          _
      $region12: #{dino_classifier_forward.11} parent=5 // pred_fallthru
        _
      %p177 = scmp.lt.s32.totalorder %s14, 2
      // Predicated region
      $region29: #{dino_classifier_forward.11} parent=5 // pred_check
        %p178 = pneg %p177
      $region30: #{dino_classifier_forward.11} parent=5 // pred_check_branch
        %180 = sbr.rel (%p178) target = $region32
      $region31: #{dino_classifier_forward.11} parent=5 // pred_region
        // Predicated region
        $region33: #{dino_classifier_forward.11} parent=31 // pred_check
          %p181 = pneg %p34
        $region34: #{dino_classifier_forward.11} parent=31 // pred_check_branch
          %183 = sbr.rel (%p181) target = $region36
        $region35: #{dino_classifier_forward.11} parent=31 // pred_region
          %p184 = scmp.lt.s32.totalorder %s14, 1
          %s185 = scalar_select %p184, %s14, 1
          %s186 = smul.addr %s185, 6
          %s187 = smul.addr %s186, 4
          %s188 = scalar_lea.vmem %s0, %s187
        $region36: #{dino_classifier_forward.11} parent=31 // pred_fallthru
          _
      $region32: #{dino_classifier_forward.11} parent=5 // pred_fallthru
        _
      %p189 = scmp.le.s32.totalorder 1, %s14
      %p190 = scmp.lt.s32.totalorder %s14, 3
      %p191 = pnand %p189, %p190
      %p192 = pneg %p191
      // Predicated region
      $region37: #{dino_classifier_forward.11} parent=5 // pred_check
        _
      $region38: #{dino_classifier_forward.11} parent=5 // pred_check_branch
        %194 = sbr.rel (%p191) target = $region40
      $region39: #{dino_classifier_forward.11} parent=5 // pred_region
        %s195 = ssub.s32 %s14, 1
        %p196 = scmp.lt.s32.totalorder %s19, 1
        %s197 = scalar_select %p196, %s19, 1
        %s198 = smul.addr %s197, 6
        %s199 = smul.addr %s198, 4
        %s200 = scalar_lea.vmem %s0, %s199
        %p201 = pneg %p40
        %p202 = pneg %p37
        %p203 = pneg %p61
        %p204 = pneg %p58
        %p205 = pneg %p82
        %p206 = pneg %p79
        %p207 = pneg %p103
        %p208 = pneg %p100
        %p209 = pneg %p124
        %p210 = pneg %p121
        %p211 = pneg %p150
        %p212 = pneg %p147
        %s213 = sand.u32 %s137, 1
        %s214 = scalar_lea.sflag [#allocation3], %s213
        %s215 = sand.u32 %s137, 1
        %s216 = scalar_lea.vmem [#allocation2], %s215
        %p217 = scmp.lt.s32.totalorder %s19, 1
        %s218 = scalar_select %p217, %s19, 1
        %s219 = smul.addr %s218, 6
        %s220 = smul.addr %s219, 4
        %s221 = scalar_lea.vmem %s0, %s220
        %v223 = vld [vmem:[%s221] sm:$0xff]
        %v224 = vld [vmem:[%s221 + $0x8] sm:$0xff]
        %v225 = vld [vmem:[%s221 + $0x10] sm:$0x11]
        %v226 = vunpack.c.l.bf16 %v223
        %v227 = vunpack.c.h.bf16 %v223
        %v228 = vunpack.c.l.bf16 %v224
        %v229 = vunpack.c.h.bf16 %v224
        %v230 = vunpack.c.l.bf16 %v225
        %v231 = vunpack.c.h.bf16 %v225
        %v232 = vld [vmem:[%s1] sm:$0x3]
        %v233 = vld [vmem:[%s2] sm:$0x3]
        %v234 = vadd.f32 %v226, %v227
        %235 = vadd.xlane.f32.xlu0 %v234
        %v236 = vpop.xlane.xlu0 %235
        %v237 = vadd.f32 %v228, %v229
        %238 = vadd.xlane.f32.xlu0 %v237
        %v239 = vpop.xlane.xlu0 %238
        %vm240 = vcmask 1040384
        %v241 = vsel %vm240, %v230, 0.0
        %v242 = vsel %vm240, %v231, 0.0
        %v243 = vadd.f32 %v241, %v242
        %244 = vadd.xlane.f32.xlu0 %v243
        %v245 = vpop.xlane.xlu0 %244
        %v246 = vrcp.pop 256.0
        %v247 = vmul.f32 %v236, %v246
        %v248 = vmul.f32 %v239, %v246
        %v249 = vmul.f32 %v245, %v246
        %v250 = vsub.f32 %v226, %v247
        %v251 = vsub.f32 %v227, %v247
        %v252 = vsub.f32 %v228, %v248
        %v253 = vsub.f32 %v229, %v248
        %v254 = vsub.f32 %v230, %v249
        %v255 = vsub.f32 %v231, %v249
        %v256 = vmul.f32 %v250, %v250
        %v257 = vmul.f32 %v251, %v251
        %v258 = vmul.f32 %v252, %v252
        %v259 = vmul.f32 %v253, %v253
        %v260 = vmul.f32 %v254, %v254
        %v261 = vmul.f32 %v255, %v255
        %v262 = vadd.f32 %v256, %v257
        %263 = vadd.xlane.f32.xlu0 %v262
        %v264 = vpop.xlane.xlu0 %263
        %v265 = vadd.f32 %v258, %v259
        %266 = vadd.xlane.f32.xlu0 %v265
        %v267 = vpop.xlane.xlu0 %266
        %v268 = vsel %vm240, %v260, 0.0
        %v269 = vsel %vm240, %v261, 0.0
        %v270 = vadd.f32 %v268, %v269
        %271 = vadd.xlane.f32.xlu0 %v270
        %v272 = vpop.xlane.xlu0 %271
        %v273 = vmul.f32 %v264, %v246
        %v274 = vmul.f32 %v267, %v246
        %v275 = vmul.f32 %v272, %v246
        %v276 = vadd.f32 %v273, 1e-06
        %v277 = vadd.f32 %v274, 1e-06
        %v278 = vadd.f32 %v275, 1e-06
        %v279 = vrsqrt.pop %v276
        %v280 = vrsqrt.pop %v277
        %v281 = vrsqrt.pop %v278
        %v282 = vmul.f32 %v250, %v279
        %v283 = vmul.f32 %v251, %v279
        %v284 = vmul.f32 %v252, %v280
        %v285 = vmul.f32 %v253, %v280
        %v286 = vmul.f32 %v254, %v281
        %v287 = vmul.f32 %v255, %v281
        %v289 = vlaneseq
        %v290 = vshrl.u32 %v289, 7
        %v291 = vsub.s32 0, %v290
        %v292 = vrot.slane %v232, %v291
        %v293 = vlaneseq
        %v294 = vshrl.u32 %v293, 7
        %v295 = vsub.s32 1, %v294
        %v296 = vrot.slane %v232, %v295
        %v299 = vmul.f32 %v282, %v292
        %v300 = vmul.f32 %v283, %v296
        %v301 = vmul.f32 %v284, %v292
        %v302 = vmul.f32 %v285, %v296
        %v303 = vmul.f32 %v286, %v292
        %v304 = vmul.f32 %v287, %v296
        %v306 = vlaneseq
        %v307 = vshrl.u32 %v306, 7
        %v308 = vsub.s32 0, %v307
        %v309 = vrot.slane %v233, %v308
        %v310 = vlaneseq
        %v311 = vshrl.u32 %v310, 7
        %v312 = vsub.s32 1, %v311
        %v313 = vrot.slane %v233, %v312
        %v316 = vadd.f32 %v299, %v309
        %v317 = vadd.f32 %v300, %v313
        %v318 = vadd.f32 %v301, %v309
        %v319 = vadd.f32 %v302, %v313
        %v320 = vadd.f32 %v303, %v309
        %v321 = vadd.f32 %v304, %v313
        %v322 = vadd.f32 %v316, %v318
        %v323 = vsel %vm240, %v320, 0.0
        %v324 = vadd.f32 %v322, %v323
        %v325 = vrot.slane %v324, 4
        %v326 = vadd.f32 %v324, %v325
        %v327 = vrot.slane %v326, 2
        %v328 = vadd.f32 %v326, %v327
        %v329 = vrot.slane %v328, 1
        %v330 = vadd.f32 %v328, %v329
        %v331 = vadd.f32 %v317, %v319
        %v332 = vsel %vm240, %v321, 0.0
        %v333 = vadd.f32 %v331, %v332
        %v334 = vrot.slane %v333, 4
        %v335 = vadd.f32 %v333, %v334
        %v336 = vrot.slane %v335, 2
        %v337 = vadd.f32 %v335, %v336
        %v338 = vrot.slane %v337, 1
        %v339 = vadd.f32 %v337, %v338
        %v340 = vmul.f32 %v330, 0.05882353
        %v341 = vmul.f32 %v339, 0.05882353
        %v342 = vpack.c.bf16 %v340, %v340
        %v343 = vpack.c.bf16 %v341, %v341
        %v344 = vld [vmem:[%s3] sm:$0xf]
        %v345 = vld [vmem:[%s3 + $0x4] sm:$0xf]
        %v346 = vld [vmem:[%s3 + $0x8] sm:$0xf]
        %v347 = vld [vmem:[%s3 + $0xc] sm:$0xf]
        %v348 = vld [vmem:[%s3 + $0x10] sm:$0xf]
        %v349 = vld [vmem:[%s3 + $0x14] sm:$0xf]
        %v350 = vld [vmem:[%s3 + $0x18] sm:$0xf]
        %v351 = vld [vmem:[%s3 + $0x1c] sm:$0xf]
        %v352 = vld [vmem:[%s3 + $0x20] sm:$0xf]
        %v353 = vld [vmem:[%s3 + $0x24] sm:$0xf]
        %v354 = vld [vmem:[%s3 + $0x28] sm:$0xf]
        %v355 = vld [vmem:[%s3 + $0x2c] sm:$0xf]
        %v356 = vld [vmem:[%s3 + $0x30] sm:$0xf]
        %v357 = vld [vmem:[%s3 + $0x34] sm:$0xf]
        %v358 = vld [vmem:[%s3 + $0x38] sm:$0xf]
        %v359 = vld [vmem:[%s3 + $0x3c] sm:$0xf]
        %v360 = vld [vmem:[%s3 + $0x40] sm:$0xf]
        %v361 = vld [vmem:[%s3 + $0x44] sm:$0xf]
        %v362 = vld [vmem:[%s3 + $0x48] sm:$0xf]
        %v363 = vld [vmem:[%s3 + $0x4c] sm:$0xf]
        %v364 = vld [vmem:[%s3 + $0x50] sm:$0xf]
        %v365 = vld [vmem:[%s3 + $0x54] sm:$0xf]
        %v366 = vld [vmem:[%s3 + $0x58] sm:$0xf]
        %v367 = vld [vmem:[%s3 + $0x5c] sm:$0xf]
        %v368 = vld [vmem:[%s3 + $0x60] sm:$0xf]
        %v369 = vld [vmem:[%s3 + $0x64] sm:$0xf]
        %v370 = vld [vmem:[%s3 + $0x68] sm:$0xf]
        %v371 = vld [vmem:[%s3 + $0x6c] sm:$0xf]
        %v372 = vld [vmem:[%s3 + $0x70] sm:$0xf]
        %v373 = vld [vmem:[%s3 + $0x74] sm:$0xf]
        %v374 = vld [vmem:[%s3 + $0x78] sm:$0xf]
        %v375 = vld [vmem:[%s3 + $0x7c] sm:$0xf]
        %v376 = vld [vmem:[%s4] sm:$0x1]
        %v409 = vunpack.c.l.b16 %v344
        %v410 = vunpack.c.l.b16 %v345
        %v411 = vunpack.c.l.b16 %v346
        %v412 = vunpack.c.l.b16 %v347
        %v413 = vunpack.c.l.b16 %v348
        %v414 = vunpack.c.l.b16 %v349
        %v415 = vunpack.c.l.b16 %v350
        %v416 = vunpack.c.l.b16 %v351
        %v417 = vunpack.c.l.b16 %v352
        %v418 = vunpack.c.l.b16 %v353
        %v419 = vunpack.c.l.b16 %v354
        %v420 = vunpack.c.l.b16 %v355
        %v421 = vunpack.c.l.b16 %v356
        %v422 = vunpack.c.l.b16 %v357
        %v423 = vunpack.c.l.b16 %v358
        %v424 = vunpack.c.l.b16 %v359
        %v425 = vunpack.c.l.b16 %v360
        %v426 = vunpack.c.l.b16 %v361
        %v427 = vunpack.c.l.b16 %v362
        %v428 = vunpack.c.l.b16 %v363
        %v429 = vunpack.c.l.b16 %v364
        %v430 = vunpack.c.l.b16 %v365
        %v431 = vunpack.c.l.b16 %v366
        %v432 = vunpack.c.l.b16 %v367
        %v433 = vunpack.c.l.b16 %v368
        %v434 = vunpack.c.l.b16 %v369
        %v435 = vunpack.c.l.b16 %v370
        %v436 = vunpack.c.l.b16 %v371
        %v437 = vunpack.c.l.b16 %v372
        %v438 = vunpack.c.l.b16 %v373
        %v439 = vunpack.c.l.b16 %v374
        %v440 = vunpack.c.l.b16 %v375
        %v441 = vpack.c.b16 %v410, %v409
        %v442 = vpack.c.b16 %v412, %v411
        %v443 = vpack.c.b16 %v414, %v413
        %v444 = vpack.c.b16 %v416, %v415
        %v445 = vpack.c.b16 %v418, %v417
        %v446 = vpack.c.b16 %v420, %v419
        %v447 = vpack.c.b16 %v422, %v421
        %v448 = vpack.c.b16 %v424, %v423
        %v449 = vpack.c.b16 %v426, %v425
        %v450 = vpack.c.b16 %v428, %v427
        %v451 = vpack.c.b16 %v430, %v429
        %v452 = vpack.c.b16 %v432, %v431
        %v453 = vpack.c.b16 %v434, %v433
        %v454 = vpack.c.b16 %v436, %v435
        %v455 = vpack.c.b16 %v438, %v437
        %v456 = vpack.c.b16 %v440, %v439
        %473 = vmatprep.subr.bf16.mxu0 0
        %474 = vmatpush1.bf16.msra.mxu0 %v441
        %475 = vmatprep.subr.bf16.mxu0 0
        %476 = vmatpush1.bf16.msra.mxu0 %v442
        %477 = vmatprep.subr.bf16.mxu0 0
        %478 = vmatpush1.bf16.msra.mxu0 %v443
        %479 = vmatprep.subr.bf16.mxu0 0
        %480 = vmatpush1.bf16.msra.mxu0 %v444
        %481 = vmatprep.subr.bf16.mxu0 0
        %482 = vmatpush1.bf16.msra.mxu0 %v445
        %483 = vmatprep.subr.bf16.mxu0 0
        %484 = vmatpush1.bf16.msra.mxu0 %v446
        %485 = vmatprep.subr.bf16.mxu0 0
        %486 = vmatpush1.bf16.msra.mxu0 %v447
        %487 = vmatprep.subr.bf16.mxu0 0
        %488 = vmatpush1.bf16.msra.mxu0 %v448
        %489 = vmatprep.subr.bf16.mxu0 0
        %490 = vmatpush1.bf16.msra.mxu0 %v449
        %491 = vmatprep.subr.bf16.mxu0 0
        %492 = vmatpush1.bf16.msra.mxu0 %v450
        %493 = vmatprep.subr.bf16.mxu0 0
        %494 = vmatpush1.bf16.msra.mxu0 %v451
        %495 = vmatprep.subr.bf16.mxu0 0
        %496 = vmatpush1.bf16.msra.mxu0 %v452
        %497 = vmatprep.subr.bf16.mxu0 0
        %498 = vmatpush1.bf16.msra.mxu0 %v453
        %499 = vmatprep.subr.bf16.mxu0 0
        %500 = vmatpush1.bf16.msra.mxu0 %v454
        %501 = vmatprep.subr.bf16.mxu0 0
        %502 = vmatpush1.bf16.msra.mxu0 %v455
        %503 = vmatprep.subr.bf16.mxu0 0
        %504 = vmatpush1.bf16.msra.mxu0 %v456
        %505 = vmatprep.mubr.bf16.mxu0 %v343
        %506 = vmatmul.mubr.bf16.gmra.mrb[0].mxu0 %v342
        %v507 = vpop.f32.mrb[0].mxu0
        %v508 = vadd.f32 %v376, %v507
        %v509 = vpop.f32.mrb[0].mxu0
        %v510 = vpop.f32.mrb[0].mxu0
        %v511 = vpop.f32.mrb[0].mxu0
        %512 = vdwg.mxu0
        %513 = vst [vmem:[%s216] sm:$0x1] %v508
        %s514 = sand.u32 %s137, 1
        %s515 = scalar_lea.sflag [#allocation3], %s514
        %s516 = sand.u32 %s137, 1
        %s517 = scalar_lea.vmem [#allocation2], %s516
        // Predicated region
        $region41: #{dino_classifier_forward.11} parent=39 // pred_check
          %p518 = pneg %p147
        $region42: #{dino_classifier_forward.11} parent=39 // pred_check_branch
          %520 = sbr.rel (%p518) target = $region44
        $region43: #{dino_classifier_forward.11} parent=39 // pred_region
          %s522 = ssub.s32 16, 16
          %523 = vsyncadd %s515, %s522
          %s524 = smul.addr %s19, 16
          %s525 = scalar_lea.hbm %s5, %s524
          %s527 = sshll.u32 %s517, 4
          %s528 = int_to_ptr.vmem [resolvable:$true] %s527
          %530 = dma.vmem_to_hbm [thread:$0]  %s528, 16, %s525, %s515
        $region44: #{dino_classifier_forward.11} parent=39 // pred_fallthru
          _
      $region40: #{dino_classifier_forward.11} parent=5 // pred_fallthru
        _
      %p531 = scmp.le.s32.totalorder 2, %s14
      // Predicated region
      $region45: #{dino_classifier_forward.11} parent=5 // pred_check
        %p532 = pneg %p531
      $region46: #{dino_classifier_forward.11} parent=5 // pred_check_branch
        %534 = sbr.rel (%p532) target = $region48
      $region47: #{dino_classifier_forward.11} parent=5 // pred_region
        %s535 = ssub.s32 %s14, 2
        // Predicated region
        $region49: #{dino_classifier_forward.11} parent=47 // pred_check
          %p536 = pneg %p153
        $region50: #{dino_classifier_forward.11} parent=47 // pred_check_branch
          %538 = sbr.rel (%p536) target = $region52
        $region51: #{dino_classifier_forward.11} parent=47 // pred_region
          %s539 = sand.u32 %s138, 1
          %s540 = scalar_lea.sflag [#allocation3], %s539
          %s541 = sand.u32 %s138, 1
          %s542 = scalar_lea.vmem [#allocation2], %s541
          %543 = dma.done %s540, 16
        $region52: #{dino_classifier_forward.11} parent=47 // pred_fallthru
          _
      $region48: #{dino_classifier_forward.11} parent=5 // pred_fallthru
        _
    $region6: #{dino_classifier_forward.11} parent=1 // loop_footer
      %s18 = sadd.s32 1, %s14
    $region7: #{dino_classifier_forward.11} parent=1 // loop_footer_branch
      %13 = sbr.rel target = $region3
    $region8: #{dino_classifier_forward.11} parent=1 // loop_exit
      _
    %544 = vsyncpa [#allocation3], 1
    %s545 = scalar_lea.sflag [#allocation3], 1
    %546 = vsyncpa %s545, 1

// kernel: dino_classifier_forward.8
$region0: #{dino_classifier_forward.8}
  #allocation0 [shape = 'u32[]', space=smem, size = 0x4, offset = 0x4, fixed_abs, tag = 'smem constant byte address 0x4 - core index']
  #allocation1 [shape = 'u32[144,128]{1,0:T(1,128)}', space=vmem, size = 0x12000, scoped, tag = 'internal scratch']
  %s0 = inlined_call_operand.vmem [shape: bf16[2,17,256], index: 0, kind: input, shape index: {}]
  %s1 = inlined_call_operand.vmem [shape: f32[1,256], index: 1, kind: input, shape index: {}]
  %s2 = inlined_call_operand.vmem [shape: f32[1,256], index: 2, kind: input, shape index: {}]
  %s3 = inlined_call_operand.vmem [shape: bf16[256,512], index: 3, kind: input, shape index: {}]
  %s4 = inlined_call_operand.vmem [shape: f32[1,512], index: 4, kind: input, shape index: {}]
  %s5 = inlined_call_operand.vmem [shape: bf16[512,256], index: 5, kind: input, shape index: {}]
  %s6 = inlined_call_operand.vmem [shape: f32[1,256], index: 6, kind: input, shape index: {}]
  %s7 = inlined_call_operand.vmem [shape: bf16[2,17,256], index: 7, kind: output, shape index: {}]
  %s8 = sld [smem:[#allocation0]]
  $region61: #{dino_classifier_forward.8} parent=0
    _
  %s10 = ssub.s32 1, %s8
  %s11 = scalar_select 0, %s10, %s8
  loop: start=0, step=1, limit=4
  $region2: #{dino_classifier_forward.8} parent=0 // loop_pre_header
    _
  $region3: #{dino_classifier_forward.8} parent=0 // loop_header
    %s13 = sphi 0, %s17
    %p14 = scmp.ge.s32.totalorder %s13, 4
    %s23 = sphi 0, %s25
    %s26 = sphi 0, %s23
    %s27 = sphi 0, %s26
    %s43 = sphi 0, %s27
    %s47 = sphi 0, %s47
    %s49 = sphi 0, %s47
    %s50 = sphi 0, %s49
    %s64 = sphi 0, %s50
    %s68 = sphi 0, %s68
    %s70 = sphi 0, %s68
    %s71 = sphi 0, %s70
    %s85 = sphi 0, %s71
    %s89 = sphi 0, %s89
    %s91 = sphi 0, %s89
    %s92 = sphi 0, %s91
    %s106 = sphi 0, %s92
    %s110 = sphi 0, %s110
    %s112 = sphi 0, %s110
    %s113 = sphi 0, %s112
    %s127 = sphi 0, %s113
    %s131 = sphi 0, %s131
    %s133 = sphi 0, %s131
    %s134 = sphi 0, %s133
    %s148 = sphi 0, %s134
    %s152 = sphi 0, %s152
    %s154 = sphi 0, %s152
    %s155 = sphi 0, %s154
    %s169 = sphi 0, %s155
    %s175 = sphi 0, %s177
    %s178 = sphi 0, %s175
    %s179 = sphi 0, %s178
    %s195 = sphi 0, %s179
  $region4: #{dino_classifier_forward.8} parent=0 // loop_header_branch
    %16 = sbr.rel (%p14) target = $region8
  $region5: #{dino_classifier_forward.8} parent=0 // loop_body
    %s18 = ssub.s32 %s13, 1
    %s19 = ssub.s32 %s13, 2
    %s20 = sadd.s32 %s13, 1
    %s21 = ssub.s32 %s13, %s20
    %p22 = scmp.eq.s32.totalorder %s21, 0
    %s24 = sadd.s32 %s23, 1
    %s25 = scalar_select %p22, %s23, %s24
    %p28 = pneg %p22
    %p29 = scmp.eq.s32.totalorder %s13, 1
    %p30 = por %p28, %p29
    %p31 = scmp.ne.s32.totalorder %s23, %s26
    %p32 = scmp.eq.s32.totalorder %s13, 0
    %p33 = por %p31, %p32
    %p34 = scmp.ne.s32.totalorder %s23, %s26
    %p35 = scmp.eq.s32.totalorder %s18, 1
    %p36 = por %p34, %p35
    %p37 = scmp.ne.s32.totalorder %s26, %s27
    %p38 = scmp.eq.s32.totalorder %s18, 0
    %p39 = por %p37, %p38
    %p40 = scmp.ne.s32.totalorder %s26, %s27
    %p41 = scmp.eq.s32.totalorder %s19, 1
    %p42 = por %p40, %p41
    %p44 = scmp.ne.s32.totalorder %s27, %s43
    %p45 = scmp.eq.s32.totalorder %s19, 0
    %p46 = por %p44, %p45
    %s48 = sadd.s32 %s47, 1
    %p51 = scmp.eq.s32.totalorder %s13, 1
    %p52 = scmp.ne.s32.totalorder %s47, %s49
    %p53 = scmp.eq.s32.totalorder %s13, 0
    %p54 = por %p52, %p53
    %p55 = scmp.ne.s32.totalorder %s47, %s49
    %p56 = scmp.eq.s32.totalorder %s18, 1
    %p57 = por %p55, %p56
    %p58 = scmp.ne.s32.totalorder %s49, %s50
    %p59 = scmp.eq.s32.totalorder %s18, 0
    %p60 = por %p58, %p59
    %p61 = scmp.ne.s32.totalorder %s49, %s50
    %p62 = scmp.eq.s32.totalorder %s19, 1
    %p63 = por %p61, %p62
    %p65 = scmp.ne.s32.totalorder %s50, %s64
    %p66 = scmp.eq.s32.totalorder %s19, 0
    %p67 = por %p65, %p66
    %s69 = sadd.s32 %s68, 1
    %p72 = scmp.eq.s32.totalorder %s13, 1
    %p73 = scmp.ne.s32.totalorder %s68, %s70
    %p74 = scmp.eq.s32.totalorder %s13, 0
    %p75 = por %p73, %p74
    %p76 = scmp.ne.s32.totalorder %s68, %s70
    %p77 = scmp.eq.s32.totalorder %s18, 1
    %p78 = por %p76, %p77
    %p79 = scmp.ne.s32.totalorder %s70, %s71
    %p80 = scmp.eq.s32.totalorder %s18, 0
    %p81 = por %p79, %p80
    %p82 = scmp.ne.s32.totalorder %s70, %s71
    %p83 = scmp.eq.s32.totalorder %s19, 1
    %p84 = por %p82, %p83
    %p86 = scmp.ne.s32.totalorder %s71, %s85
    %p87 = scmp.eq.s32.totalorder %s19, 0
    %p88 = por %p86, %p87
    %s90 = sadd.s32 %s89, 1
    %p93 = scmp.eq.s32.totalorder %s13, 1
    %p94 = scmp.ne.s32.totalorder %s89, %s91
    %p95 = scmp.eq.s32.totalorder %s13, 0
    %p96 = por %p94, %p95
    %p97 = scmp.ne.s32.totalorder %s89, %s91
    %p98 = scmp.eq.s32.totalorder %s18, 1
    %p99 = por %p97, %p98
    %p100 = scmp.ne.s32.totalorder %s91, %s92
    %p101 = scmp.eq.s32.totalorder %s18, 0
    %p102 = por %p100, %p101
    %p103 = scmp.ne.s32.totalorder %s91, %s92
    %p104 = scmp.eq.s32.totalorder %s19, 1
    %p105 = por %p103, %p104
    %p107 = scmp.ne.s32.totalorder %s92, %s106
    %p108 = scmp.eq.s32.totalorder %s19, 0
    %p109 = por %p107, %p108
    %s111 = sadd.s32 %s110, 1
    %p114 = scmp.eq.s32.totalorder %s13, 1
    %p115 = scmp.ne.s32.totalorder %s110, %s112
    %p116 = scmp.eq.s32.totalorder %s13, 0
    %p117 = por %p115, %p116
    %p118 = scmp.ne.s32.totalorder %s110, %s112
    %p119 = scmp.eq.s32.totalorder %s18, 1
    %p120 = por %p118, %p119
    %p121 = scmp.ne.s32.totalorder %s112, %s113
    %p122 = scmp.eq.s32.totalorder %s18, 0
    %p123 = por %p121, %p122
    %p124 = scmp.ne.s32.totalorder %s112, %s113
    %p125 = scmp.eq.s32.totalorder %s19, 1
    %p126 = por %p124, %p125
    %p128 = scmp.ne.s32.totalorder %s113, %s127
    %p129 = scmp.eq.s32.totalorder %s19, 0
    %p130 = por %p128, %p129
    %s132 = sadd.s32 %s131, 1
    %p135 = scmp.eq.s32.totalorder %s13, 1
    %p136 = scmp.ne.s32.totalorder %s131, %s133
    %p137 = scmp.eq.s32.totalorder %s13, 0
    %p138 = por %p136, %p137
    %p139 = scmp.ne.s32.totalorder %s131, %s133
    %p140 = scmp.eq.s32.totalorder %s18, 1
    %p141 = por %p139, %p140
    %p142 = scmp.ne.s32.totalorder %s133, %s134
    %p143 = scmp.eq.s32.totalorder %s18, 0
    %p144 = por %p142, %p143
    %p145 = scmp.ne.s32.totalorder %s133, %s134
    %p146 = scmp.eq.s32.totalorder %s19, 1
    %p147 = por %p145, %p146
    %p149 = scmp.ne.s32.totalorder %s134, %s148
    %p150 = scmp.eq.s32.totalorder %s19, 0
    %p151 = por %p149, %p150
    %s153 = sadd.s32 %s152, 1
    %p156 = scmp.eq.s32.totalorder %s13, 1
    %p157 = scmp.ne.s32.totalorder %s152, %s154
    %p158 = scmp.eq.s32.totalorder %s13, 0
    %p159 = por %p157, %p158
    %p160 = scmp.ne.s32.totalorder %s152, %s154
    %p161 = scmp.eq.s32.totalorder %s18, 1
    %p162 = por %p160, %p161
    %p163 = scmp.ne.s32.totalorder %s154, %s155
    %p164 = scmp.eq.s32.totalorder %s18, 0
    %p165 = por %p163, %p164
    %p166 = scmp.ne.s32.totalorder %s154, %s155
    %p167 = scmp.eq.s32.totalorder %s19, 1
    %p168 = por %p166, %p167
    %p170 = scmp.ne.s32.totalorder %s155, %s169
    %p171 = scmp.eq.s32.totalorder %s19, 0
    %p172 = por %p170, %p171
    %s173 = ssub.s32 %s13, %s20
    %p174 = scmp.eq.s32.totalorder %s173, 0
    %s176 = sadd.s32 %s175, 1
    %s177 = scalar_select %p174, %s175, %s176
    %p180 = pneg %p174
    %p181 = scmp.eq.s32.totalorder %s13, 1
    %p182 = por %p180, %p181
    %p183 = scmp.ne.s32.totalorder %s175, %s178
    %p184 = scmp.eq.s32.totalorder %s13, 0
    %p185 = por %p183, %p184
    %p186 = scmp.ne.s32.totalorder %s175, %s178
    %p187 = scmp.eq.s32.totalorder %s18, 1
    %p188 = por %p186, %p187
    %p189 = scmp.ne.s32.totalorder %s178, %s179
    %p190 = scmp.eq.s32.totalorder %s18, 0
    %p191 = por %p189, %p190
    %p192 = scmp.ne.s32.totalorder %s178, %s179
    %p193 = scmp.eq.s32.totalorder %s19, 1
    %p194 = por %p192, %p193
    %p196 = scmp.ne.s32.totalorder %s179, %s195
    %p197 = scmp.eq.s32.totalorder %s19, 0
    %p198 = por %p196, %p197
    %p199 = scmp.le.s32.totalorder 1, %s13
    %p200 = scmp.lt.s32.totalorder %s13, 3
    %p201 = pnand %p199, %p200
    %p202 = pneg %p201
    // Predicated region
    $region9: #{dino_classifier_forward.8} parent=5 // pred_check
      _
    $region10: #{dino_classifier_forward.8} parent=5 // pred_check_branch
      %204 = sbr.rel (%p201) target = $region12
    $region11: #{dino_classifier_forward.8} parent=5 // pred_region
      %s205 = ssub.s32 %s13, 1
      // Predicated region
      $region13: #{dino_classifier_forward.8} parent=11 // pred_check
        %p206 = pneg %p60
      $region14: #{dino_classifier_forward.8} parent=11 // pred_check_branch
        %208 = sbr.rel (%p206) target = $region16
      $region15: #{dino_classifier_forward.8} parent=11 // pred_region
        _
      $region16: #{dino_classifier_forward.8} parent=11 // pred_fallthru
        _
      // Predicated region
      $region17: #{dino_classifier_forward.8} parent=11 // pred_check
        %p209 = pneg %p81
      $region18: #{dino_classifier_forward.8} parent=11 // pred_check_branch
        %211 = sbr.rel (%p209) target = $region20
      $region19: #{dino_classifier_forward.8} parent=11 // pred_region
        _
      $region20: #{dino_classifier_forward.8} parent=11 // pred_fallthru
        _
      // Predicated region
      $region21: #{dino_classifier_forward.8} parent=11 // pred_check
        %p212 = pneg %p102
      $region22: #{dino_classifier_forward.8} parent=11 // pred_check_branch
        %214 = sbr.rel (%p212) target = $region24
      $region23: #{dino_classifier_forward.8} parent=11 // pred_region
        _
      $region24: #{dino_classifier_forward.8} parent=11 // pred_fallthru
        _
      // Predicated region
      $region25: #{dino_classifier_forward.8} parent=11 // pred_check
        %p215 = pneg %p123
      $region26: #{dino_classifier_forward.8} parent=11 // pred_check_branch
        %217 = sbr.rel (%p215) target = $region28
      $region27: #{dino_classifier_forward.8} parent=11 // pred_region
        _
      $region28: #{dino_classifier_forward.8} parent=11 // pred_fallthru
        _
      // Predicated region
      $region29: #{dino_classifier_forward.8} parent=11 // pred_check
        %p218 = pneg %p144
      $region30: #{dino_classifier_forward.8} parent=11 // pred_check_branch
        %220 = sbr.rel (%p218) target = $region32
      $region31: #{dino_classifier_forward.8} parent=11 // pred_region
        _
      $region32: #{dino_classifier_forward.8} parent=11 // pred_fallthru
        _
      // Predicated region
      $region33: #{dino_classifier_forward.8} parent=11 // pred_check
        %p221 = pneg %p165
      $region34: #{dino_classifier_forward.8} parent=11 // pred_check_branch
        %223 = sbr.rel (%p221) target = $region36
      $region35: #{dino_classifier_forward.8} parent=11 // pred_region
        _
      $region36: #{dino_classifier_forward.8} parent=11 // pred_fallthru
        _
    $region12: #{dino_classifier_forward.8} parent=5 // pred_fallthru
      _
    %p224 = scmp.lt.s32.totalorder %s13, 2
    // Predicated region
    $region37: #{dino_classifier_forward.8} parent=5 // pred_check
      %p225 = pneg %p224
    $region38: #{dino_classifier_forward.8} parent=5 // pred_check_branch
      %227 = sbr.rel (%p225) target = $region40
    $region39: #{dino_classifier_forward.8} parent=5 // pred_region
      // Predicated region
      $region41: #{dino_classifier_forward.8} parent=39 // pred_check
        %p228 = pneg %p33
      $region42: #{dino_classifier_forward.8} parent=39 // pred_check_branch
        %230 = sbr.rel (%p228) target = $region44
      $region43: #{dino_classifier_forward.8} parent=39 // pred_region
        %p231 = scmp.lt.s32.totalorder %s13, 1
        %s232 = scalar_select %p231, %s13, 1
        %s233 = smul.addr %s232, 6
        %s234 = smul.addr %s233, 4
        %s235 = scalar_lea.vmem %s0, %s234
      $region44: #{dino_classifier_forward.8} parent=39 // pred_fallthru
        _
    $region40: #{dino_classifier_forward.8} parent=5 // pred_fallthru
      _
    %p236 = scmp.le.s32.totalorder 1, %s13
    %p237 = scmp.lt.s32.totalorder %s13, 3
    %p238 = pnand %p236, %p237
    %p239 = pneg %p238
    // Predicated region
    $region45: #{dino_classifier_forward.8} parent=5 // pred_check
      _
    $region46: #{dino_classifier_forward.8} parent=5 // pred_check_branch
      %241 = sbr.rel (%p238) target = $region48
    $region47: #{dino_classifier_forward.8} parent=5 // pred_region
      %s242 = ssub.s32 %s13, 1
      %p243 = scmp.lt.s32.totalorder %s18, 1
      %s244 = scalar_select %p243, %s18, 1
      %s245 = smul.addr %s244, 6
      %s246 = smul.addr %s245, 4
      %s247 = scalar_lea.vmem %s0, %s246
      %p248 = pneg %p39
      %p249 = pneg %p36
      %p250 = pneg %p60
      %p251 = pneg %p57
      %p252 = pneg %p81
      %p253 = pneg %p78
      %p254 = pneg %p102
      %p255 = pneg %p99
      %p256 = pneg %p123
      %p257 = pneg %p120
      %p258 = pneg %p144
      %p259 = pneg %p141
      %p260 = pneg %p165
      %p261 = pneg %p162
      %p262 = pneg %p191
      %p263 = pneg %p188
      %p264 = scmp.lt.s32.totalorder %s18, 1
      %s265 = scalar_select %p264, %s18, 1
      %s266 = smul.addr %s265, 6
      %s267 = smul.addr %s266, 4
      %s268 = scalar_lea.vmem %s7, %s267
      %p269 = scmp.lt.s32.totalorder %s18, 1
      %s270 = scalar_select %p269, %s18, 1
      %s271 = smul.addr %s270, 6
      %s272 = smul.addr %s271, 4
      %s273 = scalar_lea.vmem %s0, %s272
      %p274 = scmp.lt.s32.totalorder %s18, 1
      %s275 = scalar_select %p274, %s18, 1
      %s276 = smul.addr %s275, 6
      %s277 = smul.addr %s276, 4
      %s278 = scalar_lea.vmem %s7, %s277
      %v279 = vld [vmem:[%s273] sm:$0xff]
      %v280 = vld [vmem:[%s273 + $0x8] sm:$0xff]
      %v281 = vld [vmem:[%s273 + $0x10] sm:$0x11]
      %v282 = vunpack.c.l.bf16 %v279
      %v283 = vunpack.c.h.bf16 %v279
      %v284 = vunpack.c.l.bf16 %v280
      %v285 = vunpack.c.h.bf16 %v280
      %v286 = vunpack.c.l.bf16 %v281
      %v287 = vunpack.c.h.bf16 %v281
      %v288 = vld [vmem:[%s1] sm:$0x3]
      %v289 = vld [vmem:[%s2] sm:$0x3]
      %v290 = vadd.f32 %v282, %v283
      %291 = vadd.xlane.f32.xlu0 %v290
      %v292 = vpop.xlane.xlu0 %291
      %v293 = vadd.f32 %v284, %v285
      %294 = vadd.xlane.f32.xlu0 %v293
      %v295 = vpop.xlane.xlu0 %294
      %vm296 = vcmask 1040384
      %v297 = vsel %vm296, %v286, 0.0
      %v298 = vsel %vm296, %v287, 0.0
      %v299 = vadd.f32 %v297, %v298
      %300 = vadd.xlane.f32.xlu0 %v299
      %v301 = vpop.xlane.xlu0 %300
      %v302 = vrcp.pop 256.0
      %v303 = vmul.f32 %v292, %v302
      %v304 = vmul.f32 %v295, %v302
      %v305 = vmul.f32 %v301, %v302
      %v306 = vsub.f32 %v282, %v303
      %v307 = vsub.f32 %v283, %v303
      %v308 = vsub.f32 %v284, %v304
      %v309 = vsub.f32 %v285, %v304
      %v310 = vsub.f32 %v286, %v305
      %v311 = vsub.f32 %v287, %v305
      %v312 = vmul.f32 %v306, %v306
      %v313 = vmul.f32 %v307, %v307
      %v314 = vmul.f32 %v308, %v308
      %v315 = vmul.f32 %v309, %v309
      %v316 = vmul.f32 %v310, %v310
      %v317 = vmul.f32 %v311, %v311
      %v318 = vadd.f32 %v312, %v313
      %319 = vadd.xlane.f32.xlu0 %v318
      %v320 = vpop.xlane.xlu0 %319
      %v321 = vadd.f32 %v314, %v315
      %322 = vadd.xlane.f32.xlu0 %v321
      %v323 = vpop.xlane.xlu0 %322
      %v324 = vsel %vm296, %v316, 0.0
      %v325 = vsel %vm296, %v317, 0.0
      %v326 = vadd.f32 %v324, %v325
      %327 = vadd.xlane.f32.xlu0 %v326
      %v328 = vpop.xlane.xlu0 %327
      %v329 = vmul.f32 %v320, %v302
      %v330 = vmul.f32 %v323, %v302
      %v331 = vmul.f32 %v328, %v302
      %v332 = vadd.f32 %v329, 1e-06
      %v333 = vadd.f32 %v330, 1e-06
      %v334 = vadd.f32 %v331, 1e-06
      %v335 = vrsqrt.pop %v332
      %v336 = vrsqrt.pop %v333
      %v337 = vrsqrt.pop %v334
      %v338 = vmul.f32 %v306, %v335
      %v339 = vmul.f32 %v307, %v335
      %v340 = vmul.f32 %v308, %v336
      %v341 = vmul.f32 %v309, %v336
      %v342 = vmul.f32 %v310, %v337
      %v343 = vmul.f32 %v311, %v337
      %v345 = vlaneseq
      %v346 = vshrl.u32 %v345, 7
      %v347 = vsub.s32 0, %v346
      %v348 = vrot.slane %v288, %v347
      %v349 = vlaneseq
      %v350 = vshrl.u32 %v349, 7
      %v351 = vsub.s32 1, %v350
      %v352 = vrot.slane %v288, %v351
      %v355 = vmul.f32 %v338, %v348
      %v356 = vmul.f32 %v339, %v352
      %v357 = vmul.f32 %v340, %v348
      %v358 = vmul.f32 %v341, %v352
      %v359 = vmul.f32 %v342, %v348
      %v360 = vmul.f32 %v343, %v352
      %v362 = vlaneseq
      %v363 = vshrl.u32 %v362, 7
      %v364 = vsub.s32 0, %v363
      %v365 = vrot.slane %v289, %v364
      %v366 = vlaneseq
      %v367 = vshrl.u32 %v366, 7
      %v368 = vsub.s32 1, %v367
      %v369 = vrot.slane %v289, %v368
      %v372 = vadd.f32 %v355, %v365
      %v373 = vadd.f32 %v356, %v369
      %v374 = vadd.f32 %v357, %v365
      %v375 = vadd.f32 %v358, %v369
      %v376 = vadd.f32 %v359, %v365
      %v377 = vadd.f32 %v360, %v369
      %v378 = vpack.c.bf16 %v374, %v372
      %v379 = vpack.c.bf16 %v375, %v373
      %v380 = vpack.c.bf16 %v376, %v376
      %v381 = vpack.c.bf16 %v377, %v377
      %v382 = vld [vmem:[%s3] sm:$0xff]
      %v383 = vld [vmem:[%s3 + $0x8] sm:$0xff]
      %v384 = vld [vmem:[%s3 + $0x10] sm:$0xff]
      %v385 = vld [vmem:[%s3 + $0x18] sm:$0xff]
      %v386 = vld [vmem:[%s3 + $0x20] sm:$0xff]
      %v387 = vld [vmem:[%s3 + $0x28] sm:$0xff]
      %v388 = vld [vmem:[%s3 + $0x30] sm:$0xff]
      %v389 = vld [vmem:[%s3 + $0x38] sm:$0xff]
      %v390 = vld [vmem:[%s3 + $0x40] sm:$0xff]
      %v391 = vld [vmem:[%s3 + $0x48] sm:$0xff]
      %v392 = vld [vmem:[%s3 + $0x50] sm:$0xff]
      %v393 = vld [vmem:[%s3 + $0x58] sm:$0xff]
      %v394 = vld [vmem:[%s3 + $0x60] sm:$0xff]
      %v395 = vld [vmem:[%s3 + $0x68] sm:$0xff]
      %v396 = vld [vmem:[%s3 + $0x70] sm:$0xff]
      %v397 = vld [vmem:[%s3 + $0x78] sm:$0xff]
      %v398 = vld [vmem:[%s3 + $0x80] sm:$0xff]
      %v399 = vld [vmem:[%s3 + $0x88] sm:$0xff]
      %v400 = vld [vmem:[%s3 + $0x90] sm:$0xff]
      %v401 = vld [vmem:[%s3 + $0x98] sm:$0xff]
      %v402 = vld [vmem:[%s3 + $0xa0] sm:$0xff]
      %v403 = vld [vmem:[%s3 + $0xa8] sm:$0xff]
      %v404 = vld [vmem:[%s3 + $0xb0] sm:$0xff]
      %v405 = vld [vmem:[%s3 + $0xb8] sm:$0xff]
      %v406 = vld [vmem:[%s3 + $0xc0] sm:$0xff]
      %v407 = vld [vmem:[%s3 + $0xc8] sm:$0xff]
      %v408 = vld [vmem:[%s3 + $0xd0] sm:$0xff]
      %v409 = vld [vmem:[%s3 + $0xd8] sm:$0xff]
      %v410 = vld [vmem:[%s3 + $0xe0] sm:$0xff]
      %v411 = vld [vmem:[%s3 + $0xe8] sm:$0xff]
      %v412 = vld [vmem:[%s3 + $0xf0] sm:$0xff]
      %v413 = vld [vmem:[%s3 + $0xf8] sm:$0xff]
      %v414 = vld [vmem:[%s3 + $0x100] sm:$0xff]
      %v415 = vld [vmem:[%s3 + $0x108] sm:$0xff]
      %v416 = vld [vmem:[%s3 + $0x110] sm:$0xff]
      %v417 = vld [vmem:[%s3 + $0x118] sm:$0xff]
      %v418 = vld [vmem:[%s3 + $0x120] sm:$0xff]
      %v419 = vld [vmem:[%s3 + $0x128] sm:$0xff]
      %v420 = vld [vmem:[%s3 + $0x130] sm:$0xff]
      %v421 = vld [vmem:[%s3 + $0x138] sm:$0xff]
      %v422 = vld [vmem:[%s3 + $0x140] sm:$0xff]
      %v423 = vld [vmem:[%s3 + $0x148] sm:$0xff]
      %v424 = vld [vmem:[%s3 + $0x150] sm:$0xff]
      %v425 = vld [vmem:[%s3 + $0x158] sm:$0xff]
      %v426 = vld [vmem:[%s3 + $0x160] sm:$0xff]
      %v427 = vld [vmem:[%s3 + $0x168] sm:$0xff]
      %v428 = vld [vmem:[%s3 + $0x170] sm:$0xff]
      %v429 = vld [vmem:[%s3 + $0x178] sm:$0xff]
      %v430 = vld [vmem:[%s3 + $0x180] sm:$0xff]
      %v431 = vld [vmem:[%s3 + $0x188] sm:$0xff]
      %v432 = vld [vmem:[%s3 + $0x190] sm:$0xff]
      %v433 = vld [vmem:[%s3 + $0x198] sm:$0xff]
      %v434 = vld [vmem:[%s3 + $0x1a0] sm:$0xff]
      %v435 = vld [vmem:[%s3 + $0x1a8] sm:$0xff]
      %v436 = vld [vmem:[%s3 + $0x1b0] sm:$0xff]
      %v437 = vld [vmem:[%s3 + $0x1b8] sm:$0xff]
      %v438 = vld [vmem:[%s3 + $0x1c0] sm:$0xff]
      %v439 = vld [vmem:[%s3 + $0x1c8] sm:$0xff]
      %v440 = vld [vmem:[%s3 + $0x1d0] sm:$0xff]
      %v441 = vld [vmem:[%s3 + $0x1d8] sm:$0xff]
      %v442 = vld [vmem:[%s3 + $0x1e0] sm:$0xff]
      %v443 = vld [vmem:[%s3 + $0x1e8] sm:$0xff]
      %v444 = vld [vmem:[%s3 + $0x1f0] sm:$0xff]
      %v445 = vld [vmem:[%s3 + $0x1f8] sm:$0xff]
      %v446 = vld [vmem:[%s4] sm:$0xf]
      %v448 = vlaneseq
      %v449 = vshrl.u32 %v448, 7
      %v450 = vsub.s32 0, %v449
      %v451 = vrot.slane %v446, %v450
      %v452 = vlaneseq
      %v453 = vshrl.u32 %v452, 7
      %v454 = vsub.s32 1, %v453
      %v455 = vrot.slane %v446, %v454
      %v456 = vlaneseq
      %v457 = vshrl.u32 %v456, 7
      %v458 = vsub.s32 2, %v457
      %v459 = vrot.slane %v446, %v458
      %v460 = vlaneseq
      %v461 = vshrl.u32 %v460, 7
      %v462 = vsub.s32 3, %v461
      %v463 = vrot.slane %v446, %v462
      %v532 = vunpack.c.l.b16 %v382
      %v533 = vunpack.c.h.b16 %v382
      %v534 = vunpack.c.l.b16 %v383
      %v535 = vunpack.c.h.b16 %v383
      %v536 = vunpack.c.l.b16 %v384
      %v537 = vunpack.c.h.b16 %v384
      %v538 = vunpack.c.l.b16 %v385
      %v539 = vunpack.c.h.b16 %v385
      %v540 = vunpack.c.l.b16 %v386
      %v541 = vunpack.c.h.b16 %v386
      %v542 = vunpack.c.l.b16 %v387
      %v543 = vunpack.c.h.b16 %v387
      %v544 = vunpack.c.l.b16 %v388
      %v545 = vunpack.c.h.b16 %v388
      %v546 = vunpack.c.l.b16 %v389
      %v547 = vunpack.c.h.b16 %v389
      %v548 = vunpack.c.l.b16 %v390
      %v549 = vunpack.c.h.b16 %v390
      %v550 = vunpack.c.l.b16 %v391
      %v551 = vunpack.c.h.b16 %v391
      %v552 = vunpack.c.l.b16 %v392
      %v553 = vunpack.c.h.b16 %v392
      %v554 = vunpack.c.l.b16 %v393
      %v555 = vunpack.c.h.b16 %v393
      %v556 = vunpack.c.l.b16 %v394
      %v557 = vunpack.c.h.b16 %v394
      %v558 = vunpack.c.l.b16 %v395
      %v559 = vunpack.c.h.b16 %v395
      %v560 = vunpack.c.l.b16 %v396
      %v561 = vunpack.c.h.b16 %v396
      %v562 = vunpack.c.l.b16 %v397
      %v563 = vunpack.c.h.b16 %v397
      %v564 = vunpack.c.l.b16 %v398
      %v565 = vunpack.c.h.b16 %v398
      %v566 = vunpack.c.l.b16 %v399
      %v567 = vunpack.c.h.b16 %v399
      %v568 = vunpack.c.l.b16 %v400
      %v569 = vunpack.c.h.b16 %v400
      %v570 = vunpack.c.l.b16 %v401
      %v571 = vunpack.c.h.b16 %v401
      %v572 = vunpack.c.l.b16 %v402
      %v573 = vunpack.c.h.b16 %v402
      %v574 = vunpack.c.l.b16 %v403
      %v575 = vunpack.c.h.b16 %v403
      %v576 = vunpack.c.l.b16 %v404
      %v577 = vunpack.c.h.b16 %v404
      %v578 = vunpack.c.l.b16 %v405
      %v579 = vunpack.c.h.b16 %v405
      %v580 = vunpack.c.l.b16 %v406
      %v581 = vunpack.c.h.b16 %v406
      %v582 = vunpack.c.l.b16 %v407
      %v583 = vunpack.c.h.b16 %v407
      %v584 = vunpack.c.l.b16 %v408
      %v585 = vunpack.c.h.b16 %v408
      %v586 = vunpack.c.l.b16 %v409
      %v587 = vunpack.c.h.b16 %v409
      %v588 = vunpack.c.l.b16 %v410
      %v589 = vunpack.c.h.b16 %v410
      %v590 = vunpack.c.l.b16 %v411
      %v591 = vunpack.c.h.b16 %v411
      %v592 = vunpack.c.l.b16 %v412
      %v593 = vunpack.c.h.b16 %v412
      %v594 = vunpack.c.l.b16 %v413
      %v595 = vunpack.c.h.b16 %v413
      %v596 = vunpack.c.l.b16 %v414
      %v597 = vunpack.c.h.b16 %v414
      %v598 = vunpack.c.l.b16 %v415
      %v599 = vunpack.c.h.b16 %v415
      %v600 = vunpack.c.l.b16 %v416
      %v601 = vunpack.c.h.b16 %v416
      %v602 = vunpack.c.l.b16 %v417
      %v603 = vunpack.c.h.b16 %v417
      %v604 = vunpack.c.l.b16 %v418
      %v605 = vunpack.c.h.b16 %v418
      %v606 = vunpack.c.l.b16 %v419
      %v607 = vunpack.c.h.b16 %v419
      %v608 = vunpack.c.l.b16 %v420
      %v609 = vunpack.c.h.b16 %v420
      %v610 = vunpack.c.l.b16 %v421
      %v611 = vunpack.c.h.b16 %v421
      %v612 = vunpack.c.l.b16 %v422
      %v613 = vunpack.c.h.b16 %v422
      %v614 = vunpack.c.l.b16 %v423
      %v615 = vunpack.c.h.b16 %v423
      %v616 = vunpack.c.l.b16 %v424
      %v617 = vunpack.c.h.b16 %v424
      %v618 = vunpack.c.l.b16 %v425
      %v619 = vunpack.c.h.b16 %v425
      %v620 = vunpack.c.l.b16 %v426
      %v621 = vunpack.c.h.b16 %v426
      %v622 = vunpack.c.l.b16 %v427
      %v623 = vunpack.c.h.b16 %v427
      %v624 = vunpack.c.l.b16 %v428
      %v625 = vunpack.c.h.b16 %v428
      %v626 = vunpack.c.l.b16 %v429
      %v627 = vunpack.c.h.b16 %v429
      %v628 = vunpack.c.l.b16 %v430
      %v629 = vunpack.c.h.b16 %v430
      %v630 = vunpack.c.l.b16 %v431
      %v631 = vunpack.c.h.b16 %v431
      %v632 = vunpack.c.l.b16 %v432
      %v633 = vunpack.c.h.b16 %v432
      %v634 = vunpack.c.l.b16 %v433
      %v635 = vunpack.c.h.b16 %v433
      %v636 = vunpack.c.l.b16 %v434
      %v637 = vunpack.c.h.b16 %v434
      %v638 = vunpack.c.l.b16 %v435
      %v639 = vunpack.c.h.b16 %v435
      %v640 = vunpack.c.l.b16 %v436
      %v641 = vunpack.c.h.b16 %v436
      %v642 = vunpack.c.l.b16 %v437
      %v643 = vunpack.c.h.b16 %v437
      %v644 = vunpack.c.l.b16 %v438
      %v645 = vunpack.c.h.b16 %v438
      %v646 = vunpack.c.l.b16 %v439
      %v647 = vunpack.c.h.b16 %v439
      %v648 = vunpack.c.l.b16 %v440
      %v649 = vunpack.c.h.b16 %v440
      %v650 = vunpack.c.l.b16 %v441
      %v651 = vunpack.c.h.b16 %v441
      %v652 = vunpack.c.l.b16 %v442
      %v653 = vunpack.c.h.b16 %v442
      %v654 = vunpack.c.l.b16 %v443
      %v655 = vunpack.c.h.b16 %v443
      %v656 = vunpack.c.l.b16 %v444
      %v657 = vunpack.c.h.b16 %v444
      %v658 = vunpack.c.l.b16 %v445
      %v659 = vunpack.c.h.b16 %v445
      %v660 = vpack.c.b16 %v536, %v532
      %v661 = vpack.c.b16 %v537, %v533
      %v662 = vpack.c.b16 %v538, %v534
      %v663 = vpack.c.b16 %v539, %v535
      %v664 = vpack.c.b16 %v544, %v540
      %v665 = vpack.c.b16 %v545, %v541
      %v666 = vpack.c.b16 %v546, %v542
      %v667 = vpack.c.b16 %v547, %v543
      %v668 = vpack.c.b16 %v552, %v548
      %v669 = vpack.c.b16 %v553, %v549
      %v670 = vpack.c.b16 %v554, %v550
      %v671 = vpack.c.b16 %v555, %v551
      %v672 = vpack.c.b16 %v560, %v556
      %v673 = vpack.c.b16 %v561, %v557
      %v674 = vpack.c.b16 %v562, %v558
      %v675 = vpack.c.b16 %v563, %v559
      %v676 = vpack.c.b16 %v568, %v564
      %v677 = vpack.c.b16 %v569, %v565
      %v678 = vpack.c.b16 %v570, %v566
      %v679 = vpack.c.b16 %v571, %v567
      %v680 = vpack.c.b16 %v576, %v572
      %v681 = vpack.c.b16 %v577, %v573
      %v682 = vpack.c.b16 %v578, %v574
      %v683 = vpack.c.b16 %v579, %v575
      %v684 = vpack.c.b16 %v584, %v580
      %v685 = vpack.c.b16 %v585, %v581
      %v686 = vpack.c.b16 %v586, %v582
      %v687 = vpack.c.b16 %v587, %v583
      %v688 = vpack.c.b16 %v592, %v588
      %v689 = vpack.c.b16 %v593, %v589
      %v690 = vpack.c.b16 %v594, %v590
      %v691 = vpack.c.b16 %v595, %v591
      %v692 = vpack.c.b16 %v600, %v596
      %v693 = vpack.c.b16 %v601, %v597
      %v694 = vpack.c.b16 %v602, %v598
      %v695 = vpack.c.b16 %v603, %v599
      %v696 = vpack.c.b16 %v608, %v604
      %v697 = vpack.c.b16 %v609, %v605
      %v698 = vpack.c.b16 %v610, %v606
      %v699 = vpack.c.b16 %v611, %v607
      %v700 = vpack.c.b16 %v616, %v612
      %v701 = vpack.c.b16 %v617, %v613
      %v702 = vpack.c.b16 %v618, %v614
      %v703 = vpack.c.b16 %v619, %v615
      %v704 = vpack.c.b16 %v624, %v620
      %v705 = vpack.c.b16 %v625, %v621
      %v706 = vpack.c.b16 %v626, %v622
      %v707 = vpack.c.b16 %v627, %v623
      %v708 = vpack.c.b16 %v632, %v628
      %v709 = vpack.c.b16 %v633, %v629
      %v710 = vpack.c.b16 %v634, %v630
      %v711 = vpack.c.b16 %v635, %v631
      %v712 = vpack.c.b16 %v640, %v636
      %v713 = vpack.c.b16 %v641, %v637
      %v714 = vpack.c.b16 %v642, %v638
      %v715 = vpack.c.b16 %v643, %v639
      %v716 = vpack.c.b16 %v648, %v644
      %v717 = vpack.c.b16 %v649, %v645
      %v718 = vpack.c.b16 %v650, %v646
      %v719 = vpack.c.b16 %v651, %v647
      %v720 = vpack.c.b16 %v656, %v652
      %v721 = vpack.c.b16 %v657, %v653
      %v722 = vpack.c.b16 %v658, %v654
      %v723 = vpack.c.b16 %v659, %v655
      %788 = vmatprep.subr.bf16.mxu0 %v661
      %789 = vmatpush1.bf16.msra.mxu0 %v660
      %790 = vmatprep.subr.bf16.mxu0 %v665
      %791 = vmatpush1.bf16.msra.mxu0 %v664
      %792 = vmatprep.subr.bf16.mxu0 %v669
      %793 = vmatpush1.bf16.msra.mxu0 %v668
      %794 = vmatprep.subr.bf16.mxu0 %v673
      %795 = vmatpush1.bf16.msra.mxu0 %v672
      %796 = vmatprep.subr.bf16.mxu0 %v677
      %797 = vmatpush1.bf16.msra.mxu0 %v676
      %798 = vmatprep.subr.bf16.mxu0 %v681
      %799 = vmatpush1.bf16.msra.mxu0 %v680
      %800 = vmatprep.subr.bf16.mxu0 %v685
      %801 = vmatpush1.bf16.msra.mxu0 %v684
      %802 = vmatprep.subr.bf16.mxu0 %v689
      %803 = vmatpush1.bf16.msra.mxu0 %v688
      %804 = vmatprep.subr.bf16.mxu0 %v693
      %805 = vmatpush1.bf16.msra.mxu0 %v692
      %806 = vmatprep.subr.bf16.mxu0 %v697
      %807 = vmatpush1.bf16.msra.mxu0 %v696
      %808 = vmatprep.subr.bf16.mxu0 %v701
      %809 = vmatpush1.bf16.msra.mxu0 %v700
      %810 = vmatprep.subr.bf16.mxu0 %v705
      %811 = vmatpush1.bf16.msra.mxu0 %v704
      %812 = vmatprep.subr.bf16.mxu0 %v709
      %813 = vmatpush1.bf16.msra.mxu0 %v708
      %814 = vmatprep.subr.bf16.mxu0 %v713
      %815 = vmatpush1.bf16.msra.mxu0 %v712
      %816 = vmatprep.subr.bf16.mxu0 %v717
      %817 = vmatpush1.bf16.msra.mxu0 %v716
      %818 = vmatprep.subr.bf16.mxu0 %v721
      %819 = vmatpush1.bf16.msra.mxu0 %v720
      %820 = vmatprep.mubr.bf16.mxu0 %v379
      %821 = vmatmul.mubr.bf16.gmra.mrb[0].mxu0 %v378
      %v822 = vpop.f32.mrb[0].mxu0
      %v823 = vadd.f32 %v451, %v822
      %v824 = vpop.f32.mrb[0].mxu0
      %v825 = vadd.f32 %v455, %v824
      %v826 = vpop.f32.mrb[0].mxu0
      %v827 = vadd.f32 %v451, %v826
      %v828 = vpop.f32.mrb[0].mxu0
      %v829 = vadd.f32 %v455, %v828
      %830 = vmatprep.mubr.bf16.mxu0 %v381
      %831 = vmatmul.mubr.bf16.gmra.mrb[0].mxu0 %v380
      %v832 = vpop.f32.mrb[0].mxu0
      %v833 = vadd.f32 %v451, %v832
      %v834 = vpop.f32.mrb[0].mxu0
      %v835 = vadd.f32 %v455, %v834
      %v836 = vpop.f32.mrb[0].mxu0
      %v837 = vpop.f32.mrb[0].mxu0
      %838 = vdwg.mxu0
      %839 = vmatprep.subr.bf16.mxu0 %v663
      %840 = vmatpush1.bf16.msra.mxu0 %v662
      %841 = vmatprep.subr.bf16.mxu0 %v667
      %842 = vmatpush1.bf16.msra.mxu0 %v666
      %843 = vmatprep.subr.bf16.mxu0 %v671
      %844 = vmatpush1.bf16.msra.mxu0 %v670
      %845 = vmatprep.subr.bf16.mxu0 %v675
      %846 = vmatpush1.bf16.msra.mxu0 %v674
      %847 = vmatprep.subr.bf16.mxu0 %v679
      %848 = vmatpush1.bf16.msra.mxu0 %v678
      %849 = vmatprep.subr.bf16.mxu0 %v683
      %850 = vmatpush1.bf16.msra.mxu0 %v682
      %851 = vmatprep.subr.bf16.mxu0 %v687
      %852 = vmatpush1.bf16.msra.mxu0 %v686
      %853 = vmatprep.subr.bf16.mxu0 %v691
      %854 = vmatpush1.bf16.msra.mxu0 %v690
      %855 = vmatprep.subr.bf16.mxu0 %v695
      %856 = vmatpush1.bf16.msra.mxu0 %v694
      %857 = vmatprep.subr.bf16.mxu0 %v699
      %858 = vmatpush1.bf16.msra.mxu0 %v698
      %859 = vmatprep.subr.bf16.mxu0 %v703
      %860 = vmatpush1.bf16.msra.mxu0 %v702
      %861 = vmatprep.subr.bf16.mxu0 %v707
      %862 = vmatpush1.bf16.msra.mxu0 %v706
      %863 = vmatprep.subr.bf16.mxu0 %v711
      %864 = vmatpush1.bf16.msra.mxu0 %v710
      %865 = vmatprep.subr.bf16.mxu0 %v715
      %866 = vmatpush1.bf16.msra.mxu0 %v714
      %867 = vmatprep.subr.bf16.mxu0 %v719
      %868 = vmatpush1.bf16.msra.mxu0 %v718
      %869 = vmatprep.subr.bf16.mxu0 %v723
      %870 = vmatpush1.bf16.msra.mxu0 %v722
      %871 = vmatprep.mubr.bf16.mxu0 %v379
      %872 = vmatmul.mubr.bf16.gmra.mrb[0].mxu0 %v378
      %v873 = vpop.f32.mrb[0].mxu0
      %v874 = vadd.f32 %v459, %v873
      %v875 = vpop.f32.mrb[0].mxu0
      %v876 = vadd.f32 %v463, %v875
      %v877 = vpop.f32.mrb[0].mxu0
      %v878 = vadd.f32 %v459, %v877
      %v879 = vpop.f32.mrb[0].mxu0
      %v880 = vadd.f32 %v463, %v879
      %881 = vmatprep.mubr.bf16.mxu0 %v381
      %882 = vmatmul.mubr.bf16.gmra.mrb[0].mxu0 %v380
      %v883 = vpop.f32.mrb[0].mxu0
      %v884 = vadd.f32 %v459, %v883
      %v885 = vpop.f32.mrb[0].mxu0
      %v886 = vadd.f32 %v463, %v885
      %v887 = vpop.f32.mrb[0].mxu0
      %v888 = vpop.f32.mrb[0].mxu0
      %889 = vdwg.mxu0
      %v890 = vmul.f32 %v823, %v823
      %v891 = vmul.f32 %v825, %v825
      %v892 = vmul.f32 %v874, %v874
      %v893 = vmul.f32 %v876, %v876
      %v894 = vmul.f32 %v827, %v827
      %v895 = vmul.f32 %v829, %v829
      %v896 = vmul.f32 %v878, %v878
      %v897 = vmul.f32 %v880, %v880
      %v898 = vmul.f32 %v833, %v833
      %v899 = vmul.f32 %v835, %v835
      %v900 = vmul.f32 %v884, %v884
      %v901 = vmul.f32 %v886, %v886
      %v902 = vmul.f32 %v823, %v890
      %v903 = vmul.f32 %v825, %v891
      %v904 = vmul.f32 %v874, %v892
      %v905 = vmul.f32 %v876, %v893
      %v906 = vmul.f32 %v827, %v894
      %v907 = vmul.f32 %v829, %v895
      %v908 = vmul.f32 %v878, %v896
      %v909 = vmul.f32 %v880, %v897
      %v910 = vmul.f32 %v833, %v898
      %v911 = vmul.f32 %v835, %v899
      %v912 = vmul.f32 %v884, %v900
      %v913 = vmul.f32 %v886, %v901
      %v914 = vmul.f32 %v902, 0.044715
      %v915 = vmul.f32 %v903, 0.044715
      %v916 = vmul.f32 %v904, 0.044715
      %v917 = vmul.f32 %v905, 0.044715
      %v918 = vmul.f32 %v906, 0.044715
      %v919 = vmul.f32 %v907, 0.044715
      %v920 = vmul.f32 %v908, 0.044715
      %v921 = vmul.f32 %v909, 0.044715
      %v922 = vmul.f32 %v910, 0.044715
      %v923 = vmul.f32 %v911, 0.044715
      %v924 = vmul.f32 %v912, 0.044715
      %v925 = vmul.f32 %v913, 0.044715
      %v926 = vadd.f32 %v823, %v914
      %v927 = vadd.f32 %v825, %v915
      %v928 = vadd.f32 %v874, %v916
      %v929 = vadd.f32 %v876, %v917
      %v930 = vadd.f32 %v827, %v918
      %v931 = vadd.f32 %v829, %v919
      %v932 = vadd.f32 %v878, %v920
      %v933 = vadd.f32 %v880, %v921
      %v934 = vadd.f32 %v833, %v922
      %v935 = vadd.f32 %v835, %v923
      %v936 = vadd.f32 %v884, %v924
      %v937 = vadd.f32 %v886, %v925
      %v938 = vmul.f32 %v926, 0.7978846
      %v939 = vmul.f32 %v927, 0.7978846
      %v940 = vmul.f32 %v928, 0.7978846
      %v941 = vmul.f32 %v929, 0.7978846
      %v942 = vmul.f32 %v930, 0.7978846
      %v943 = vmul.f32 %v931, 0.7978846
      %v944 = vmul.f32 %v932, 0.7978846
      %v945 = vmul.f32 %v933, 0.7978846
      %v946 = vmul.f32 %v934, 0.7978846
      %v947 = vmul.f32 %v935, 0.7978846
      %v948 = vmul.f32 %v936, 0.7978846
      %v949 = vmul.f32 %v937, 0.7978846
      %v950 = vtanh.pop %v938
      %v951 = vtanh.pop %v939
      %v952 = vtanh.pop %v940
      %v953 = vtanh.pop %v941
      %v954 = vtanh.pop %v942
      %v955 = vtanh.pop %v943
      %v956 = vtanh.pop %v944
      %v957 = vtanh.pop %v945
      %v958 = vtanh.pop %v946
      %v959 = vtanh.pop %v947
      %v960 = vtanh.pop %v948
      %v961 = vtanh.pop %v949
      %v962 = vadd.f32 %v950, 1.0
      %v963 = vadd.f32 %v951, 1.0
      %v964 = vadd.f32 %v952, 1.0
      %v965 = vadd.f32 %v953, 1.0
      %v966 = vadd.f32 %v954, 1.0
      %v967 = vadd.f32 %v955, 1.0
      %v968 = vadd.f32 %v956, 1.0
      %v969 = vadd.f32 %v957, 1.0
      %v970 = vadd.f32 %v958, 1.0
      %v971 = vadd.f32 %v959, 1.0
      %v972 = vadd.f32 %v960, 1.0
      %v973 = vadd.f32 %v961, 1.0
      %v974 = vmul.f32 %v962, 0.5
      %v975 = vmul.f32 %v963, 0.5
      %v976 = vmul.f32 %v964, 0.5
      %v977 = vmul.f32 %v965, 0.5
      %v978 = vmul.f32 %v966, 0.5
      %v979 = vmul.f32 %v967, 0.5
      %v980 = vmul.f32 %v968, 0.5
      %v981 = vmul.f32 %v969, 0.5
      %v982 = vmul.f32 %v970, 0.5
      %v983 = vmul.f32 %v971, 0.5
      %v984 = vmul.f32 %v972, 0.5
      %v985 = vmul.f32 %v973, 0.5
      %v986 = vmul.f32 %v823, %v974
      %v987 = vmul.f32 %v825, %v975
      %v988 = vmul.f32 %v874, %v976
      %v989 = vmul.f32 %v876, %v977
      %v990 = vmul.f32 %v827, %v978
      %v991 = vmul.f32 %v829, %v979
      %v992 = vmul.f32 %v878, %v980
      %v993 = vmul.f32 %v880, %v981
      %v994 = vmul.f32 %v833, %v982
      %v995 = vmul.f32 %v835, %v983
      %v996 = vmul.f32 %v884, %v984
      %v997 = vmul.f32 %v886, %v985
      %v998 = vpack.c.bf16 %v990, %v986
      %v999 = vpack.c.bf16 %v991, %v987
      %v1000 = vpack.c.bf16 %v992, %v988
      %v1001 = vpack.c.bf16 %v993, %v989
      %v1002 = vpack.c.bf16 %v994, %v994
      %v1003 = vpack.c.bf16 %v995, %v995
      %v1004 = vpack.c.bf16 %v996, %v996
      %v1005 = vpack.c.bf16 %v997, %v997
      %v1006 = vld [vmem:[%s5] sm:$0xff]
      %v1007 = vld [vmem:[%s5 + $0x8] sm:$0xff]
      %v1008 = vld [vmem:[%s5 + $0x10] sm:$0xff]
      %v1009 = vld [vmem:[%s5 + $0x18] sm:$0xff]
      %v1010 = vld [vmem:[%s5 + $0x20] sm:$0xff]
      %v1011 = vld [vmem:[%s5 + $0x28] sm:$0xff]
      %v1012 = vld [vmem:[%s5 + $0x30] sm:$0xff]
      %v1013 = vld [vmem:[%s5 + $0x38] sm:$0xff]
      %v1014 = vld [vmem:[%s5 + $0x40] sm:$0xff]
      %v1015 = vld [vmem:[%s5 + $0x48] sm:$0xff]
      %v1016 = vld [vmem:[%s5 + $0x50] sm:$0xff]
      %v1017 = vld [vmem:[%s5 + $0x58] sm:$0xff]
      %v1018 = vld [vmem:[%s5 + $0x60] sm:$0xff]
      %v1019 = vld [vmem:[%s5 + $0x68] sm:$0xff]
      %v1020 = vld [vmem:[%s5 + $0x70] sm:$0xff]
      %v1021 = vld [vmem:[%s5 + $0x78] sm:$0xff]
      %v1022 = vld [vmem:[%s5 + $0x80] sm:$0xff]
      %v1023 = vld [vmem:[%s5 + $0x88] sm:$0xff]
      %v1024 = vld [vmem:[%s5 + $0x90] sm:$0xff]
      %v1025 = vld [vmem:[%s5 + $0x98] sm:$0xff]
      %v1026 = vld [vmem:[%s5 + $0xa0] sm:$0xff]
      %v1027 = vld [vmem:[%s5 + $0xa8] sm:$0xff]
      %v1028 = vld [vmem:[%s5 + $0xb0] sm:$0xff]
      %v1029 = vld [vmem:[%s5 + $0xb8] sm:$0xff]
      %v1030 = vld [vmem:[%s5 + $0xc0] sm:$0xff]
      %v1031 = vld [vmem:[%s5 + $0xc8] sm:$0xff]
      %v1032 = vld [vmem:[%s5 + $0xd0] sm:$0xff]
      %v1033 = vld [vmem:[%s5 + $0xd8] sm:$0xff]
      %v1034 = vld [vmem:[%s5 + $0xe0] sm:$0xff]
      %v1035 = vld [vmem:[%s5 + $0xe8] sm:$0xff]
      %v1036 = vld [vmem:[%s5 + $0xf0] sm:$0xff]
      %v1037 = vld [vmem:[%s5 + $0xf8] sm:$0xff]
      %v1038 = vld [vmem:[%s5 + $0x100] sm:$0xff]
      %v1039 = vld [vmem:[%s5 + $0x108] sm:$0xff]
      %v1040 = vld [vmem:[%s5 + $0x110] sm:$0xff]
      %v1041 = vld [vmem:[%s5 + $0x118] sm:$0xff]
      %v1042 = vld [vmem:[%s5 + $0x120] sm:$0xff]
      %v1043 = vld [vmem:[%s5 + $0x128] sm:$0xff]
      %v1044 = vld [vmem:[%s5 + $0x130] sm:$0xff]
      %v1045 = vld [vmem:[%s5 + $0x138] sm:$0xff]
      %v1046 = vld [vmem:[%s5 + $0x140] sm:$0xff]
      %v1047 = vld [vmem:[%s5 + $0x148] sm:$0xff]
      %v1048 = vld [vmem:[%s5 + $0x150] sm:$0xff]
      %v1049 = vld [vmem:[%s5 + $0x158] sm:$0xff]
      %v1050 = vld [vmem:[%s5 + $0x160] sm:$0xff]
      %v1051 = vld [vmem:[%s5 + $0x168] sm:$0xff]
      %v1052 = vld [vmem:[%s5 + $0x170] sm:$0xff]
      %v1053 = vld [vmem:[%s5 + $0x178] sm:$0xff]
      %v1054 = vld [vmem:[%s5 + $0x180] sm:$0xff]
      %v1055 = vld [vmem:[%s5 + $0x188] sm:$0xff]
      %v1056 = vld [vmem:[%s5 + $0x190] sm:$0xff]
      %v1057 = vld [vmem:[%s5 + $0x198] sm:$0xff]
      %v1058 = vld [vmem:[%s5 + $0x1a0] sm:$0xff]
      %v1059 = vld [vmem:[%s5 + $0x1a8] sm:$0xff]
      %v1060 = vld [vmem:[%s5 + $0x1b0] sm:$0xff]
      %v1061 = vld [vmem:[%s5 + $0x1b8] sm:$0xff]
      %v1062 = vld [vmem:[%s5 + $0x1c0] sm:$0xff]
      %v1063 = vld [vmem:[%s5 + $0x1c8] sm:$0xff]
      %v1064 = vld [vmem:[%s5 + $0x1d0] sm:$0xff]
      %v1065 = vld [vmem:[%s5 + $0x1d8] sm:$0xff]
      %v1066 = vld [vmem:[%s5 + $0x1e0] sm:$0xff]
      %v1067 = vld [vmem:[%s5 + $0x1e8] sm:$0xff]
      %v1068 = vld [vmem:[%s5 + $0x1f0] sm:$0xff]
      %v1069 = vld [vmem:[%s5 + $0x1f8] sm:$0xff]
      %v1070 = vld [vmem:[%s6] sm:$0x3]
      %v1072 = vlaneseq
      %v1073 = vshrl.u32 %v1072, 7
      %v1074 = vsub.s32 0, %v1073
      %v1075 = vrot.slane %v1070, %v1074
      %v1076 = vlaneseq
      %v1077 = vshrl.u32 %v1076, 7
      %v1078 = vsub.s32 1, %v1077
      %v1079 = vrot.slane %v1070, %v1078
      %v1146 = vunpack.c.l.b16 %v1006
      %v1147 = vunpack.c.h.b16 %v1006
      %v1148 = vunpack.c.l.b16 %v1007
      %v1149 = vunpack.c.h.b16 %v1007
      %v1150 = vunpack.c.l.b16 %v1008
      %v1151 = vunpack.c.h.b16 %v1008
      %v1152 = vunpack.c.l.b16 %v1009
      %v1153 = vunpack.c.h.b16 %v1009
      %v1154 = vunpack.c.l.b16 %v1010
      %v1155 = vunpack.c.h.b16 %v1010
      %v1156 = vunpack.c.l.b16 %v1011
      %v1157 = vunpack.c.h.b16 %v1011
      %v1158 = vunpack.c.l.b16 %v1012
      %v1159 = vunpack.c.h.b16 %v1012
      %v1160 = vunpack.c.l.b16 %v1013
      %v1161 = vunpack.c.h.b16 %v1013
      %v1162 = vunpack.c.l.b16 %v1014
      %v1163 = vunpack.c.h.b16 %v1014
      %v1164 = vunpack.c.l.b16 %v1015
      %v1165 = vunpack.c.h.b16 %v1015
      %v1166 = vunpack.c.l.b16 %v1016
      %v1167 = vunpack.c.h.b16 %v1016
      %v1168 = vunpack.c.l.b16 %v1017
      %v1169 = vunpack.c.h.b16 %v1017
      %v1170 = vunpack.c.l.b16 %v1018
      %v1171 = vunpack.c.h.b16 %v1018
      %v1172 = vunpack.c.l.b16 %v1019
      %v1173 = vunpack.c.h.b16 %v1019
      %v1174 = vunpack.c.l.b16 %v1020
      %v1175 = vunpack.c.h.b16 %v1020
      %v1176 = vunpack.c.l.b16 %v1021
      %v1177 = vunpack.c.h.b16 %v1021
      %v1178 = vunpack.c.l.b16 %v1022
      %v1179 = vunpack.c.h.b16 %v1022
      %v1180 = vunpack.c.l.b16 %v1023
      %v1181 = vunpack.c.h.b16 %v1023
      %v1182 = vunpack.c.l.b16 %v1024
      %v1183 = vunpack.c.h.b16 %v1024
      %v1184 = vunpack.c.l.b16 %v1025
      %v1185 = vunpack.c.h.b16 %v1025
      %v1186 = vunpack.c.l.b16 %v1026
      %v1187 = vunpack.c.h.b16 %v1026
      %v1188 = vunpack.c.l.b16 %v1027
      %v1189 = vunpack.c.h.b16 %v1027
      %v1190 = vunpack.c.l.b16 %v1028
      %v1191 = vunpack.c.h.b16 %v1028
      %v1192 = vunpack.c.l.b16 %v1029
      %v1193 = vunpack.c.h.b16 %v1029
      %v1194 = vunpack.c.l.b16 %v1030
      %v1195 = vunpack.c.h.b16 %v1030
      %v1196 = vunpack.c.l.b16 %v1031
      %v1197 = vunpack.c.h.b16 %v1031
      %v1198 = vunpack.c.l.b16 %v1032
      %v1199 = vunpack.c.h.b16 %v1032
      %v1200 = vunpack.c.l.b16 %v1033
      %v1201 = vunpack.c.h.b16 %v1033
      %v1202 = vunpack.c.l.b16 %v1034
      %v1203 = vunpack.c.h.b16 %v1034
      %v1204 = vunpack.c.l.b16 %v1035
      %v1205 = vunpack.c.h.b16 %v1035
      %v1206 = vunpack.c.l.b16 %v1036
      %v1207 = vunpack.c.h.b16 %v1036
      %v1208 = vunpack.c.l.b16 %v1037
      %v1209 = vunpack.c.h.b16 %v1037
      %v1210 = vunpack.c.l.b16 %v1038
      %v1211 = vunpack.c.h.b16 %v1038
      %v1212 = vunpack.c.l.b16 %v1039
      %v1213 = vunpack.c.h.b16 %v1039
      %v1214 = vunpack.c.l.b16 %v1040
      %v1215 = vunpack.c.h.b16 %v1040
      %v1216 = vunpack.c.l.b16 %v1041
      %v1217 = vunpack.c.h.b16 %v1041
      %v1218 = vunpack.c.l.b16 %v1042
      %v1219 = vunpack.c.h.b16 %v1042
      %v1220 = vunpack.c.l.b16 %v1043
      %v1221 = vunpack.c.h.b16 %v1043
      %v1222 = vunpack.c.l.b16 %v1044
      %v1223 = vunpack.c.h.b16 %v1044
      %v1224 = vunpack.c.l.b16 %v1045
      %v1225 = vunpack.c.h.b16 %v1045
      %v1226 = vunpack.c.l.b16 %v1046
      %v1227 = vunpack.c.h.b16 %v1046
      %v1228 = vunpack.c.l.b16 %v1047
      %v1229 = vunpack.c.h.b16 %v1047
      %v1230 = vunpack.c.l.b16 %v1048
      %v1231 = vunpack.c.h.b16 %v1048
      %v1232 = vunpack.c.l.b16 %v1049
      %v1233 = vunpack.c.h.b16 %v1049
      %v1234 = vunpack.c.l.b16 %v1050
      %v1235 = vunpack.c.h.b16 %v1050
      %v1236 = vunpack.c.l.b16 %v1051
      %v1237 = vunpack.c.h.b16 %v1051
      %v1238 = vunpack.c.l.b16 %v1052
      %v1239 = vunpack.c.h.b16 %v1052
      %v1240 = vunpack.c.l.b16 %v1053
      %v1241 = vunpack.c.h.b16 %v1053
      %v1242 = vunpack.c.l.b16 %v1054
      %v1243 = vunpack.c.h.b16 %v1054
      %v1244 = vunpack.c.l.b16 %v1055
      %v1245 = vunpack.c.h.b16 %v1055
      %v1246 = vunpack.c.l.b16 %v1056
      %v1247 = vunpack.c.h.b16 %v1056
      %v1248 = vunpack.c.l.b16 %v1057
      %v1249 = vunpack.c.h.b16 %v1057
      %v1250 = vunpack.c.l.b16 %v1058
      %v1251 = vunpack.c.h.b16 %v1058
      %v1252 = vunpack.c.l.b16 %v1059
      %v1253 = vunpack.c.h.b16 %v1059
      %v1254 = vunpack.c.l.b16 %v1060
      %v1255 = vunpack.c.h.b16 %v1060
      %v1256 = vunpack.c.l.b16 %v1061
      %v1257 = vunpack.c.h.b16 %v1061
      %v1258 = vunpack.c.l.b16 %v1062
      %v1259 = vunpack.c.h.b16 %v1062
      %v1260 = vunpack.c.l.b16 %v1063
      %v1261 = vunpack.c.h.b16 %v1063
      %v1262 = vunpack.c.l.b16 %v1064
      %v1263 = vunpack.c.h.b16 %v1064
      %v1264 = vunpack.c.l.b16 %v1065
      %v1265 = vunpack.c.h.b16 %v1065
      %v1266 = vunpack.c.l.b16 %v1066
      %v1267 = vunpack.c.h.b16 %v1066
      %v1268 = vunpack.c.l.b16 %v1067
      %v1269 = vunpack.c.h.b16 %v1067
      %v1270 = vunpack.c.l.b16 %v1068
      %v1271 = vunpack.c.h.b16 %v1068
      %v1272 = vunpack.c.l.b16 %v1069
      %v1273 = vunpack.c.h.b16 %v1069
      %v1274 = vpack.c.b16 %v1148, %v1146
      %v1275 = vpack.c.b16 %v1149, %v1147
      %v1276 = vpack.c.b16 %v1152, %v1150
      %v1277 = vpack.c.b16 %v1153, %v1151
      %v1278 = vpack.c.b16 %v1156, %v1154
      %v1279 = vpack.c.b16 %v1157, %v1155
      %v1280 = vpack.c.b16 %v1160, %v1158
      %v1281 = vpack.c.b16 %v1161, %v1159
      %v1282 = vpack.c.b16 %v1164, %v1162
      %v1283 = vpack.c.b16 %v1165, %v1163
      %v1284 = vpack.c.b16 %v1168, %v1166
      %v1285 = vpack.c.b16 %v1169, %v1167
      %v1286 = vpack.c.b16 %v1172, %v1170
      %v1287 = vpack.c.b16 %v1173, %v1171
      %v1288 = vpack.c.b16 %v1176, %v1174
      %v1289 = vpack.c.b16 %v1177, %v1175
      %v1290 = vpack.c.b16 %v1180, %v1178
      %v1291 = vpack.c.b16 %v1181, %v1179
      %v1292 = vpack.c.b16 %v1184, %v1182
      %v1293 = vpack.c.b16 %v1185, %v1183
      %v1294 = vpack.c.b16 %v1188, %v1186
      %v1295 = vpack.c.b16 %v1189, %v1187
      %v1296 = vpack.c.b16 %v1192, %v1190
      %v1297 = vpack.c.b16 %v1193, %v1191
      %v1298 = vpack.c.b16 %v1196, %v1194
      %v1299 = vpack.c.b16 %v1197, %v1195
      %v1300 = vpack.c.b16 %v1200, %v1198
      %v1301 = vpack.c.b16 %v1201, %v1199
      %v1302 = vpack.c.b16 %v1204, %v1202
      %v1303 = vpack.c.b16 %v1205, %v1203
      %v1304 = vpack.c.b16 %v1208, %v1206
      %v1305 = vpack.c.b16 %v1209, %v1207
      %v1306 = vpack.c.b16 %v1212, %v1210
      %v1307 = vpack.c.b16 %v1213, %v1211
      %v1308 = vpack.c.b16 %v1216, %v1214
      %v1309 = vpack.c.b16 %v1217, %v1215
      %v1310 = vpack.c.b16 %v1220, %v1218
      %v1311 = vpack.c.b16 %v1221, %v1219
      %v1312 = vpack.c.b16 %v1224, %v1222
      %v1313 = vpack.c.b16 %v1225, %v1223
      %v1314 = vpack.c.b16 %v1228, %v1226
      %v1315 = vpack.c.b16 %v1229, %v1227
      %v1316 = vpack.c.b16 %v1232, %v1230
      %v1317 = vpack.c.b16 %v1233, %v1231
      %v1318 = vpack.c.b16 %v1236, %v1234
      %v1319 = vpack.c.b16 %v1237, %v1235
      %v1320 = vpack.c.b16 %v1240, %v1238
      %v1321 = vpack.c.b16 %v1241, %v1239
      %v1322 = vpack.c.b16 %v1244, %v1242
      %v1323 = vpack.c.b16 %v1245, %v1243
      %v1324 = vpack.c.b16 %v1248, %v1246
      %v1325 = vpack.c.b16 %v1249, %v1247
      %v1326 = vpack.c.b16 %v1252, %v1250
      %v1327 = vpack.c.b16 %v1253, %v1251
      %v1328 = vpack.c.b16 %v1256, %v1254
      %v1329 = vpack.c.b16 %v1257, %v1255
      %v1330 = vpack.c.b16 %v1260, %v1258
      %v1331 = vpack.c.b16 %v1261, %v1259
      %v1332 = vpack.c.b16 %v1264, %v1262
      %v1333 = vpack.c.b16 %v1265, %v1263
      %v1334 = vpack.c.b16 %v1268, %v1266
      %v1335 = vpack.c.b16 %v1269, %v1267
      %v1336 = vpack.c.b16 %v1272, %v1270
      %v1337 = vpack.c.b16 %v1273, %v1271
      %1402 = vmatprep.subr.bf16.mxu0 %v1275
      %1403 = vmatpush1.bf16.msra.mxu0 %v1274
      %1404 = vmatprep.subr.bf16.mxu0 %v1277
      %1405 = vmatpush1.bf16.msra.mxu0 %v1276
      %1406 = vmatprep.subr.bf16.mxu0 %v1279
      %1407 = vmatpush1.bf16.msra.mxu0 %v1278
      %1408 = vmatprep.subr.bf16.mxu0 %v1281
      %1409 = vmatpush1.bf16.msra.mxu0 %v1280
      %1410 = vmatprep.subr.bf16.mxu0 %v1283
      %1411 = vmatpush1.bf16.msra.mxu0 %v1282
      %1412 = vmatprep.subr.bf16.mxu0 %v1285
      %1413 = vmatpush1.bf16.msra.mxu0 %v1284
      %1414 = vmatprep.subr.bf16.mxu0 %v1287
      %1415 = vmatpush1.bf16.msra.mxu0 %v1286
      %1416 = vmatprep.subr.bf16.mxu0 %v1289
      %1417 = vmatpush1.bf16.msra.mxu0 %v1288
      %1418 = vmatprep.subr.bf16.mxu0 %v1291
      %1419 = vmatpush1.bf16.msra.mxu0 %v1290
      %1420 = vmatprep.subr.bf16.mxu0 %v1293
      %1421 = vmatpush1.bf16.msra.mxu0 %v1292
      %1422 = vmatprep.subr.bf16.mxu0 %v1295
      %1423 = vmatpush1.bf16.msra.mxu0 %v1294
      %1424 = vmatprep.subr.bf16.mxu0 %v1297
      %1425 = vmatpush1.bf16.msra.mxu0 %v1296
      %1426 = vmatprep.subr.bf16.mxu0 %v1299
      %1427 = vmatpush1.bf16.msra.mxu0 %v1298
      %1428 = vmatprep.subr.bf16.mxu0 %v1301
      %1429 = vmatpush1.bf16.msra.mxu0 %v1300
      %1430 = vmatprep.subr.bf16.mxu0 %v1303
      %1431 = vmatpush1.bf16.msra.mxu0 %v1302
      %1432 = vmatprep.subr.bf16.mxu0 %v1305
      %1433 = vmatpush1.bf16.msra.mxu0 %v1304
      %1434 = vmatprep.mubr.bf16.mxu0 %v999
      %1435 = vmatmul.mubr.bf16.gmra.mrb[0].mxu0 %v998
      %v1436 = vpop.f32.mrb[0].mxu0
      %v1437 = vadd.f32 %v1075, %v1436
      %v1438 = vpop.f32.mrb[0].mxu0
      %v1439 = vadd.f32 %v1079, %v1438
      %v1440 = vpop.f32.mrb[0].mxu0
      %v1441 = vadd.f32 %v1075, %v1440
      %v1442 = vpop.f32.mrb[0].mxu0
      %v1443 = vadd.f32 %v1079, %v1442
      %1444 = vmatprep.mubr.bf16.mxu0 %v1003
      %1445 = vmatmul.mubr.bf16.gmra.mrb[0].mxu0 %v1002
      %v1446 = vpop.f32.mrb[0].mxu0
      %v1447 = vadd.f32 %v1075, %v1446
      %v1448 = vpop.f32.mrb[0].mxu0
      %v1449 = vadd.f32 %v1079, %v1448
      %v1450 = vpop.f32.mrb[0].mxu0
      %v1451 = vpop.f32.mrb[0].mxu0
      %1452 = vdwg.mxu0
      %1453 = vmatprep.subr.bf16.mxu0 %v1307
      %1454 = vmatpush1.bf16.msra.mxu0 %v1306
      %1455 = vmatprep.subr.bf16.mxu0 %v1309
      %1456 = vmatpush1.bf16.msra.mxu0 %v1308
      %1457 = vmatprep.subr.bf16.mxu0 %v1311
      %1458 = vmatpush1.bf16.msra.mxu0 %v1310
      %1459 = vmatprep.subr.bf16.mxu0 %v1313
      %1460 = vmatpush1.bf16.msra.mxu0 %v1312
      %1461 = vmatprep.subr.bf16.mxu0 %v1315
      %1462 = vmatpush1.bf16.msra.mxu0 %v1314
      %1463 = vmatprep.subr.bf16.mxu0 %v1317
      %1464 = vmatpush1.bf16.msra.mxu0 %v1316
      %1465 = vmatprep.subr.bf16.mxu0 %v1319
      %1466 = vmatpush1.bf16.msra.mxu0 %v1318
      %1467 = vmatprep.subr.bf16.mxu0 %v1321
      %1468 = vmatpush1.bf16.msra.mxu0 %v1320
      %1469 = vmatprep.subr.bf16.mxu0 %v1323
      %1470 = vmatpush1.bf16.msra.mxu0 %v1322
      %1471 = vmatprep.subr.bf16.mxu0 %v1325
      %1472 = vmatpush1.bf16.msra.mxu0 %v1324
      %1473 = vmatprep.subr.bf16.mxu0 %v1327
      %1474 = vmatpush1.bf16.msra.mxu0 %v1326
      %1475 = vmatprep.subr.bf16.mxu0 %v1329
      %1476 = vmatpush1.bf16.msra.mxu0 %v1328
      %1477 = vmatprep.subr.bf16.mxu0 %v1331
      %1478 = vmatpush1.bf16.msra.mxu0 %v1330
      %1479 = vmatprep.subr.bf16.mxu0 %v1333
      %1480 = vmatpush1.bf16.msra.mxu0 %v1332
      %1481 = vmatprep.subr.bf16.mxu0 %v1335
      %1482 = vmatpush1.bf16.msra.mxu0 %v1334
      %1483 = vmatprep.subr.bf16.mxu0 %v1337
      %1484 = vmatpush1.bf16.msra.mxu0 %v1336
      %1485 = vmatprep.mubr.bf16.mxu0 %v1001
      %1486 = vmatmul.mubr.bf16.gmra.mrb[0].mxu0 %v1000
      %v1487 = vpop.f32.mrb[0].mxu0
      %v1488 = vadd.f32 %v1437, %v1487
      %v1489 = vpop.f32.mrb[0].mxu0
      %v1490 = vadd.f32 %v1439, %v1489
      %v1491 = vpop.f32.mrb[0].mxu0
      %v1492 = vadd.f32 %v1441, %v1491
      %v1493 = vpop.f32.mrb[0].mxu0
      %v1494 = vadd.f32 %v1443, %v1493
      %1495 = vmatprep.mubr.bf16.mxu0 %v1005
      %1496 = vmatmul.mubr.bf16.gmra.mrb[0].mxu0 %v1004
      %v1497 = vpop.f32.mrb[0].mxu0
      %v1498 = vadd.f32 %v1447, %v1497
      %v1499 = vpop.f32.mrb[0].mxu0
      %v1500 = vadd.f32 %v1449, %v1499
      %v1501 = vpop.f32.mrb[0].mxu0
      %v1502 = vpop.f32.mrb[0].mxu0
      %1503 = vdwg.mxu0
      %v1504 = vadd.f32 %v282, %v1488
      %v1505 = vadd.f32 %v283, %v1490
      %v1506 = vadd.f32 %v284, %v1492
      %v1507 = vadd.f32 %v285, %v1494
      %v1508 = vadd.f32 %v286, %v1498
      %v1509 = vadd.f32 %v287, %v1500
      %v1510 = vpack.c.bf16 %v1506, %v1504
      %v1511 = vpack.c.bf16 %v1507, %v1505
      %v1512 = vpack.c.bf16 %v1508, %v1508
      %v1513 = vpack.c.bf16 %v1509, %v1509
      %v1518 = vunpack.c.l.b16 %v1510
      %v1519 = vunpack.c.l.b16 %v1511
      %v1520 = vunpack.c.h.b16 %v1510
      %v1521 = vunpack.c.h.b16 %v1511
      %v1522 = vunpack.c.l.b16 %v1512
      %v1523 = vunpack.c.l.b16 %v1513
      %v1524 = vpack.c.b16 %v1519, %v1518
      %v1525 = vpack.c.b16 %v1521, %v1520
      %v1526 = vpack.c.b16 %v1523, %v1522
      %1530 = vst [vmem:[%s278] sm:$0xff] %v1524
      %1531 = vst [vmem:[%s278 + $0x8] sm:$0xff] %v1525
      %vm1532 = vcmask 1040384
      %vm1533 = vsmask.f32 256
      %vm1534 = vmand %vm1532, %vm1533
      %vm1535 = vcmask 1044484
      %vm1536 = vsmask.f32 4352
      %vm1537 = vmand %vm1535, %vm1536
      %vm1538 = vmor %vm1537, %vm1534
      %v1539 = vld [vmem:[%s278 + $0x10] sm:$0x11]
      %v1540 = vsel %vm1538, %v1526, %v1539
      %1541 = vst [vmem:[%s278 + $0x10] sm:$0x11] %v1540
      %p1542 = scmp.lt.s32.totalorder %s18, 1
      %s1543 = scalar_select %p1542, %s18, 1
      %s1544 = smul.addr %s1543, 6
      %s1545 = smul.addr %s1544, 4
      %s1546 = scalar_lea.vmem %s7, %s1545
      // Predicated region
      $region49: #{dino_classifier_forward.8} parent=47 // pred_check
        %p1547 = pneg %p188
      $region50: #{dino_classifier_forward.8} parent=47 // pred_check_branch
        %1549 = sbr.rel (%p1547) target = $region52
      $region51: #{dino_classifier_forward.8} parent=47 // pred_region
        _
      $region52: #{dino_classifier_forward.8} parent=47 // pred_fallthru
        _
    $region48: #{dino_classifier_forward.8} parent=5 // pred_fallthru
      _
    %p1550 = scmp.le.s32.totalorder 2, %s13
    // Predicated region
    $region53: #{dino_classifier_forward.8} parent=5 // pred_check
      %p1551 = pneg %p1550
    $region54: #{dino_classifier_forward.8} parent=5 // pred_check_branch
      %1553 = sbr.rel (%p1551) target = $region56
    $region55: #{dino_classifier_forward.8} parent=5 // pred_region
      %s1554 = ssub.s32 %s13, 2
      // Predicated region
      $region57: #{dino_classifier_forward.8} parent=55 // pred_check
        %p1555 = pneg %p194
      $region58: #{dino_classifier_forward.8} parent=55 // pred_check_branch
        %1557 = sbr.rel (%p1555) target = $region60
      $region59: #{dino_classifier_forward.8} parent=55 // pred_region
        %p1558 = scmp.lt.s32.totalorder %s19, 1
        %s1559 = scalar_select %p1558, %s19, 1
        %s1560 = smul.addr %s1559, 6
        %s1561 = smul.addr %s1560, 4
        %s1562 = scalar_lea.vmem %s7, %s1561
      $region60: #{dino_classifier_forward.8} parent=55 // pred_fallthru
        _
    $region56: #{dino_classifier_forward.8} parent=5 // pred_fallthru
      _
  $region6: #{dino_classifier_forward.8} parent=0 // loop_footer
    %s17 = sadd.s32 1, %s13
  $region7: #{dino_classifier_forward.8} parent=0 // loop_footer_branch
    %12 = sbr.rel target = $region3
  $region8: #{dino_classifier_forward.8} parent=0 // loop_exit
    _

// kernel: dino_classifier_forward.7
$region0: #{dino_classifier_forward.7}
  #allocation0 [shape = 'u32[]', space=smem, size = 0x4, offset = 0x4, fixed_abs, tag = 'smem constant byte address 0x4 - core index']
  #allocation1 [shape = 'u32[144,128]{1,0:T(1,128)}', space=vmem, size = 0x12000, scoped, tag = 'internal scratch']
  %s0 = inlined_call_operand.vmem [shape: bf16[2,17,256], index: 0, kind: input, shape index: {}]
  %s1 = inlined_call_operand.vmem [shape: f32[1,256], index: 1, kind: input, shape index: {}]
  %s2 = inlined_call_operand.vmem [shape: f32[1,256], index: 2, kind: input, shape index: {}]
  %s3 = inlined_call_operand.vmem [shape: bf16[256,768], index: 3, kind: input, shape index: {}]
  %s4 = inlined_call_operand.vmem [shape: f32[1,768], index: 4, kind: input, shape index: {}]
  %s5 = inlined_call_operand.vmem [shape: bf16[256,256], index: 5, kind: input, shape index: {}]
  %s6 = inlined_call_operand.vmem [shape: f32[1,256], index: 6, kind: input, shape index: {}]
  %s7 = inlined_call_operand.vmem [shape: bf16[2,17,256], index: 7, kind: output, shape index: {}]
  %s8 = sld [smem:[#allocation0]]
  $region61: #{dino_classifier_forward.7} parent=0
    _
  %s10 = ssub.s32 1, %s8
  %s11 = scalar_select 0, %s10, %s8
  loop: start=0, step=1, limit=4
  $region2: #{dino_classifier_forward.7} parent=0 // loop_pre_header
    _
  $region3: #{dino_classifier_forward.7} parent=0 // loop_header
    %s13 = sphi 0, %s17
    %p14 = scmp.ge.s32.totalorder %s13, 4
    %s23 = sphi 0, %s25
    %s26 = sphi 0, %s23
    %s27 = sphi 0, %s26
    %s43 = sphi 0, %s27
    %s47 = sphi 0, %s47
    %s49 = sphi 0, %s47
    %s50 = sphi 0, %s49
    %s64 = sphi 0, %s50
    %s68 = sphi 0, %s68
    %s70 = sphi 0, %s68
    %s71 = sphi 0, %s70
    %s85 = sphi 0, %s71
    %s89 = sphi 0, %s89
    %s91 = sphi 0, %s89
    %s92 = sphi 0, %s91
    %s106 = sphi 0, %s92
    %s110 = sphi 0, %s110
    %s112 = sphi 0, %s110
    %s113 = sphi 0, %s112
    %s127 = sphi 0, %s113
    %s131 = sphi 0, %s131
    %s133 = sphi 0, %s131
    %s134 = sphi 0, %s133
    %s148 = sphi 0, %s134
    %s152 = sphi 0, %s152
    %s154 = sphi 0, %s152
    %s155 = sphi 0, %s154
    %s169 = sphi 0, %s155
    %s175 = sphi 0, %s177
    %s178 = sphi 0, %s175
    %s179 = sphi 0, %s178
    %s195 = sphi 0, %s179
  $region4: #{dino_classifier_forward.7} parent=0 // loop_header_branch
    %16 = sbr.rel (%p14) target = $region8
  $region5: #{dino_classifier_forward.7} parent=0 // loop_body
    %s18 = ssub.s32 %s13, 1
    %s19 = ssub.s32 %s13, 2
    %s20 = sadd.s32 %s13, 1
    %s21 = ssub.s32 %s13, %s20
    %p22 = scmp.eq.s32.totalorder %s21, 0
    %s24 = sadd.s32 %s23, 1
    %s25 = scalar_select %p22, %s23, %s24
    %p28 = pneg %p22
    %p29 = scmp.eq.s32.totalorder %s13, 1
    %p30 = por %p28, %p29
    %p31 = scmp.ne.s32.totalorder %s23, %s26
    %p32 = scmp.eq.s32.totalorder %s13, 0
    %p33 = por %p31, %p32
    %p34 = scmp.ne.s32.totalorder %s23, %s26
    %p35 = scmp.eq.s32.totalorder %s18, 1
    %p36 = por %p34, %p35
    %p37 = scmp.ne.s32.totalorder %s26, %s27
    %p38 = scmp.eq.s32.totalorder %s18, 0
    %p39 = por %p37, %p38
    %p40 = scmp.ne.s32.totalorder %s26, %s27
    %p41 = scmp.eq.s32.totalorder %s19, 1
    %p42 = por %p40, %p41
    %p44 = scmp.ne.s32.totalorder %s27, %s43
    %p45 = scmp.eq.s32.totalorder %s19, 0
    %p46 = por %p44, %p45
    %s48 = sadd.s32 %s47, 1
    %p51 = scmp.eq.s32.totalorder %s13, 1
    %p52 = scmp.ne.s32.totalorder %s47, %s49
    %p53 = scmp.eq.s32.totalorder %s13, 0
    %p54 = por %p52, %p53
    %p55 = scmp.ne.s32.totalorder %s47, %s49
    %p56 = scmp.eq.s32.totalorder %s18, 1
    %p57 = por %p55, %p56
    %p58 = scmp.ne.s32.totalorder %s49, %s50
    %p59 = scmp.eq.s32.totalorder %s18, 0
    %p60 = por %p58, %p59
    %p61 = scmp.ne.s32.totalorder %s49, %s50
    %p62 = scmp.eq.s32.totalorder %s19, 1
    %p63 = por %p61, %p62
    %p65 = scmp.ne.s32.totalorder %s50, %s64
    %p66 = scmp.eq.s32.totalorder %s19, 0
    %p67 = por %p65, %p66
    %s69 = sadd.s32 %s68, 1
    %p72 = scmp.eq.s32.totalorder %s13, 1
    %p73 = scmp.ne.s32.totalorder %s68, %s70
    %p74 = scmp.eq.s32.totalorder %s13, 0
    %p75 = por %p73, %p74
    %p76 = scmp.ne.s32.totalorder %s68, %s70
    %p77 = scmp.eq.s32.totalorder %s18, 1
    %p78 = por %p76, %p77
    %p79 = scmp.ne.s32.totalorder %s70, %s71
    %p80 = scmp.eq.s32.totalorder %s18, 0
    %p81 = por %p79, %p80
    %p82 = scmp.ne.s32.totalorder %s70, %s71
    %p83 = scmp.eq.s32.totalorder %s19, 1
    %p84 = por %p82, %p83
    %p86 = scmp.ne.s32.totalorder %s71, %s85
    %p87 = scmp.eq.s32.totalorder %s19, 0
    %p88 = por %p86, %p87
    %s90 = sadd.s32 %s89, 1
    %p93 = scmp.eq.s32.totalorder %s13, 1
    %p94 = scmp.ne.s32.totalorder %s89, %s91
    %p95 = scmp.eq.s32.totalorder %s13, 0
    %p96 = por %p94, %p95
    %p97 = scmp.ne.s32.totalorder %s89, %s91
    %p98 = scmp.eq.s32.totalorder %s18, 1
    %p99 = por %p97, %p98
    %p100 = scmp.ne.s32.totalorder %s91, %s92
    %p101 = scmp.eq.s32.totalorder %s18, 0
    %p102 = por %p100, %p101
    %p103 = scmp.ne.s32.totalorder %s91, %s92
    %p104 = scmp.eq.s32.totalorder %s19, 1
    %p105 = por %p103, %p104
    %p107 = scmp.ne.s32.totalorder %s92, %s106
    %p108 = scmp.eq.s32.totalorder %s19, 0
    %p109 = por %p107, %p108
    %s111 = sadd.s32 %s110, 1
    %p114 = scmp.eq.s32.totalorder %s13, 1
    %p115 = scmp.ne.s32.totalorder %s110, %s112
    %p116 = scmp.eq.s32.totalorder %s13, 0
    %p117 = por %p115, %p116
    %p118 = scmp.ne.s32.totalorder %s110, %s112
    %p119 = scmp.eq.s32.totalorder %s18, 1
    %p120 = por %p118, %p119
    %p121 = scmp.ne.s32.totalorder %s112, %s113
    %p122 = scmp.eq.s32.totalorder %s18, 0
    %p123 = por %p121, %p122
    %p124 = scmp.ne.s32.totalorder %s112, %s113
    %p125 = scmp.eq.s32.totalorder %s19, 1
    %p126 = por %p124, %p125
    %p128 = scmp.ne.s32.totalorder %s113, %s127
    %p129 = scmp.eq.s32.totalorder %s19, 0
    %p130 = por %p128, %p129
    %s132 = sadd.s32 %s131, 1
    %p135 = scmp.eq.s32.totalorder %s13, 1
    %p136 = scmp.ne.s32.totalorder %s131, %s133
    %p137 = scmp.eq.s32.totalorder %s13, 0
    %p138 = por %p136, %p137
    %p139 = scmp.ne.s32.totalorder %s131, %s133
    %p140 = scmp.eq.s32.totalorder %s18, 1
    %p141 = por %p139, %p140
    %p142 = scmp.ne.s32.totalorder %s133, %s134
    %p143 = scmp.eq.s32.totalorder %s18, 0
    %p144 = por %p142, %p143
    %p145 = scmp.ne.s32.totalorder %s133, %s134
    %p146 = scmp.eq.s32.totalorder %s19, 1
    %p147 = por %p145, %p146
    %p149 = scmp.ne.s32.totalorder %s134, %s148
    %p150 = scmp.eq.s32.totalorder %s19, 0
    %p151 = por %p149, %p150
    %s153 = sadd.s32 %s152, 1
    %p156 = scmp.eq.s32.totalorder %s13, 1
    %p157 = scmp.ne.s32.totalorder %s152, %s154
    %p158 = scmp.eq.s32.totalorder %s13, 0
    %p159 = por %p157, %p158
    %p160 = scmp.ne.s32.totalorder %s152, %s154
    %p161 = scmp.eq.s32.totalorder %s18, 1
    %p162 = por %p160, %p161
    %p163 = scmp.ne.s32.totalorder %s154, %s155
    %p164 = scmp.eq.s32.totalorder %s18, 0
    %p165 = por %p163, %p164
    %p166 = scmp.ne.s32.totalorder %s154, %s155
    %p167 = scmp.eq.s32.totalorder %s19, 1
    %p168 = por %p166, %p167
    %p170 = scmp.ne.s32.totalorder %s155, %s169
    %p171 = scmp.eq.s32.totalorder %s19, 0
    %p172 = por %p170, %p171
    %s173 = ssub.s32 %s13, %s20
    %p174 = scmp.eq.s32.totalorder %s173, 0
    %s176 = sadd.s32 %s175, 1
    %s177 = scalar_select %p174, %s175, %s176
    %p180 = pneg %p174
    %p181 = scmp.eq.s32.totalorder %s13, 1
    %p182 = por %p180, %p181
    %p183 = scmp.ne.s32.totalorder %s175, %s178
    %p184 = scmp.eq.s32.totalorder %s13, 0
    %p185 = por %p183, %p184
    %p186 = scmp.ne.s32.totalorder %s175, %s178
    %p187 = scmp.eq.s32.totalorder %s18, 1
    %p188 = por %p186, %p187
    %p189 = scmp.ne.s32.totalorder %s178, %s179
    %p190 = scmp.eq.s32.totalorder %s18, 0
    %p191 = por %p189, %p190
    %p192 = scmp.ne.s32.totalorder %s178, %s179
    %p193 = scmp.eq.s32.totalorder %s19, 1
    %p194 = por %p192, %p193
    %p196 = scmp.ne.s32.totalorder %s179, %s195
    %p197 = scmp.eq.s32.totalorder %s19, 0
    %p198 = por %p196, %p197
    %p199 = scmp.le.s32.totalorder 1, %s13
    %p200 = scmp.lt.s32.totalorder %s13, 3
    %p201 = pnand %p199, %p200
    %p202 = pneg %p201
    // Predicated region
    $region9: #{dino_classifier_forward.7} parent=5 // pred_check
      _
    $region10: #{dino_classifier_forward.7} parent=5 // pred_check_branch
      %204 = sbr.rel (%p201) target = $region12
    $region11: #{dino_classifier_forward.7} parent=5 // pred_region
      %s205 = ssub.s32 %s13, 1
      // Predicated region
      $region13: #{dino_classifier_forward.7} parent=11 // pred_check
        %p206 = pneg %p60
      $region14: #{dino_classifier_forward.7} parent=11 // pred_check_branch
        %208 = sbr.rel (%p206) target = $region16
      $region15: #{dino_classifier_forward.7} parent=11 // pred_region
        _
      $region16: #{dino_classifier_forward.7} parent=11 // pred_fallthru
        _
      // Predicated region
      $region17: #{dino_classifier_forward.7} parent=11 // pred_check
        %p209 = pneg %p81
      $region18: #{dino_classifier_forward.7} parent=11 // pred_check_branch
        %211 = sbr.rel (%p209) target = $region20
      $region19: #{dino_classifier_forward.7} parent=11 // pred_region
        _
      $region20: #{dino_classifier_forward.7} parent=11 // pred_fallthru
        _
      // Predicated region
      $region21: #{dino_classifier_forward.7} parent=11 // pred_check
        %p212 = pneg %p102
      $region22: #{dino_classifier_forward.7} parent=11 // pred_check_branch
        %214 = sbr.rel (%p212) target = $region24
      $region23: #{dino_classifier_forward.7} parent=11 // pred_region
        _
      $region24: #{dino_classifier_forward.7} parent=11 // pred_fallthru
        _
      // Predicated region
      $region25: #{dino_classifier_forward.7} parent=11 // pred_check
        %p215 = pneg %p123
      $region26: #{dino_classifier_forward.7} parent=11 // pred_check_branch
        %217 = sbr.rel (%p215) target = $region28
      $region27: #{dino_classifier_forward.7} parent=11 // pred_region
        _
      $region28: #{dino_classifier_forward.7} parent=11 // pred_fallthru
        _
      // Predicated region
      $region29: #{dino_classifier_forward.7} parent=11 // pred_check
        %p218 = pneg %p144
      $region30: #{dino_classifier_forward.7} parent=11 // pred_check_branch
        %220 = sbr.rel (%p218) target = $region32
      $region31: #{dino_classifier_forward.7} parent=11 // pred_region
        _
      $region32: #{dino_classifier_forward.7} parent=11 // pred_fallthru
        _
      // Predicated region
      $region33: #{dino_classifier_forward.7} parent=11 // pred_check
        %p221 = pneg %p165
      $region34: #{dino_classifier_forward.7} parent=11 // pred_check_branch
        %223 = sbr.rel (%p221) target = $region36
      $region35: #{dino_classifier_forward.7} parent=11 // pred_region
        _
      $region36: #{dino_classifier_forward.7} parent=11 // pred_fallthru
        _
    $region12: #{dino_classifier_forward.7} parent=5 // pred_fallthru
      _
    %p224 = scmp.lt.s32.totalorder %s13, 2
    // Predicated region
    $region37: #{dino_classifier_forward.7} parent=5 // pred_check
      %p225 = pneg %p224
    $region38: #{dino_classifier_forward.7} parent=5 // pred_check_branch
      %227 = sbr.rel (%p225) target = $region40
    $region39: #{dino_classifier_forward.7} parent=5 // pred_region
      // Predicated region
      $region41: #{dino_classifier_forward.7} parent=39 // pred_check
        %p228 = pneg %p33
      $region42: #{dino_classifier_forward.7} parent=39 // pred_check_branch
        %230 = sbr.rel (%p228) target = $region44
      $region43: #{dino_classifier_forward.7} parent=39 // pred_region
        %p231 = scmp.lt.s32.totalorder %s13, 1
        %s232 = scalar_select %p231, %s13, 1
        %s233 = smul.addr %s232, 6
        %s234 = smul.addr %s233, 4
        %s235 = scalar_lea.vmem %s0, %s234
      $region44: #{dino_classifier_forward.7} parent=39 // pred_fallthru
        _
    $region40: #{dino_classifier_forward.7} parent=5 // pred_fallthru
      _
    %p236 = scmp.le.s32.totalorder 1, %s13
    %p237 = scmp.lt.s32.totalorder %s13, 3
    %p238 = pnand %p236, %p237
    %p239 = pneg %p238
    // Predicated region
    $region45: #{dino_classifier_forward.7} parent=5 // pred_check
      _
    $region46: #{dino_classifier_forward.7} parent=5 // pred_check_branch
      %241 = sbr.rel (%p238) target = $region48
    $region47: #{dino_classifier_forward.7} parent=5 // pred_region
      %s242 = ssub.s32 %s13, 1
      %p243 = scmp.lt.s32.totalorder %s18, 1
      %s244 = scalar_select %p243, %s18, 1
      %s245 = smul.addr %s244, 6
      %s246 = smul.addr %s245, 4
      %s247 = scalar_lea.vmem %s0, %s246
      %p248 = pneg %p39
      %p249 = pneg %p36
      %p250 = pneg %p60
      %p251 = pneg %p57
      %p252 = pneg %p81
      %p253 = pneg %p78
      %p254 = pneg %p102
      %p255 = pneg %p99
      %p256 = pneg %p123
      %p257 = pneg %p120
      %p258 = pneg %p144
      %p259 = pneg %p141
      %p260 = pneg %p165
      %p261 = pneg %p162
      %p262 = pneg %p191
      %p263 = pneg %p188
      %p264 = scmp.lt.s32.totalorder %s18, 1
      %s265 = scalar_select %p264, %s18, 1
      %s266 = smul.addr %s265, 6
      %s267 = smul.addr %s266, 4
      %s268 = scalar_lea.vmem %s7, %s267
      %p269 = scmp.lt.s32.totalorder %s18, 1
      %s270 = scalar_select %p269, %s18, 1
      %s271 = smul.addr %s270, 6
      %s272 = smul.addr %s271, 4
      %s273 = scalar_lea.vmem %s0, %s272
      %p274 = scmp.lt.s32.totalorder %s18, 1
      %s275 = scalar_select %p274, %s18, 1
      %s276 = smul.addr %s275, 6
      %s277 = smul.addr %s276, 4
      %s278 = scalar_lea.vmem %s7, %s277
      %v280 = vld [vmem:[%s273] sm:$0xff]
      %v281 = vld [vmem:[%s273 + $0x8] sm:$0xff]
      %v282 = vld [vmem:[%s273 + $0x10] sm:$0x11]
      %v283 = vunpack.c.l.bf16 %v280
      %v284 = vunpack.c.h.bf16 %v280
      %v285 = vunpack.c.l.bf16 %v281
      %v286 = vunpack.c.h.bf16 %v281
      %v287 = vunpack.c.l.bf16 %v282
      %v288 = vunpack.c.h.bf16 %v282
      %v289 = vld [vmem:[%s1] sm:$0x3]
      %v290 = vld [vmem:[%s2] sm:$0x3]
      %v291 = vadd.f32 %v283, %v284
      %292 = vadd.xlane.f32.xlu0 %v291
      %v293 = vpop.xlane.xlu0 %292
      %v294 = vadd.f32 %v285, %v286
      %295 = vadd.xlane.f32.xlu0 %v294
      %v296 = vpop.xlane.xlu0 %295
      %vm297 = vcmask 1040384
      %v298 = vsel %vm297, %v287, 0.0
      %v299 = vsel %vm297, %v288, 0.0
      %v300 = vadd.f32 %v298, %v299
      %301 = vadd.xlane.f32.xlu0 %v300
      %v302 = vpop.xlane.xlu0 %301
      %v303 = vrcp.pop 256.0
      %v304 = vmul.f32 %v293, %v303
      %v305 = vmul.f32 %v296, %v303
      %v306 = vmul.f32 %v302, %v303
      %v307 = vsub.f32 %v283, %v304
      %v308 = vsub.f32 %v284, %v304
      %v309 = vsub.f32 %v285, %v305
      %v310 = vsub.f32 %v286, %v305
      %v311 = vsub.f32 %v287, %v306
      %v312 = vsub.f32 %v288, %v306
      %v313 = vmul.f32 %v307, %v307
      %v314 = vmul.f32 %v308, %v308
      %v315 = vmul.f32 %v309, %v309
      %v316 = vmul.f32 %v310, %v310
      %v317 = vmul.f32 %v311, %v311
      %v318 = vmul.f32 %v312, %v312
      %v319 = vadd.f32 %v313, %v314
      %320 = vadd.xlane.f32.xlu0 %v319
      %v321 = vpop.xlane.xlu0 %320
      %v322 = vadd.f32 %v315, %v316
      %323 = vadd.xlane.f32.xlu0 %v322
      %v324 = vpop.xlane.xlu0 %323
      %v325 = vsel %vm297, %v317, 0.0
      %v326 = vsel %vm297, %v318, 0.0
      %v327 = vadd.f32 %v325, %v326
      %328 = vadd.xlane.f32.xlu0 %v327
      %v329 = vpop.xlane.xlu0 %328
      %v330 = vmul.f32 %v321, %v303
      %v331 = vmul.f32 %v324, %v303
      %v332 = vmul.f32 %v329, %v303
      %v333 = vadd.f32 %v330, 1e-06
      %v334 = vadd.f32 %v331, 1e-06
      %v335 = vadd.f32 %v332, 1e-06
      %v336 = vrsqrt.pop %v333
      %v337 = vrsqrt.pop %v334
      %v338 = vrsqrt.pop %v335
      %v339 = vmul.f32 %v307, %v336
      %v340 = vmul.f32 %v308, %v336
      %v341 = vmul.f32 %v309, %v337
      %v342 = vmul.f32 %v310, %v337
      %v343 = vmul.f32 %v311, %v338
      %v344 = vmul.f32 %v312, %v338
      %v346 = vlaneseq
      %v347 = vshrl.u32 %v346, 7
      %v348 = vsub.s32 0, %v347
      %v349 = vrot.slane %v289, %v348
      %v350 = vlaneseq
      %v351 = vshrl.u32 %v350, 7
      %v352 = vsub.s32 1, %v351
      %v353 = vrot.slane %v289, %v352
      %v356 = vmul.f32 %v339, %v349
      %v357 = vmul.f32 %v340, %v353
      %v358 = vmul.f32 %v341, %v349
      %v359 = vmul.f32 %v342, %v353
      %v360 = vmul.f32 %v343, %v349
      %v361 = vmul.f32 %v344, %v353
      %v363 = vlaneseq
      %v364 = vshrl.u32 %v363, 7
      %v365 = vsub.s32 0, %v364
      %v366 = vrot.slane %v290, %v365
      %v367 = vlaneseq
      %v368 = vshrl.u32 %v367, 7
      %v369 = vsub.s32 1, %v368
      %v370 = vrot.slane %v290, %v369
      %v373 = vadd.f32 %v356, %v366
      %v374 = vadd.f32 %v357, %v370
      %v375 = vadd.f32 %v358, %v366
      %v376 = vadd.f32 %v359, %v370
      %v377 = vadd.f32 %v360, %v366
      %v378 = vadd.f32 %v361, %v370
      %v379 = vpack.c.bf16 %v375, %v373
      %v380 = vpack.c.bf16 %v376, %v374
      %v381 = vpack.c.bf16 %v377, %v377
      %v382 = vpack.c.bf16 %v378, %v378
      %v383 = vld [vmem:[%s3] sm:$0xff]
      %v384 = vld [vmem:[%s3 + $0x8] sm:$0xff]
      %v385 = vld [vmem:[%s3 + $0x10] sm:$0xff]
      %v386 = vld [vmem:[%s3 + $0x18] sm:$0xff]
      %v387 = vld [vmem:[%s3 + $0x20] sm:$0xff]
      %v388 = vld [vmem:[%s3 + $0x28] sm:$0xff]
      %v389 = vld [vmem:[%s3 + $0x30] sm:$0xff]
      %v390 = vld [vmem:[%s3 + $0x38] sm:$0xff]
      %v391 = vld [vmem:[%s3 + $0x40] sm:$0xff]
      %v392 = vld [vmem:[%s3 + $0x48] sm:$0xff]
      %v393 = vld [vmem:[%s3 + $0x50] sm:$0xff]
      %v394 = vld [vmem:[%s3 + $0x58] sm:$0xff]
      %v395 = vld [vmem:[%s3 + $0x60] sm:$0xff]
      %v396 = vld [vmem:[%s3 + $0x68] sm:$0xff]
      %v397 = vld [vmem:[%s3 + $0x70] sm:$0xff]
      %v398 = vld [vmem:[%s3 + $0x78] sm:$0xff]
      %v399 = vld [vmem:[%s3 + $0x80] sm:$0xff]
      %v400 = vld [vmem:[%s3 + $0x88] sm:$0xff]
      %v401 = vld [vmem:[%s3 + $0x90] sm:$0xff]
      %v402 = vld [vmem:[%s3 + $0x98] sm:$0xff]
      %v403 = vld [vmem:[%s3 + $0xa0] sm:$0xff]
      %v404 = vld [vmem:[%s3 + $0xa8] sm:$0xff]
      %v405 = vld [vmem:[%s3 + $0xb0] sm:$0xff]
      %v406 = vld [vmem:[%s3 + $0xb8] sm:$0xff]
      %v407 = vld [vmem:[%s3 + $0xc0] sm:$0xff]
      %v408 = vld [vmem:[%s3 + $0xc8] sm:$0xff]
      %v409 = vld [vmem:[%s3 + $0xd0] sm:$0xff]
      %v410 = vld [vmem:[%s3 + $0xd8] sm:$0xff]
      %v411 = vld [vmem:[%s3 + $0xe0] sm:$0xff]
      %v412 = vld [vmem:[%s3 + $0xe8] sm:$0xff]
      %v413 = vld [vmem:[%s3 + $0xf0] sm:$0xff]
      %v414 = vld [vmem:[%s3 + $0xf8] sm:$0xff]
      %v415 = vld [vmem:[%s3 + $0x100] sm:$0xff]
      %v416 = vld [vmem:[%s3 + $0x108] sm:$0xff]
      %v417 = vld [vmem:[%s3 + $0x110] sm:$0xff]
      %v418 = vld [vmem:[%s3 + $0x118] sm:$0xff]
      %v419 = vld [vmem:[%s3 + $0x120] sm:$0xff]
      %v420 = vld [vmem:[%s3 + $0x128] sm:$0xff]
      %v421 = vld [vmem:[%s3 + $0x130] sm:$0xff]
      %v422 = vld [vmem:[%s3 + $0x138] sm:$0xff]
      %v423 = vld [vmem:[%s3 + $0x140] sm:$0xff]
      %v424 = vld [vmem:[%s3 + $0x148] sm:$0xff]
      %v425 = vld [vmem:[%s3 + $0x150] sm:$0xff]
      %v426 = vld [vmem:[%s3 + $0x158] sm:$0xff]
      %v427 = vld [vmem:[%s3 + $0x160] sm:$0xff]
      %v428 = vld [vmem:[%s3 + $0x168] sm:$0xff]
      %v429 = vld [vmem:[%s3 + $0x170] sm:$0xff]
      %v430 = vld [vmem:[%s3 + $0x178] sm:$0xff]
      %v431 = vld [vmem:[%s3 + $0x180] sm:$0xff]
      %v432 = vld [vmem:[%s3 + $0x188] sm:$0xff]
      %v433 = vld [vmem:[%s3 + $0x190] sm:$0xff]
      %v434 = vld [vmem:[%s3 + $0x198] sm:$0xff]
      %v435 = vld [vmem:[%s3 + $0x1a0] sm:$0xff]
      %v436 = vld [vmem:[%s3 + $0x1a8] sm:$0xff]
      %v437 = vld [vmem:[%s3 + $0x1b0] sm:$0xff]
      %v438 = vld [vmem:[%s3 + $0x1b8] sm:$0xff]
      %v439 = vld [vmem:[%s3 + $0x1c0] sm:$0xff]
      %v440 = vld [vmem:[%s3 + $0x1c8] sm:$0xff]
      %v441 = vld [vmem:[%s3 + $0x1d0] sm:$0xff]
      %v442 = vld [vmem:[%s3 + $0x1d8] sm:$0xff]
      %v443 = vld [vmem:[%s3 + $0x1e0] sm:$0xff]
      %v444 = vld [vmem:[%s3 + $0x1e8] sm:$0xff]
      %v445 = vld [vmem:[%s3 + $0x1f0] sm:$0xff]
      %v446 = vld [vmem:[%s3 + $0x1f8] sm:$0xff]
      %v447 = vld [vmem:[%s3 + $0x200] sm:$0xff]
      %v448 = vld [vmem:[%s3 + $0x208] sm:$0xff]
      %v449 = vld [vmem:[%s3 + $0x210] sm:$0xff]
      %v450 = vld [vmem:[%s3 + $0x218] sm:$0xff]
      %v451 = vld [vmem:[%s3 + $0x220] sm:$0xff]
      %v452 = vld [vmem:[%s3 + $0x228] sm:$0xff]
      %v453 = vld [vmem:[%s3 + $0x230] sm:$0xff]
      %v454 = vld [vmem:[%s3 + $0x238] sm:$0xff]
      %v455 = vld [vmem:[%s3 + $0x240] sm:$0xff]
      %v456 = vld [vmem:[%s3 + $0x248] sm:$0xff]
      %v457 = vld [vmem:[%s3 + $0x250] sm:$0xff]
      %v458 = vld [vmem:[%s3 + $0x258] sm:$0xff]
      %v459 = vld [vmem:[%s3 + $0x260] sm:$0xff]
      %v460 = vld [vmem:[%s3 + $0x268] sm:$0xff]
      %v461 = vld [vmem:[%s3 + $0x270] sm:$0xff]
      %v462 = vld [vmem:[%s3 + $0x278] sm:$0xff]
      %v463 = vld [vmem:[%s3 + $0x280] sm:$0xff]
      %v464 = vld [vmem:[%s3 + $0x288] sm:$0xff]
      %v465 = vld [vmem:[%s3 + $0x290] sm:$0xff]
      %v466 = vld [vmem:[%s3 + $0x298] sm:$0xff]
      %v467 = vld [vmem:[%s3 + $0x2a0] sm:$0xff]
      %v468 = vld [vmem:[%s3 + $0x2a8] sm:$0xff]
      %v469 = vld [vmem:[%s3 + $0x2b0] sm:$0xff]
      %v470 = vld [vmem:[%s3 + $0x2b8] sm:$0xff]
      %v471 = vld [vmem:[%s3 + $0x2c0] sm:$0xff]
      %v472 = vld [vmem:[%s3 + $0x2c8] sm:$0xff]
      %v473 = vld [vmem:[%s3 + $0x2d0] sm:$0xff]
      %v474 = vld [vmem:[%s3 + $0x2d8] sm:$0xff]
      %v475 = vld [vmem:[%s3 + $0x2e0] sm:$0xff]
      %v476 = vld [vmem:[%s3 + $0x2e8] sm:$0xff]
      %v477 = vld [vmem:[%s3 + $0x2f0] sm:$0xff]
      %v478 = vld [vmem:[%s3 + $0x2f8] sm:$0xff]
      %v479 = vld [vmem:[%s4] sm:$0x3f]
      %v481 = vlaneseq
      %v482 = vshrl.u32 %v481, 7
      %v483 = vsub.s32 0, %v482
      %v484 = vrot.slane %v479, %v483
      %v485 = vlaneseq
      %v486 = vshrl.u32 %v485, 7
      %v487 = vsub.s32 1, %v486
      %v488 = vrot.slane %v479, %v487
      %v489 = vlaneseq
      %v490 = vshrl.u32 %v489, 7
      %v491 = vsub.s32 2, %v490
      %v492 = vrot.slane %v479, %v491
      %v493 = vlaneseq
      %v494 = vshrl.u32 %v493, 7
      %v495 = vsub.s32 3, %v494
      %v496 = vrot.slane %v479, %v495
      %v497 = vlaneseq
      %v498 = vshrl.u32 %v497, 7
      %v499 = vsub.s32 4, %v498
      %v500 = vrot.slane %v479, %v499
      %v501 = vlaneseq
      %v502 = vshrl.u32 %v501, 7
      %v503 = vsub.s32 5, %v502
      %v504 = vrot.slane %v479, %v503
      %v607 = vunpack.c.l.b16 %v383
      %v608 = vunpack.c.h.b16 %v383
      %v609 = vunpack.c.l.b16 %v384
      %v610 = vunpack.c.h.b16 %v384
      %v611 = vunpack.c.l.b16 %v385
      %v612 = vunpack.c.h.b16 %v385
      %v613 = vunpack.c.l.b16 %v386
      %v614 = vunpack.c.h.b16 %v386
      %v615 = vunpack.c.l.b16 %v387
      %v616 = vunpack.c.h.b16 %v387
      %v617 = vunpack.c.l.b16 %v388
      %v618 = vunpack.c.h.b16 %v388
      %v619 = vunpack.c.l.b16 %v389
      %v620 = vunpack.c.h.b16 %v389
      %v621 = vunpack.c.l.b16 %v390
      %v622 = vunpack.c.h.b16 %v390
      %v623 = vunpack.c.l.b16 %v391
      %v624 = vunpack.c.h.b16 %v391
      %v625 = vunpack.c.l.b16 %v392
      %v626 = vunpack.c.h.b16 %v392
      %v627 = vunpack.c.l.b16 %v393
      %v628 = vunpack.c.h.b16 %v393
      %v629 = vunpack.c.l.b16 %v394
      %v630 = vunpack.c.h.b16 %v394
      %v631 = vunpack.c.l.b16 %v395
      %v632 = vunpack.c.h.b16 %v395
      %v633 = vunpack.c.l.b16 %v396
      %v634 = vunpack.c.h.b16 %v396
      %v635 = vunpack.c.l.b16 %v397
      %v636 = vunpack.c.h.b16 %v397
      %v637 = vunpack.c.l.b16 %v398
      %v638 = vunpack.c.h.b16 %v398
      %v639 = vunpack.c.l.b16 %v399
      %v640 = vunpack.c.h.b16 %v399
      %v641 = vunpack.c.l.b16 %v400
      %v642 = vunpack.c.h.b16 %v400
      %v643 = vunpack.c.l.b16 %v401
      %v644 = vunpack.c.h.b16 %v401
      %v645 = vunpack.c.l.b16 %v402
      %v646 = vunpack.c.h.b16 %v402
      %v647 = vunpack.c.l.b16 %v403
      %v648 = vunpack.c.h.b16 %v403
      %v649 = vunpack.c.l.b16 %v404
      %v650 = vunpack.c.h.b16 %v404
      %v651 = vunpack.c.l.b16 %v405
      %v652 = vunpack.c.h.b16 %v405
      %v653 = vunpack.c.l.b16 %v406
      %v654 = vunpack.c.h.b16 %v406
      %v655 = vunpack.c.l.b16 %v407
      %v656 = vunpack.c.h.b16 %v407
      %v657 = vunpack.c.l.b16 %v408
      %v658 = vunpack.c.h.b16 %v408
      %v659 = vunpack.c.l.b16 %v409
      %v660 = vunpack.c.h.b16 %v409
      %v661 = vunpack.c.l.b16 %v410
      %v662 = vunpack.c.h.b16 %v410
      %v663 = vunpack.c.l.b16 %v411
      %v664 = vunpack.c.h.b16 %v411
      %v665 = vunpack.c.l.b16 %v412
      %v666 = vunpack.c.h.b16 %v412
      %v667 = vunpack.c.l.b16 %v413
      %v668 = vunpack.c.h.b16 %v413
      %v669 = vunpack.c.l.b16 %v414
      %v670 = vunpack.c.h.b16 %v414
      %v671 = vunpack.c.l.b16 %v415
      %v672 = vunpack.c.h.b16 %v415
      %v673 = vunpack.c.l.b16 %v416
      %v674 = vunpack.c.h.b16 %v416
      %v675 = vunpack.c.l.b16 %v417
      %v676 = vunpack.c.h.b16 %v417
      %v677 = vunpack.c.l.b16 %v418
      %v678 = vunpack.c.h.b16 %v418
      %v679 = vunpack.c.l.b16 %v419
      %v680 = vunpack.c.h.b16 %v419
      %v681 = vunpack.c.l.b16 %v420
      %v682 = vunpack.c.h.b16 %v420
      %v683 = vunpack.c.l.b16 %v421
      %v684 = vunpack.c.h.b16 %v421
      %v685 = vunpack.c.l.b16 %v422
      %v686 = vunpack.c.h.b16 %v422
      %v687 = vunpack.c.l.b16 %v423
      %v688 = vunpack.c.h.b16 %v423
      %v689 = vunpack.c.l.b16 %v424
      %v690 = vunpack.c.h.b16 %v424
      %v691 = vunpack.c.l.b16 %v425
      %v692 = vunpack.c.h.b16 %v425
      %v693 = vunpack.c.l.b16 %v426
      %v694 = vunpack.c.h.b16 %v426
      %v695 = vunpack.c.l.b16 %v427
      %v696 = vunpack.c.h.b16 %v427
      %v697 = vunpack.c.l.b16 %v428
      %v698 = vunpack.c.h.b16 %v428
      %v699 = vunpack.c.l.b16 %v429
      %v700 = vunpack.c.h.b16 %v429
      %v701 = vunpack.c.l.b16 %v430
      %v702 = vunpack.c.h.b16 %v430
      %v703 = vunpack.c.l.b16 %v431
      %v704 = vunpack.c.h.b16 %v431
      %v705 = vunpack.c.l.b16 %v432
      %v706 = vunpack.c.h.b16 %v432
      %v707 = vunpack.c.l.b16 %v433
      %v708 = vunpack.c.h.b16 %v433
      %v709 = vunpack.c.l.b16 %v434
      %v710 = vunpack.c.h.b16 %v434
      %v711 = vunpack.c.l.b16 %v435
      %v712 = vunpack.c.h.b16 %v435
      %v713 = vunpack.c.l.b16 %v436
      %v714 = vunpack.c.h.b16 %v436
      %v715 = vunpack.c.l.b16 %v437
      %v716 = vunpack.c.h.b16 %v437
      %v717 = vunpack.c.l.b16 %v438
      %v718 = vunpack.c.h.b16 %v438
      %v719 = vunpack.c.l.b16 %v439
      %v720 = vunpack.c.h.b16 %v439
      %v721 = vunpack.c.l.b16 %v440
      %v722 = vunpack.c.h.b16 %v440
      %v723 = vunpack.c.l.b16 %v441
      %v724 = vunpack.c.h.b16 %v441
      %v725 = vunpack.c.l.b16 %v442
      %v726 = vunpack.c.h.b16 %v442
      %v727 = vunpack.c.l.b16 %v443
      %v728 = vunpack.c.h.b16 %v443
      %v729 = vunpack.c.l.b16 %v444
      %v730 = vunpack.c.h.b16 %v444
      %v731 = vunpack.c.l.b16 %v445
      %v732 = vunpack.c.h.b16 %v445
      %v733 = vunpack.c.l.b16 %v446
      %v734 = vunpack.c.h.b16 %v446
      %v735 = vunpack.c.l.b16 %v447
      %v736 = vunpack.c.h.b16 %v447
      %v737 = vunpack.c.l.b16 %v448
      %v738 = vunpack.c.h.b16 %v448
      %v739 = vunpack.c.l.b16 %v449
      %v740 = vunpack.c.h.b16 %v449
      %v741 = vunpack.c.l.b16 %v450
      %v742 = vunpack.c.h.b16 %v450
      %v743 = vunpack.c.l.b16 %v451
      %v744 = vunpack.c.h.b16 %v451
      %v745 = vunpack.c.l.b16 %v452
      %v746 = vunpack.c.h.b16 %v452
      %v747 = vunpack.c.l.b16 %v453
      %v748 = vunpack.c.h.b16 %v453
      %v749 = vunpack.c.l.b16 %v454
      %v750 = vunpack.c.h.b16 %v454
      %v751 = vunpack.c.l.b16 %v455
      %v752 = vunpack.c.h.b16 %v455
      %v753 = vunpack.c.l.b16 %v456
      %v754 = vunpack.c.h.b16 %v456
      %v755 = vunpack.c.l.b16 %v457
      %v756 = vunpack.c.h.b16 %v457
      %v757 = vunpack.c.l.b16 %v458
      %v758 = vunpack.c.h.b16 %v458
      %v759 = vunpack.c.l.b16 %v459
      %v760 = vunpack.c.h.b16 %v459
      %v761 = vunpack.c.l.b16 %v460
      %v762 = vunpack.c.h.b16 %v460
      %v763 = vunpack.c.l.b16 %v461
      %v764 = vunpack.c.h.b16 %v461
      %v765 = vunpack.c.l.b16 %v462
      %v766 = vunpack.c.h.b16 %v462
      %v767 = vunpack.c.l.b16 %v463
      %v768 = vunpack.c.h.b16 %v463
      %v769 = vunpack.c.l.b16 %v464
      %v770 = vunpack.c.h.b16 %v464
      %v771 = vunpack.c.l.b16 %v465
      %v772 = vunpack.c.h.b16 %v465
      %v773 = vunpack.c.l.b16 %v466
      %v774 = vunpack.c.h.b16 %v466
      %v775 = vunpack.c.l.b16 %v467
      %v776 = vunpack.c.h.b16 %v467
      %v777 = vunpack.c.l.b16 %v468
      %v778 = vunpack.c.h.b16 %v468
      %v779 = vunpack.c.l.b16 %v469
      %v780 = vunpack.c.h.b16 %v469
      %v781 = vunpack.c.l.b16 %v470
      %v782 = vunpack.c.h.b16 %v470
      %v783 = vunpack.c.l.b16 %v471
      %v784 = vunpack.c.h.b16 %v471
      %v785 = vunpack.c.l.b16 %v472
      %v786 = vunpack.c.h.b16 %v472
      %v787 = vunpack.c.l.b16 %v473
      %v788 = vunpack.c.h.b16 %v473
      %v789 = vunpack.c.l.b16 %v474
      %v790 = vunpack.c.h.b16 %v474
      %v791 = vunpack.c.l.b16 %v475
      %v792 = vunpack.c.h.b16 %v475
      %v793 = vunpack.c.l.b16 %v476
      %v794 = vunpack.c.h.b16 %v476
      %v795 = vunpack.c.l.b16 %v477
      %v796 = vunpack.c.h.b16 %v477
      %v797 = vunpack.c.l.b16 %v478
      %v798 = vunpack.c.h.b16 %v478
      %v799 = vpack.c.b16 %v613, %v607
      %v800 = vpack.c.b16 %v614, %v608
      %v801 = vpack.c.b16 %v615, %v609
      %v802 = vpack.c.b16 %v616, %v610
      %v803 = vpack.c.b16 %v617, %v611
      %v804 = vpack.c.b16 %v618, %v612
      %v805 = vpack.c.b16 %v625, %v619
      %v806 = vpack.c.b16 %v626, %v620
      %v807 = vpack.c.b16 %v627, %v621
      %v808 = vpack.c.b16 %v628, %v622
      %v809 = vpack.c.b16 %v629, %v623
      %v810 = vpack.c.b16 %v630, %v624
      %v811 = vpack.c.b16 %v637, %v631
      %v812 = vpack.c.b16 %v638, %v632
      %v813 = vpack.c.b16 %v639, %v633
      %v814 = vpack.c.b16 %v640, %v634
      %v815 = vpack.c.b16 %v641, %v635
      %v816 = vpack.c.b16 %v642, %v636
      %v817 = vpack.c.b16 %v649, %v643
      %v818 = vpack.c.b16 %v650, %v644
      %v819 = vpack.c.b16 %v651, %v645
      %v820 = vpack.c.b16 %v652, %v646
      %v821 = vpack.c.b16 %v653, %v647
      %v822 = vpack.c.b16 %v654, %v648
      %v823 = vpack.c.b16 %v661, %v655
      %v824 = vpack.c.b16 %v662, %v656
      %v825 = vpack.c.b16 %v663, %v657
      %v826 = vpack.c.b16 %v664, %v658
      %v827 = vpack.c.b16 %v665, %v659
      %v828 = vpack.c.b16 %v666, %v660
      %v829 = vpack.c.b16 %v673, %v667
      %v830 = vpack.c.b16 %v674, %v668
      %v831 = vpack.c.b16 %v675, %v669
      %v832 = vpack.c.b16 %v676, %v670
      %v833 = vpack.c.b16 %v677, %v671
      %v834 = vpack.c.b16 %v678, %v672
      %v835 = vpack.c.b16 %v685, %v679
      %v836 = vpack.c.b16 %v686, %v680
      %v837 = vpack.c.b16 %v687, %v681
      %v838 = vpack.c.b16 %v688, %v682
      %v839 = vpack.c.b16 %v689, %v683
      %v840 = vpack.c.b16 %v690, %v684
      %v841 = vpack.c.b16 %v697, %v691
      %v842 = vpack.c.b16 %v698, %v692
      %v843 = vpack.c.b16 %v699, %v693
      %v844 = vpack.c.b16 %v700, %v694
      %v845 = vpack.c.b16 %v701, %v695
      %v846 = vpack.c.b16 %v702, %v696
      %v847 = vpack.c.b16 %v709, %v703
      %v848 = vpack.c.b16 %v710, %v704
      %v849 = vpack.c.b16 %v711, %v705
      %v850 = vpack.c.b16 %v712, %v706
      %v851 = vpack.c.b16 %v713, %v707
      %v852 = vpack.c.b16 %v714, %v708
      %v853 = vpack.c.b16 %v721, %v715
      %v854 = vpack.c.b16 %v722, %v716
      %v855 = vpack.c.b16 %v723, %v717
      %v856 = vpack.c.b16 %v724, %v718
      %v857 = vpack.c.b16 %v725, %v719
      %v858 = vpack.c.b16 %v726, %v720
      %v859 = vpack.c.b16 %v733, %v727
      %v860 = vpack.c.b16 %v734, %v728
      %v861 = vpack.c.b16 %v735, %v729
      %v862 = vpack.c.b16 %v736, %v730
      %v863 = vpack.c.b16 %v737, %v731
      %v864 = vpack.c.b16 %v738, %v732
      %v865 = vpack.c.b16 %v745, %v739
      %v866 = vpack.c.b16 %v746, %v740
      %v867 = vpack.c.b16 %v747, %v741
      %v868 = vpack.c.b16 %v748, %v742
      %v869 = vpack.c.b16 %v749, %v743
      %v870 = vpack.c.b16 %v750, %v744
      %v871 = vpack.c.b16 %v757, %v751
      %v872 = vpack.c.b16 %v758, %v752
      %v873 = vpack.c.b16 %v759, %v753
      %v874 = vpack.c.b16 %v760, %v754
      %v875 = vpack.c.b16 %v761, %v755
      %v876 = vpack.c.b16 %v762, %v756
      %v877 = vpack.c.b16 %v769, %v763
      %v878 = vpack.c.b16 %v770, %v764
      %v879 = vpack.c.b16 %v771, %v765
      %v880 = vpack.c.b16 %v772, %v766
      %v881 = vpack.c.b16 %v773, %v767
      %v882 = vpack.c.b16 %v774, %v768
      %v883 = vpack.c.b16 %v781, %v775
      %v884 = vpack.c.b16 %v782, %v776
      %v885 = vpack.c.b16 %v783, %v777
      %v886 = vpack.c.b16 %v784, %v778
      %v887 = vpack.c.b16 %v785, %v779
      %v888 = vpack.c.b16 %v786, %v780
      %v889 = vpack.c.b16 %v793, %v787
      %v890 = vpack.c.b16 %v794, %v788
      %v891 = vpack.c.b16 %v795, %v789
      %v892 = vpack.c.b16 %v796, %v790
      %v893 = vpack.c.b16 %v797, %v791
      %v894 = vpack.c.b16 %v798, %v792
      %991 = vmatprep.subr.bf16.mxu0 %v800
      %992 = vmatpush1.bf16.msra.mxu0 %v799
      %993 = vmatprep.subr.bf16.mxu0 %v806
      %994 = vmatpush1.bf16.msra.mxu0 %v805
      %995 = vmatprep.subr.bf16.mxu0 %v812
      %996 = vmatpush1.bf16.msra.mxu0 %v811
      %997 = vmatprep.subr.bf16.mxu0 %v818
      %998 = vmatpush1.bf16.msra.mxu0 %v817
      %999 = vmatprep.subr.bf16.mxu0 %v824
      %1000 = vmatpush1.bf16.msra.mxu0 %v823
      %1001 = vmatprep.subr.bf16.mxu0 %v830
      %1002 = vmatpush1.bf16.msra.mxu0 %v829
      %1003 = vmatprep.subr.bf16.mxu0 %v836
      %1004 = vmatpush1.bf16.msra.mxu0 %v835
      %1005 = vmatprep.subr.bf16.mxu0 %v842
      %1006 = vmatpush1.bf16.msra.mxu0 %v841
      %1007 = vmatprep.subr.bf16.mxu0 %v848
      %1008 = vmatpush1.bf16.msra.mxu0 %v847
      %1009 = vmatprep.subr.bf16.mxu0 %v854
      %1010 = vmatpush1.bf16.msra.mxu0 %v853
      %1011 = vmatprep.subr.bf16.mxu0 %v860
      %1012 = vmatpush1.bf16.msra.mxu0 %v859
      %1013 = vmatprep.subr.bf16.mxu0 %v866
      %1014 = vmatpush1.bf16.msra.mxu0 %v865
      %1015 = vmatprep.subr.bf16.mxu0 %v872
      %1016 = vmatpush1.bf16.msra.mxu0 %v871
      %1017 = vmatprep.subr.bf16.mxu0 %v878
      %1018 = vmatpush1.bf16.msra.mxu0 %v877
      %1019 = vmatprep.subr.bf16.mxu0 %v884
      %1020 = vmatpush1.bf16.msra.mxu0 %v883
      %1021 = vmatprep.subr.bf16.mxu0 %v890
      %1022 = vmatpush1.bf16.msra.mxu0 %v889
      %1023 = vmatprep.mubr.bf16.mxu0 %v380
      %1024 = vmatmul.mubr.bf16.gmra.mrb[0].mxu0 %v379
      %v1025 = vpop.f32.mrb[0].mxu0
      %v1026 = vadd.f32 %v484, %v1025
      %v1027 = vpop.f32.mrb[0].mxu0
      %v1028 = vadd.f32 %v488, %v1027
      %v1029 = vpop.f32.mrb[0].mxu0
      %v1030 = vadd.f32 %v484, %v1029
      %v1031 = vpop.f32.mrb[0].mxu0
      %v1032 = vadd.f32 %v488, %v1031
      %1033 = vmatprep.mubr.bf16.mxu0 %v382
      %1034 = vmatmul.mubr.bf16.gmra.mrb[0].mxu0 %v381
      %v1035 = vpop.f32.mrb[0].mxu0
      %v1036 = vadd.f32 %v484, %v1035
      %v1037 = vpop.f32.mrb[0].mxu0
      %v1038 = vadd.f32 %v488, %v1037
      %v1039 = vpop.f32.mrb[0].mxu0
      %v1040 = vpop.f32.mrb[0].mxu0
      %1041 = vdwg.mxu0
      %1042 = vmatprep.subr.bf16.mxu0 %v802
      %1043 = vmatpush1.bf16.msra.mxu0 %v801
      %1044 = vmatprep.subr.bf16.mxu0 %v808
      %1045 = vmatpush1.bf16.msra.mxu0 %v807
      %1046 = vmatprep.subr.bf16.mxu0 %v814
      %1047 = vmatpush1.bf16.msra.mxu0 %v813
      %1048 = vmatprep.subr.bf16.mxu0 %v820
      %1049 = vmatpush1.bf16.msra.mxu0 %v819
      %1050 = vmatprep.subr.bf16.mxu0 %v826
      %1051 = vmatpush1.bf16.msra.mxu0 %v825
      %1052 = vmatprep.subr.bf16.mxu0 %v832
      %1053 = vmatpush1.bf16.msra.mxu0 %v831
      %1054 = vmatprep.subr.bf16.mxu0 %v838
      %1055 = vmatpush1.bf16.msra.mxu0 %v837
      %1056 = vmatprep.subr.bf16.mxu0 %v844
      %1057 = vmatpush1.bf16.msra.mxu0 %v843
      %1058 = vmatprep.subr.bf16.mxu0 %v850
      %1059 = vmatpush1.bf16.msra.mxu0 %v849
      %1060 = vmatprep.subr.bf16.mxu0 %v856
      %1061 = vmatpush1.bf16.msra.mxu0 %v855
      %1062 = vmatprep.subr.bf16.mxu0 %v862
      %1063 = vmatpush1.bf16.msra.mxu0 %v861
      %1064 = vmatprep.subr.bf16.mxu0 %v868
      %1065 = vmatpush1.bf16.msra.mxu0 %v867
      %1066 = vmatprep.subr.bf16.mxu0 %v874
      %1067 = vmatpush1.bf16.msra.mxu0 %v873
      %1068 = vmatprep.subr.bf16.mxu0 %v880
      %1069 = vmatpush1.bf16.msra.mxu0 %v879
      %1070 = vmatprep.subr.bf16.mxu0 %v886
      %1071 = vmatpush1.bf16.msra.mxu0 %v885
      %1072 = vmatprep.subr.bf16.mxu0 %v892
      %1073 = vmatpush1.bf16.msra.mxu0 %v891
      %1074 = vmatprep.mubr.bf16.mxu0 %v380
      %1075 = vmatmul.mubr.bf16.gmra.mrb[0].mxu0 %v379
      %v1076 = vpop.f32.mrb[0].mxu0
      %v1077 = vadd.f32 %v492, %v1076
      %v1078 = vpop.f32.mrb[0].mxu0
      %v1079 = vadd.f32 %v496, %v1078
      %v1080 = vpop.f32.mrb[0].mxu0
      %v1081 = vadd.f32 %v492, %v1080
      %v1082 = vpop.f32.mrb[0].mxu0
      %v1083 = vadd.f32 %v496, %v1082
      %1084 = vmatprep.mubr.bf16.mxu0 %v382
      %1085 = vmatmul.mubr.bf16.gmra.mrb[0].mxu0 %v381
      %v1086 = vpop.f32.mrb[0].mxu0
      %v1087 = vadd.f32 %v492, %v1086
      %v1088 = vpop.f32.mrb[0].mxu0
      %v1089 = vadd.f32 %v496, %v1088
      %v1090 = vpop.f32.mrb[0].mxu0
      %v1091 = vpop.f32.mrb[0].mxu0
      %1092 = vdwg.mxu0
      %1093 = vmatprep.subr.bf16.mxu0 %v804
      %1094 = vmatpush1.bf16.msra.mxu0 %v803
      %1095 = vmatprep.subr.bf16.mxu0 %v810
      %1096 = vmatpush1.bf16.msra.mxu0 %v809
      %1097 = vmatprep.subr.bf16.mxu0 %v816
      %1098 = vmatpush1.bf16.msra.mxu0 %v815
      %1099 = vmatprep.subr.bf16.mxu0 %v822
      %1100 = vmatpush1.bf16.msra.mxu0 %v821
      %1101 = vmatprep.subr.bf16.mxu0 %v828
      %1102 = vmatpush1.bf16.msra.mxu0 %v827
      %1103 = vmatprep.subr.bf16.mxu0 %v834
      %1104 = vmatpush1.bf16.msra.mxu0 %v833
      %1105 = vmatprep.subr.bf16.mxu0 %v840
      %1106 = vmatpush1.bf16.msra.mxu0 %v839
      %1107 = vmatprep.subr.bf16.mxu0 %v846
      %1108 = vmatpush1.bf16.msra.mxu0 %v845
      %1109 = vmatprep.subr.bf16.mxu0 %v852
      %1110 = vmatpush1.bf16.msra.mxu0 %v851
      %1111 = vmatprep.subr.bf16.mxu0 %v858
      %1112 = vmatpush1.bf16.msra.mxu0 %v857
      %1113 = vmatprep.subr.bf16.mxu0 %v864
      %1114 = vmatpush1.bf16.msra.mxu0 %v863
      %1115 = vmatprep.subr.bf16.mxu0 %v870
      %1116 = vmatpush1.bf16.msra.mxu0 %v869
      %1117 = vmatprep.subr.bf16.mxu0 %v876
      %1118 = vmatpush1.bf16.msra.mxu0 %v875
      %1119 = vmatprep.subr.bf16.mxu0 %v882
      %1120 = vmatpush1.bf16.msra.mxu0 %v881
      %1121 = vmatprep.subr.bf16.mxu0 %v888
      %1122 = vmatpush1.bf16.msra.mxu0 %v887
      %1123 = vmatprep.subr.bf16.mxu0 %v894
      %1124 = vmatpush1.bf16.msra.mxu0 %v893
      %1125 = vmatprep.mubr.bf16.mxu0 %v380
      %1126 = vmatmul.mubr.bf16.gmra.mrb[0].mxu0 %v379
      %v1127 = vpop.f32.mrb[0].mxu0
      %v1128 = vadd.f32 %v500, %v1127
      %v1129 = vpop.f32.mrb[0].mxu0
      %v1130 = vadd.f32 %v504, %v1129
      %v1131 = vpop.f32.mrb[0].mxu0
      %v1132 = vadd.f32 %v500, %v1131
      %v1133 = vpop.f32.mrb[0].mxu0
      %v1134 = vadd.f32 %v504, %v1133
      %1135 = vmatprep.mubr.bf16.mxu0 %v382
      %1136 = vmatmul.mubr.bf16.gmra.mrb[0].mxu0 %v381
      %v1137 = vpop.f32.mrb[0].mxu0
      %v1138 = vadd.f32 %v500, %v1137
      %v1139 = vpop.f32.mrb[0].mxu0
      %v1140 = vadd.f32 %v504, %v1139
      %v1141 = vpop.f32.mrb[0].mxu0
      %v1142 = vpop.f32.mrb[0].mxu0
      %1143 = vdwg.mxu0
      %v1144 = vmul.f32 %v1026, 0.088388346
      %v1145 = vmul.f32 %v1030, 0.088388346
      %v1146 = vmul.f32 %v1036, 0.088388346
      %v1147 = vpack.c.bf16 %v1145, %v1144
      %v1148 = vpack.c.bf16 %v1146, %v1146
      %v1149 = vpack.c.bf16 %v1081, %v1077
      %v1150 = vpack.c.bf16 %v1087, %v1087
      %v1151 = vpack.c.bf16 %v1132, %v1128
      %v1152 = vpack.c.bf16 %v1138, %v1138
      %1153 = vmatprep.subr.bf16.mxu0 0
      %1154 = vmatpush1.bf16.xpose.msra.mxu0 %v1149
      %1155 = vmatprep.subr.bf16.mxu0 0
      %1156 = vmatpush1.bf16.xpose.msra.mxu0 %v1150
      %1157 = vmatprep.subr.bf16.mxu0 0
      %1158 = vmatpush1.bf16.xpose.msra.mxu0 0
      %1159 = vmatprep.subr.bf16.mxu0 0
      %1160 = vmatpush1.bf16.xpose.msra.mxu0 0
      %1161 = vmatprep.subr.bf16.mxu0 0
      %1162 = vmatpush1.bf16.xpose.msra.mxu0 0
      %1163 = vmatprep.subr.bf16.mxu0 0
      %1164 = vmatpush1.bf16.xpose.msra.mxu0 0
      %1165 = vmatprep.subr.bf16.mxu0 0
      %1166 = vmatpush1.bf16.xpose.msra.mxu0 0
      %1167 = vmatprep.subr.bf16.mxu0 0
      %1168 = vmatpush1.bf16.xpose.msra.mxu0 0
      %1169 = vmatprep.subr.bf16.mxu0 0
      %1170 = vmatpush1.bf16.xpose.msra.mxu0 0
      %1171 = vmatprep.subr.bf16.mxu0 0
      %1172 = vmatpush1.bf16.xpose.msra.mxu0 0
      %1173 = vmatprep.subr.bf16.mxu0 0
      %1174 = vmatpush1.bf16.xpose.msra.mxu0 0
      %1175 = vmatprep.subr.bf16.mxu0 0
      %1176 = vmatpush1.bf16.xpose.msra.mxu0 0
      %1177 = vmatprep.subr.bf16.mxu0 0
      %1178 = vmatpush1.bf16.xpose.msra.mxu0 0
      %1179 = vmatprep.subr.bf16.mxu0 0
      %1180 = vmatpush1.bf16.xpose.msra.mxu0 0
      %1181 = vmatprep.subr.bf16.mxu0 0
      %1182 = vmatpush1.bf16.xpose.msra.mxu0 0
      %1183 = vmatprep.subr.bf16.mxu0 0
      %1184 = vmatpush1.bf16.xpose.msra.mxu0 0
      %1185 = vmatprep.mubr.bf16.mxu0 0
      %1186 = vmatmul.mubr.bf16.gmra.mrb[0].mxu0 %v1147
      %v1187 = vpop.f32.mrb[0].mxu0
      %v1188 = vadd.f32 0.0, %v1187
      %v1189 = vpop.f32.mrb[0].mxu0
      %v1190 = vpop.f32.mrb[0].mxu0
      %v1191 = vadd.f32 0.0, %v1190
      %v1192 = vpop.f32.mrb[0].mxu0
      %1193 = vmatprep.mubr.bf16.mxu0 0
      %1194 = vmatmul.mubr.bf16.gmra.mrb[0].mxu0 %v1148
      %v1195 = vpop.f32.mrb[0].mxu0
      %v1196 = vadd.f32 0.0, %v1195
      %v1197 = vpop.f32.mrb[0].mxu0
      %v1198 = vpop.f32.mrb[0].mxu0
      %v1199 = vpop.f32.mrb[0].mxu0
      %1200 = vdwg.mxu0
      %vm1201 = vcmask 138240
      %v1202 = vsel %vm1201, %v1188, -inf
      %1203 = vmax.xlane.f32.xlu0 %v1202
      %v1204 = vpop.xlane.xlu0 %1203
      %v1205 = vsel %vm1201, %v1191, -inf
      %1206 = vmax.xlane.f32.xlu0 %v1205
      %v1207 = vpop.xlane.xlu0 %1206
      %vm1208 = vcmask 131072
      %v1209 = vsel %vm1208, %v1196, -inf
      %1210 = vmax.xlane.f32.xlu0 %v1209
      %v1211 = vpop.xlane.xlu0 %1210
      %v1212 = vsub.f32 %v1188, %v1204
      %v1213 = vsub.f32 %v1191, %v1207
      %v1214 = vsub.f32 %v1196, %v1211
      %v1215 = vmul.f32 %v1212, 1.442695
      %v1216 = vpow.pop %v1215
      %v1217 = vmul.f32 %v1213, 1.442695
      %v1218 = vpow.pop %v1217
      %v1219 = vmul.f32 %v1214, 1.442695
      %v1220 = vpow.pop %v1219
      %v1221 = vsel %vm1201, %v1216, 0.0
      %1222 = vadd.xlane.f32.xlu0 %v1221
      %v1223 = vpop.xlane.xlu0 %1222
      %v1224 = vsel %vm1201, %v1218, 0.0
      %1225 = vadd.xlane.f32.xlu0 %v1224
      %v1226 = vpop.xlane.xlu0 %1225
      %v1227 = vsel %vm1208, %v1220, 0.0
      %1228 = vadd.xlane.f32.xlu0 %v1227
      %v1229 = vpop.xlane.xlu0 %1228
      %v1230 = vrcp.pop %v1223
      %v1231 = vrcp.pop %v1226
      %v1232 = vrcp.pop %v1229
      %v1233 = vmul.f32 %v1216, %v1230
      %v1234 = vmul.f32 %v1218, %v1231
      %v1235 = vmul.f32 %v1220, %v1232
      %v1236 = vpack.c.bf16 %v1234, %v1233
      %v1237 = vpack.c.bf16 %v1235, %v1235
      %v1239 = vsel %vm1201, %v1236, 0
      %v1242 = vsel %vm1201, %v1237, 0
      %v1244 = vsel 0, 4294967295, 65535
      %v1245 = vsel %vm297, %v1244, 0
      %v1247 = vand.u32 %v1152, %v1245
      %1249 = vmatprep.subr.bf16.mxu0 0
      %1250 = vmatpush1.bf16.msra.mxu0 %v1151
      %1251 = vmatprep.subr.bf16.mxu0 0
      %1252 = vmatpush1.bf16.msra.mxu0 %v1247
      %1253 = vmatprep.subr.bf16.mxu0 0
      %1254 = vmatpush1.bf16.msra.mxu0 0
      %1255 = vmatprep.subr.bf16.mxu0 0
      %1256 = vmatpush1.bf16.msra.mxu0 0
      %1257 = vmatprep.subr.bf16.mxu0 0
      %1258 = vmatpush1.bf16.msra.mxu0 0
      %1259 = vmatprep.subr.bf16.mxu0 0
      %1260 = vmatpush1.bf16.msra.mxu0 0
      %1261 = vmatprep.subr.bf16.mxu0 0
      %1262 = vmatpush1.bf16.msra.mxu0 0
      %1263 = vmatprep.subr.bf16.mxu0 0
      %1264 = vmatpush1.bf16.msra.mxu0 0
      %1265 = vmatprep.subr.bf16.mxu0 0
      %1266 = vmatpush1.bf16.msra.mxu0 0
      %1267 = vmatprep.subr.bf16.mxu0 0
      %1268 = vmatpush1.bf16.msra.mxu0 0
      %1269 = vmatprep.subr.bf16.mxu0 0
      %1270 = vmatpush1.bf16.msra.mxu0 0
      %1271 = vmatprep.subr.bf16.mxu0 0
      %1272 = vmatpush1.bf16.msra.mxu0 0
      %1273 = vmatprep.subr.bf16.mxu0 0
      %1274 = vmatpush1.bf16.msra.mxu0 0
      %1275 = vmatprep.subr.bf16.mxu0 0
      %1276 = vmatpush1.bf16.msra.mxu0 0
      %1277 = vmatprep.subr.bf16.mxu0 0
      %1278 = vmatpush1.bf16.msra.mxu0 0
      %1279 = vmatprep.subr.bf16.mxu0 0
      %1280 = vmatpush1.bf16.msra.mxu0 0
      %1281 = vmatprep.mubr.bf16.mxu0 0
      %1282 = vmatmul.mubr.bf16.gmra.mrb[0].mxu0 %v1239
      %v1283 = vpop.f32.mrb[0].mxu0
      %v1284 = vadd.f32 0.0, %v1283
      %v1285 = vpop.f32.mrb[0].mxu0
      %v1286 = vpop.f32.mrb[0].mxu0
      %v1287 = vadd.f32 0.0, %v1286
      %v1288 = vpop.f32.mrb[0].mxu0
      %1289 = vmatprep.mubr.bf16.mxu0 0
      %1290 = vmatmul.mubr.bf16.gmra.mrb[0].mxu0 %v1242
      %v1291 = vpop.f32.mrb[0].mxu0
      %v1292 = vadd.f32 0.0, %v1291
      %v1293 = vpop.f32.mrb[0].mxu0
      %v1294 = vpop.f32.mrb[0].mxu0
      %v1295 = vpop.f32.mrb[0].mxu0
      %1296 = vdwg.mxu0
      %v1297 = vpack.c.bf16 %v1287, %v1284
      %v1298 = vpack.c.bf16 %v1292, %v1292
      %v1299 = vld [vmem:[%s5] sm:$0xff]
      %v1300 = vld [vmem:[%s5 + $0x8] sm:$0xff]
      %v1301 = vld [vmem:[%s5 + $0x10] sm:$0xff]
      %v1302 = vld [vmem:[%s5 + $0x18] sm:$0xff]
      %v1303 = vld [vmem:[%s5 + $0x20] sm:$0xff]
      %v1304 = vld [vmem:[%s5 + $0x28] sm:$0xff]
      %v1305 = vld [vmem:[%s5 + $0x30] sm:$0xff]
      %v1306 = vld [vmem:[%s5 + $0x38] sm:$0xff]
      %v1307 = vld [vmem:[%s5 + $0x40] sm:$0xff]
      %v1308 = vld [vmem:[%s5 + $0x48] sm:$0xff]
      %v1309 = vld [vmem:[%s5 + $0x50] sm:$0xff]
      %v1310 = vld [vmem:[%s5 + $0x58] sm:$0xff]
      %v1311 = vld [vmem:[%s5 + $0x60] sm:$0xff]
      %v1312 = vld [vmem:[%s5 + $0x68] sm:$0xff]
      %v1313 = vld [vmem:[%s5 + $0x70] sm:$0xff]
      %v1314 = vld [vmem:[%s5 + $0x78] sm:$0xff]
      %v1315 = vmul.f32 %v1028, 0.088388346
      %v1316 = vmul.f32 %v1032, 0.088388346
      %v1317 = vmul.f32 %v1038, 0.088388346
      %v1318 = vpack.c.bf16 %v1316, %v1315
      %v1319 = vpack.c.bf16 %v1317, %v1317
      %v1320 = vpack.c.bf16 %v1083, %v1079
      %v1321 = vpack.c.bf16 %v1089, %v1089
      %v1322 = vpack.c.bf16 %v1134, %v1130
      %v1323 = vpack.c.bf16 %v1140, %v1140
      %1324 = vmatprep.subr.bf16.mxu0 0
      %1325 = vmatpush1.bf16.xpose.msra.mxu0 %v1320
      %1326 = vmatprep.subr.bf16.mxu0 0
      %1327 = vmatpush1.bf16.xpose.msra.mxu0 %v1321
      %1328 = vmatprep.subr.bf16.mxu0 0
      %1329 = vmatpush1.bf16.xpose.msra.mxu0 0
      %1330 = vmatprep.subr.bf16.mxu0 0
      %1331 = vmatpush1.bf16.xpose.msra.mxu0 0
      %1332 = vmatprep.subr.bf16.mxu0 0
      %1333 = vmatpush1.bf16.xpose.msra.mxu0 0
      %1334 = vmatprep.subr.bf16.mxu0 0
      %1335 = vmatpush1.bf16.xpose.msra.mxu0 0
      %1336 = vmatprep.subr.bf16.mxu0 0
      %1337 = vmatpush1.bf16.xpose.msra.mxu0 0
      %1338 = vmatprep.subr.bf16.mxu0 0
      %1339 = vmatpush1.bf16.xpose.msra.mxu0 0
      %1340 = vmatprep.subr.bf16.mxu0 0
      %1341 = vmatpush1.bf16.xpose.msra.mxu0 0
      %1342 = vmatprep.subr.bf16.mxu0 0
      %1343 = vmatpush1.bf16.xpose.msra.mxu0 0
      %1344 = vmatprep.subr.bf16.mxu0 0
      %1345 = vmatpush1.bf16.xpose.msra.mxu0 0
      %1346 = vmatprep.subr.bf16.mxu0 0
      %1347 = vmatpush1.bf16.xpose.msra.mxu0 0
      %1348 = vmatprep.subr.bf16.mxu0 0
      %1349 = vmatpush1.bf16.xpose.msra.mxu0 0
      %1350 = vmatprep.subr.bf16.mxu0 0
      %1351 = vmatpush1.bf16.xpose.msra.mxu0 0
      %1352 = vmatprep.subr.bf16.mxu0 0
      %1353 = vmatpush1.bf16.xpose.msra.mxu0 0
      %1354 = vmatprep.subr.bf16.mxu0 0
      %1355 = vmatpush1.bf16.xpose.msra.mxu0 0
      %1356 = vmatprep.mubr.bf16.mxu0 0
      %1357 = vmatmul.mubr.bf16.gmra.mrb[0].mxu0 %v1318
      %v1358 = vpop.f32.mrb[0].mxu0
      %v1359 = vadd.f32 0.0, %v1358
      %v1360 = vpop.f32.mrb[0].mxu0
      %v1361 = vpop.f32.mrb[0].mxu0
      %v1362 = vadd.f32 0.0, %v1361
      %v1363 = vpop.f32.mrb[0].mxu0
      %1364 = vmatprep.mubr.bf16.mxu0 0
      %1365 = vmatmul.mubr.bf16.gmra.mrb[0].mxu0 %v1319
      %v1366 = vpop.f32.mrb[0].mxu0
      %v1367 = vadd.f32 0.0, %v1366
      %v1368 = vpop.f32.mrb[0].mxu0
      %v1369 = vpop.f32.mrb[0].mxu0
      %v1370 = vpop.f32.mrb[0].mxu0
      %1371 = vdwg.mxu0
      %v1372 = vsel %vm1201, %v1359, -inf
      %1373 = vmax.xlane.f32.xlu0 %v1372
      %v1374 = vpop.xlane.xlu0 %1373
      %v1375 = vsel %vm1201, %v1362, -inf
      %1376 = vmax.xlane.f32.xlu0 %v1375
      %v1377 = vpop.xlane.xlu0 %1376
      %v1378 = vsel %vm1208, %v1367, -inf
      %1379 = vmax.xlane.f32.xlu0 %v1378
      %v1380 = vpop.xlane.xlu0 %1379
      %v1381 = vsub.f32 %v1359, %v1374
      %v1382 = vsub.f32 %v1362, %v1377
      %v1383 = vsub.f32 %v1367, %v1380
      %v1384 = vmul.f32 %v1381, 1.442695
      %v1385 = vpow.pop %v1384
      %v1386 = vmul.f32 %v1382, 1.442695
      %v1387 = vpow.pop %v1386
      %v1388 = vmul.f32 %v1383, 1.442695
      %v1389 = vpow.pop %v1388
      %v1390 = vsel %vm1201, %v1385, 0.0
      %1391 = vadd.xlane.f32.xlu0 %v1390
      %v1392 = vpop.xlane.xlu0 %1391
      %v1393 = vsel %vm1201, %v1387, 0.0
      %1394 = vadd.xlane.f32.xlu0 %v1393
      %v1395 = vpop.xlane.xlu0 %1394
      %v1396 = vsel %vm1208, %v1389, 0.0
      %1397 = vadd.xlane.f32.xlu0 %v1396
      %v1398 = vpop.xlane.xlu0 %1397
      %v1399 = vrcp.pop %v1392
      %v1400 = vrcp.pop %v1395
      %v1401 = vrcp.pop %v1398
      %v1402 = vmul.f32 %v1385, %v1399
      %v1403 = vmul.f32 %v1387, %v1400
      %v1404 = vmul.f32 %v1389, %v1401
      %v1405 = vpack.c.bf16 %v1403, %v1402
      %v1406 = vpack.c.bf16 %v1404, %v1404
      %v1408 = vsel %vm1201, %v1405, 0
      %v1411 = vsel %vm1201, %v1406, 0
      %v1414 = vand.u32 %v1323, %v1245
      %1416 = vmatprep.subr.bf16.mxu0 0
      %1417 = vmatpush1.bf16.msra.mxu0 %v1322
      %1418 = vmatprep.subr.bf16.mxu0 0
      %1419 = vmatpush1.bf16.msra.mxu0 %v1414
      %1420 = vmatprep.subr.bf16.mxu0 0
      %1421 = vmatpush1.bf16.msra.mxu0 0
      %1422 = vmatprep.subr.bf16.mxu0 0
      %1423 = vmatpush1.bf16.msra.mxu0 0
      %1424 = vmatprep.subr.bf16.mxu0 0
      %1425 = vmatpush1.bf16.msra.mxu0 0
      %1426 = vmatprep.subr.bf16.mxu0 0
      %1427 = vmatpush1.bf16.msra.mxu0 0
      %1428 = vmatprep.subr.bf16.mxu0 0
      %1429 = vmatpush1.bf16.msra.mxu0 0
      %1430 = vmatprep.subr.bf16.mxu0 0
      %1431 = vmatpush1.bf16.msra.mxu0 0
      %1432 = vmatprep.subr.bf16.mxu0 0
      %1433 = vmatpush1.bf16.msra.mxu0 0
      %1434 = vmatprep.subr.bf16.mxu0 0
      %1435 = vmatpush1.bf16.msra.mxu0 0
      %1436 = vmatprep.subr.bf16.mxu0 0
      %1437 = vmatpush1.bf16.msra.mxu0 0
      %1438 = vmatprep.subr.bf16.mxu0 0
      %1439 = vmatpush1.bf16.msra.mxu0 0
      %1440 = vmatprep.subr.bf16.mxu0 0
      %1441 = vmatpush1.bf16.msra.mxu0 0
      %1442 = vmatprep.subr.bf16.mxu0 0
      %1443 = vmatpush1.bf16.msra.mxu0 0
      %1444 = vmatprep.subr.bf16.mxu0 0
      %1445 = vmatpush1.bf16.msra.mxu0 0
      %1446 = vmatprep.subr.bf16.mxu0 0
      %1447 = vmatpush1.bf16.msra.mxu0 0
      %1448 = vmatprep.mubr.bf16.mxu0 0
      %1449 = vmatmul.mubr.bf16.gmra.mrb[0].mxu0 %v1408
      %v1450 = vpop.f32.mrb[0].mxu0
      %v1451 = vadd.f32 0.0, %v1450
      %v1452 = vpop.f32.mrb[0].mxu0
      %v1453 = vpop.f32.mrb[0].mxu0
      %v1454 = vadd.f32 0.0, %v1453
      %v1455 = vpop.f32.mrb[0].mxu0
      %1456 = vmatprep.mubr.bf16.mxu0 0
      %1457 = vmatmul.mubr.bf16.gmra.mrb[0].mxu0 %v1411
      %v1458 = vpop.f32.mrb[0].mxu0
      %v1459 = vadd.f32 0.0, %v1458
      %v1460 = vpop.f32.mrb[0].mxu0
      %v1461 = vpop.f32.mrb[0].mxu0
      %v1462 = vpop.f32.mrb[0].mxu0
      %1463 = vdwg.mxu0
      %v1464 = vpack.c.bf16 %v1454, %v1451
      %v1465 = vpack.c.bf16 %v1459, %v1459
      %v1466 = vld [vmem:[%s5 + $0x80] sm:$0xff]
      %v1467 = vld [vmem:[%s5 + $0x88] sm:$0xff]
      %v1468 = vld [vmem:[%s5 + $0x90] sm:$0xff]
      %v1469 = vld [vmem:[%s5 + $0x98] sm:$0xff]
      %v1470 = vld [vmem:[%s5 + $0xa0] sm:$0xff]
      %v1471 = vld [vmem:[%s5 + $0xa8] sm:$0xff]
      %v1472 = vld [vmem:[%s5 + $0xb0] sm:$0xff]
      %v1473 = vld [vmem:[%s5 + $0xb8] sm:$0xff]
      %v1474 = vld [vmem:[%s5 + $0xc0] sm:$0xff]
      %v1475 = vld [vmem:[%s5 + $0xc8] sm:$0xff]
      %v1476 = vld [vmem:[%s5 + $0xd0] sm:$0xff]
      %v1477 = vld [vmem:[%s5 + $0xd8] sm:$0xff]
      %v1478 = vld [vmem:[%s5 + $0xe0] sm:$0xff]
      %v1479 = vld [vmem:[%s5 + $0xe8] sm:$0xff]
      %v1480 = vld [vmem:[%s5 + $0xf0] sm:$0xff]
      %v1481 = vld [vmem:[%s5 + $0xf8] sm:$0xff]
      %v1498 = vunpack.c.l.b16 %v1466
      %v1499 = vunpack.c.h.b16 %v1466
      %v1500 = vunpack.c.l.b16 %v1467
      %v1501 = vunpack.c.h.b16 %v1467
      %v1502 = vunpack.c.l.b16 %v1468
      %v1503 = vunpack.c.h.b16 %v1468
      %v1504 = vunpack.c.l.b16 %v1469
      %v1505 = vunpack.c.h.b16 %v1469
      %v1506 = vunpack.c.l.b16 %v1470
      %v1507 = vunpack.c.h.b16 %v1470
      %v1508 = vunpack.c.l.b16 %v1471
      %v1509 = vunpack.c.h.b16 %v1471
      %v1510 = vunpack.c.l.b16 %v1472
      %v1511 = vunpack.c.h.b16 %v1472
      %v1512 = vunpack.c.l.b16 %v1473
      %v1513 = vunpack.c.h.b16 %v1473
      %v1514 = vunpack.c.l.b16 %v1474
      %v1515 = vunpack.c.h.b16 %v1474
      %v1516 = vunpack.c.l.b16 %v1475
      %v1517 = vunpack.c.h.b16 %v1475
      %v1518 = vunpack.c.l.b16 %v1476
      %v1519 = vunpack.c.h.b16 %v1476
      %v1520 = vunpack.c.l.b16 %v1477
      %v1521 = vunpack.c.h.b16 %v1477
      %v1522 = vunpack.c.l.b16 %v1478
      %v1523 = vunpack.c.h.b16 %v1478
      %v1524 = vunpack.c.l.b16 %v1479
      %v1525 = vunpack.c.h.b16 %v1479
      %v1526 = vunpack.c.l.b16 %v1480
      %v1527 = vunpack.c.h.b16 %v1480
      %v1528 = vunpack.c.l.b16 %v1481
      %v1529 = vunpack.c.h.b16 %v1481
      %v1530 = vpack.c.b16 %v1500, %v1498
      %v1531 = vpack.c.b16 %v1501, %v1499
      %v1532 = vpack.c.b16 %v1504, %v1502
      %v1533 = vpack.c.b16 %v1505, %v1503
      %v1534 = vpack.c.b16 %v1508, %v1506
      %v1535 = vpack.c.b16 %v1509, %v1507
      %v1536 = vpack.c.b16 %v1512, %v1510
      %v1537 = vpack.c.b16 %v1513, %v1511
      %v1538 = vpack.c.b16 %v1516, %v1514
      %v1539 = vpack.c.b16 %v1517, %v1515
      %v1540 = vpack.c.b16 %v1520, %v1518
      %v1541 = vpack.c.b16 %v1521, %v1519
      %v1542 = vpack.c.b16 %v1524, %v1522
      %v1543 = vpack.c.b16 %v1525, %v1523
      %v1544 = vpack.c.b16 %v1528, %v1526
      %v1545 = vpack.c.b16 %v1529, %v1527
      %1562 = vmatprep.subr.bf16.mxu0 %v1531
      %1563 = vmatpush1.bf16.msra.mxu0 %v1530
      %1564 = vmatprep.subr.bf16.mxu0 %v1533
      %1565 = vmatpush1.bf16.msra.mxu0 %v1532
      %1566 = vmatprep.subr.bf16.mxu0 %v1535
      %1567 = vmatpush1.bf16.msra.mxu0 %v1534
      %1568 = vmatprep.subr.bf16.mxu0 %v1537
      %1569 = vmatpush1.bf16.msra.mxu0 %v1536
      %1570 = vmatprep.subr.bf16.mxu0 %v1539
      %1571 = vmatpush1.bf16.msra.mxu0 %v1538
      %1572 = vmatprep.subr.bf16.mxu0 %v1541
      %1573 = vmatpush1.bf16.msra.mxu0 %v1540
      %1574 = vmatprep.subr.bf16.mxu0 %v1543
      %1575 = vmatpush1.bf16.msra.mxu0 %v1542
      %1576 = vmatprep.subr.bf16.mxu0 %v1545
      %1577 = vmatpush1.bf16.msra.mxu0 %v1544
      %1578 = vmatprep.subr.bf16.mxu0 0
      %1579 = vmatpush1.bf16.msra.mxu0 0
      %1580 = vmatprep.subr.bf16.mxu0 0
      %1581 = vmatpush1.bf16.msra.mxu0 0
      %1582 = vmatprep.subr.bf16.mxu0 0
      %1583 = vmatpush1.bf16.msra.mxu0 0
      %1584 = vmatprep.subr.bf16.mxu0 0
      %1585 = vmatpush1.bf16.msra.mxu0 0
      %1586 = vmatprep.subr.bf16.mxu0 0
      %1587 = vmatpush1.bf16.msra.mxu0 0
      %1588 = vmatprep.subr.bf16.mxu0 0
      %1589 = vmatpush1.bf16.msra.mxu0 0
      %1590 = vmatprep.subr.bf16.mxu0 0
      %1591 = vmatpush1.bf16.msra.mxu0 0
      %1592 = vmatprep.subr.bf16.mxu0 0
      %1593 = vmatpush1.bf16.msra.mxu0 0
      %1594 = vmatprep.mubr.bf16.mxu0 0
      %1595 = vmatmul.mubr.bf16.gmra.mrb[0].mxu0 %v1464
      %v1596 = vpop.f32.mrb[0].mxu0
      %v1597 = vadd.f32 0.0, %v1596
      %v1598 = vpop.f32.mrb[0].mxu0
      %v1599 = vadd.f32 0.0, %v1598
      %v1600 = vpop.f32.mrb[0].mxu0
      %v1601 = vadd.f32 0.0, %v1600
      %v1602 = vpop.f32.mrb[0].mxu0
      %v1603 = vadd.f32 0.0, %v1602
      %1604 = vmatprep.mubr.bf16.mxu0 0
      %1605 = vmatmul.mubr.bf16.gmra.mrb[0].mxu0 %v1465
      %v1606 = vpop.f32.mrb[0].mxu0
      %v1607 = vadd.f32 0.0, %v1606
      %v1608 = vpop.f32.mrb[0].mxu0
      %v1609 = vadd.f32 0.0, %v1608
      %v1610 = vpop.f32.mrb[0].mxu0
      %v1611 = vpop.f32.mrb[0].mxu0
      %1612 = vdwg.mxu0
      %v1629 = vunpack.c.l.b16 %v1299
      %v1630 = vunpack.c.h.b16 %v1299
      %v1631 = vunpack.c.l.b16 %v1300
      %v1632 = vunpack.c.h.b16 %v1300
      %v1633 = vunpack.c.l.b16 %v1301
      %v1634 = vunpack.c.h.b16 %v1301
      %v1635 = vunpack.c.l.b16 %v1302
      %v1636 = vunpack.c.h.b16 %v1302
      %v1637 = vunpack.c.l.b16 %v1303
      %v1638 = vunpack.c.h.b16 %v1303
      %v1639 = vunpack.c.l.b16 %v1304
      %v1640 = vunpack.c.h.b16 %v1304
      %v1641 = vunpack.c.l.b16 %v1305
      %v1642 = vunpack.c.h.b16 %v1305
      %v1643 = vunpack.c.l.b16 %v1306
      %v1644 = vunpack.c.h.b16 %v1306
      %v1645 = vunpack.c.l.b16 %v1307
      %v1646 = vunpack.c.h.b16 %v1307
      %v1647 = vunpack.c.l.b16 %v1308
      %v1648 = vunpack.c.h.b16 %v1308
      %v1649 = vunpack.c.l.b16 %v1309
      %v1650 = vunpack.c.h.b16 %v1309
      %v1651 = vunpack.c.l.b16 %v1310
      %v1652 = vunpack.c.h.b16 %v1310
      %v1653 = vunpack.c.l.b16 %v1311
      %v1654 = vunpack.c.h.b16 %v1311
      %v1655 = vunpack.c.l.b16 %v1312
      %v1656 = vunpack.c.h.b16 %v1312
      %v1657 = vunpack.c.l.b16 %v1313
      %v1658 = vunpack.c.h.b16 %v1313
      %v1659 = vunpack.c.l.b16 %v1314
      %v1660 = vunpack.c.h.b16 %v1314
      %v1661 = vpack.c.b16 %v1631, %v1629
      %v1662 = vpack.c.b16 %v1632, %v1630
      %v1663 = vpack.c.b16 %v1635, %v1633
      %v1664 = vpack.c.b16 %v1636, %v1634
      %v1665 = vpack.c.b16 %v1639, %v1637
      %v1666 = vpack.c.b16 %v1640, %v1638
      %v1667 = vpack.c.b16 %v1643, %v1641
      %v1668 = vpack.c.b16 %v1644, %v1642
      %v1669 = vpack.c.b16 %v1647, %v1645
      %v1670 = vpack.c.b16 %v1648, %v1646
      %v1671 = vpack.c.b16 %v1651, %v1649
      %v1672 = vpack.c.b16 %v1652, %v1650
      %v1673 = vpack.c.b16 %v1655, %v1653
      %v1674 = vpack.c.b16 %v1656, %v1654
      %v1675 = vpack.c.b16 %v1659, %v1657
      %v1676 = vpack.c.b16 %v1660, %v1658
      %1693 = vmatprep.subr.bf16.mxu0 %v1662
      %1694 = vmatpush1.bf16.msra.mxu0 %v1661
      %1695 = vmatprep.subr.bf16.mxu0 %v1664
      %1696 = vmatpush1.bf16.msra.mxu0 %v1663
      %1697 = vmatprep.subr.bf16.mxu0 %v1666
      %1698 = vmatpush1.bf16.msra.mxu0 %v1665
      %1699 = vmatprep.subr.bf16.mxu0 %v1668
      %1700 = vmatpush1.bf16.msra.mxu0 %v1667
      %1701 = vmatprep.subr.bf16.mxu0 %v1670
      %1702 = vmatpush1.bf16.msra.mxu0 %v1669
      %1703 = vmatprep.subr.bf16.mxu0 %v1672
      %1704 = vmatpush1.bf16.msra.mxu0 %v1671
      %1705 = vmatprep.subr.bf16.mxu0 %v1674
      %1706 = vmatpush1.bf16.msra.mxu0 %v1673
      %1707 = vmatprep.subr.bf16.mxu0 %v1676
      %1708 = vmatpush1.bf16.msra.mxu0 %v1675
      %1709 = vmatprep.subr.bf16.mxu0 0
      %1710 = vmatpush1.bf16.msra.mxu0 0
      %1711 = vmatprep.subr.bf16.mxu0 0
      %1712 = vmatpush1.bf16.msra.mxu0 0
      %1713 = vmatprep.subr.bf16.mxu0 0
      %1714 = vmatpush1.bf16.msra.mxu0 0
      %1715 = vmatprep.subr.bf16.mxu0 0
      %1716 = vmatpush1.bf16.msra.mxu0 0
      %1717 = vmatprep.subr.bf16.mxu0 0
      %1718 = vmatpush1.bf16.msra.mxu0 0
      %1719 = vmatprep.subr.bf16.mxu0 0
      %1720 = vmatpush1.bf16.msra.mxu0 0
      %1721 = vmatprep.subr.bf16.mxu0 0
      %1722 = vmatpush1.bf16.msra.mxu0 0
      %1723 = vmatprep.subr.bf16.mxu0 0
      %1724 = vmatpush1.bf16.msra.mxu0 0
      %1725 = vmatprep.mubr.bf16.mxu0 0
      %1726 = vmatmul.mubr.bf16.gmra.mrb[0].mxu0 %v1297
      %v1727 = vpop.f32.mrb[0].mxu0
      %v1728 = vadd.f32 %v1597, %v1727
      %v1729 = vpop.f32.mrb[0].mxu0
      %v1730 = vadd.f32 %v1599, %v1729
      %v1731 = vpop.f32.mrb[0].mxu0
      %v1732 = vadd.f32 %v1601, %v1731
      %v1733 = vpop.f32.mrb[0].mxu0
      %v1734 = vadd.f32 %v1603, %v1733
      %1735 = vmatprep.mubr.bf16.mxu0 0
      %1736 = vmatmul.mubr.bf16.gmra.mrb[0].mxu0 %v1298
      %v1737 = vpop.f32.mrb[0].mxu0
      %v1738 = vadd.f32 %v1607, %v1737
      %v1739 = vpop.f32.mrb[0].mxu0
      %v1740 = vadd.f32 %v1609, %v1739
      %v1741 = vpop.f32.mrb[0].mxu0
      %v1742 = vpop.f32.mrb[0].mxu0
      %1743 = vdwg.mxu0
      %v1744 = vld [vmem:[%s6] sm:$0x3]
      %v1746 = vlaneseq
      %v1747 = vshrl.u32 %v1746, 7
      %v1748 = vsub.s32 0, %v1747
      %v1749 = vrot.slane %v1744, %v1748
      %v1750 = vlaneseq
      %v1751 = vshrl.u32 %v1750, 7
      %v1752 = vsub.s32 1, %v1751
      %v1753 = vrot.slane %v1744, %v1752
      %v1756 = vadd.f32 %v1728, %v1749
      %v1757 = vadd.f32 %v1730, %v1753
      %v1758 = vadd.f32 %v1732, %v1749
      %v1759 = vadd.f32 %v1734, %v1753
      %v1760 = vadd.f32 %v1738, %v1749
      %v1761 = vadd.f32 %v1740, %v1753
      %v1762 = vadd.f32 %v283, %v1756
      %v1763 = vadd.f32 %v284, %v1757
      %v1764 = vadd.f32 %v285, %v1758
      %v1765 = vadd.f32 %v286, %v1759
      %v1766 = vadd.f32 %v287, %v1760
      %v1767 = vadd.f32 %v288, %v1761
      %v1768 = vpack.c.bf16 %v1764, %v1762
      %v1769 = vpack.c.bf16 %v1765, %v1763
      %v1770 = vpack.c.bf16 %v1766, %v1766
      %v1771 = vpack.c.bf16 %v1767, %v1767
      %v1776 = vunpack.c.l.b16 %v1768
      %v1777 = vunpack.c.l.b16 %v1769
      %v1778 = vunpack.c.h.b16 %v1768
      %v1779 = vunpack.c.h.b16 %v1769
      %v1780 = vunpack.c.l.b16 %v1770
      %v1781 = vunpack.c.l.b16 %v1771
      %v1782 = vpack.c.b16 %v1777, %v1776
      %v1783 = vpack.c.b16 %v1779, %v1778
      %v1784 = vpack.c.b16 %v1781, %v1780
      %1788 = vst [vmem:[%s278] sm:$0xff] %v1782
      %1789 = vst [vmem:[%s278 + $0x8] sm:$0xff] %v1783
      %vm1790 = vcmask 1040384
      %vm1791 = vsmask.f32 256
      %vm1792 = vmand %vm1790, %vm1791
      %vm1793 = vcmask 1044484
      %vm1794 = vsmask.f32 4352
      %vm1795 = vmand %vm1793, %vm1794
      %vm1796 = vmor %vm1795, %vm1792
      %v1797 = vld [vmem:[%s278 + $0x10] sm:$0x11]
      %v1798 = vsel %vm1796, %v1784, %v1797
      %1799 = vst [vmem:[%s278 + $0x10] sm:$0x11] %v1798
      %p1800 = scmp.lt.s32.totalorder %s18, 1
      %s1801 = scalar_select %p1800, %s18, 1
      %s1802 = smul.addr %s1801, 6
      %s1803 = smul.addr %s1802, 4
      %s1804 = scalar_lea.vmem %s7, %s1803
      // Predicated region
      $region49: #{dino_classifier_forward.7} parent=47 // pred_check
        %p1805 = pneg %p188
      $region50: #{dino_classifier_forward.7} parent=47 // pred_check_branch
        %1807 = sbr.rel (%p1805) target = $region52
      $region51: #{dino_classifier_forward.7} parent=47 // pred_region
        _
      $region52: #{dino_classifier_forward.7} parent=47 // pred_fallthru
        _
    $region48: #{dino_classifier_forward.7} parent=5 // pred_fallthru
      _
    %p1808 = scmp.le.s32.totalorder 2, %s13
    // Predicated region
    $region53: #{dino_classifier_forward.7} parent=5 // pred_check
      %p1809 = pneg %p1808
    $region54: #{dino_classifier_forward.7} parent=5 // pred_check_branch
      %1811 = sbr.rel (%p1809) target = $region56
    $region55: #{dino_classifier_forward.7} parent=5 // pred_region
      %s1812 = ssub.s32 %s13, 2
      // Predicated region
      $region57: #{dino_classifier_forward.7} parent=55 // pred_check
        %p1813 = pneg %p194
      $region58: #{dino_classifier_forward.7} parent=55 // pred_check_branch
        %1815 = sbr.rel (%p1813) target = $region60
      $region59: #{dino_classifier_forward.7} parent=55 // pred_region
        %p1816 = scmp.lt.s32.totalorder %s19, 1
        %s1817 = scalar_select %p1816, %s19, 1
        %s1818 = smul.addr %s1817, 6
        %s1819 = smul.addr %s1818, 4
        %s1820 = scalar_lea.vmem %s7, %s1819
      $region60: #{dino_classifier_forward.7} parent=55 // pred_fallthru
        _
    $region56: #{dino_classifier_forward.7} parent=5 // pred_fallthru
      _
  $region6: #{dino_classifier_forward.7} parent=0 // loop_footer
    %s17 = sadd.s32 1, %s13
  $region7: #{dino_classifier_forward.7} parent=0 // loop_footer_branch
    %12 = sbr.rel target = $region3
  $region8: #{dino_classifier_forward.7} parent=0 // loop_exit
    _

</llo_original>
